<compile_context>
chip_gen: v5e
topology: v5e:2x2
jax: 0.10.0
libtpu: 0.0.40
codegen_flags: <defaults>
</compile_context>

<pallas_src>
import functools
import math

import jax
import jax.numpy as jnp
from jax import lax
from jax.experimental import pallas as pl
from jax.experimental.pallas import tpu as pltpu

BN_EPS = 1e-5
_LANE = 128


# ----------------------------------------------------------------------------
# small static helpers
# ----------------------------------------------------------------------------
def _round_up(x, m):
    return ((x + m - 1) // m) * m


def _vmem_budget():
    """Generation-aware VMEM limit (v5e/v6e: 128 MiB physical, v7x: 64 MiB)."""
    cap = 64 * 1024 * 1024
    try:
        cap = int(pltpu.get_tpu_info().vmem_capacity_bytes)
    except Exception:
        pass
    return min(cap // 2, 48 * 1024 * 1024)


_VMEM_LIMIT = _vmem_budget()


def _choose_th(H, W, cp, coutp):
    """Output rows per 3x3-conv grid step: divides H and keeps the per-step
    working set (halo block + shifted-window LHS + f32 accumulator + y tile,
    with double buffering) comfortably inside the VMEM budget."""
    per_row = max(1, W * (10 * cp + 8 * min(coutp, 256)))
    cap = max(1, _VMEM_LIMIT // (3 * per_row))
    limit = max(1, min(H, 32, cap))
    for d in range(limit, 0, -1):
        if H % d == 0:
            return d
    return 1


def _row_tile(M, cols, elem_bytes=4, max_bytes=4 * 1024 * 1024):
    """Largest multiple-of-8 divisor of M with tile <= max_bytes."""
    cap = min(M, max(8, max_bytes // (max(cols, 1) * elem_bytes)))
    d = cap - (cap % 8)
    while d >= 8:
        if M % d == 0:
            return d
        d -= 8
    # TODO(synk): ragged M (not a multiple of 8) falls back to one full block.
    return M


# ----------------------------------------------------------------------------
# 3x3 conv, pass 1: conv (bias-free; BN cancels it) + per-tile BN stat partials
#   grid = (Cout tile j, image n, H tile t); all axes "parallel".
# ----------------------------------------------------------------------------
def _conv3x3_kernel(xb_ref, w_ref, y_ref, st_ref, *, TH, W):
    Cp = xb_ref.shape[-1]
    TN = y_ref.shape[-1]

    xb = xb_ref[0, 0]                                   # (TH+2, W+2, Cp) bf16
    # Fold the kw taps into the contraction: concat the three kw-shifted
    # windows along the channel (lane) axis -> (TH+2, W, 3*Cp).
    xcat = jnp.concatenate(
        [xb[:, 0:W, :], xb[:, 1:W + 1, :], xb[:, 2:W + 2, :]], axis=-1)

    acc = jnp.zeros((TH * W, TN), jnp.float32)
    for kh in range(3):                                 # 3 big MXU calls/step
        lhs = xcat[kh:kh + TH].reshape(TH * W, 3 * Cp)  # (TH*W, 3*Cp) bf16
        acc = acc + jnp.dot(lhs, w_ref[kh],
                            preferred_element_type=jnp.float32)

    y_ref[0, 0] = acc.reshape(TH, W, TN).astype(y_ref.dtype)

    ssum = jnp.sum(acc, axis=0, keepdims=True)          # (1, TN) f32
    ssq = jnp.sum(acc * acc, axis=0, keepdims=True)
    st_ref[0, 0] = jnp.concatenate([ssum, ssq], axis=0)  # (2, TN)


def _conv3x3_pass1(xb, wk, *, N, T, TH, W, Coutp, TN):
    THH, WP, Cp = TH + 2, W + 2, xb.shape[-1]
    J = Coutp // TN
    kernel = functools.partial(_conv3x3_kernel, TH=TH, W=W)
    y, stats = pl.pallas_call(
        kernel,
        out_shape=(
            jax.ShapeDtypeStruct((N, T, TH, W, Coutp), jnp.bfloat16),
            jax.ShapeDtypeStruct((N, T, 2, Coutp), jnp.float32),
        ),
        grid_spec=pltpu.PrefetchScalarGridSpec(
            num_scalar_prefetch=0,
            grid=(J, N, T),
            in_specs=[
                pl.BlockSpec((1, 1, THH, WP, Cp),
                             lambda j, n, t: (n, t, 0, 0, 0)),      # halo block
                pl.BlockSpec((3, 3 * Cp, TN), lambda j, n, t: (0, 0, j)),  # W
            ],
            out_specs=(
                pl.BlockSpec((1, 1, TH, W, TN),
                             lambda j, n, t: (n, t, 0, 0, j)),      # y (bf16)
                pl.BlockSpec((1, 1, 2, TN),
                             lambda j, n, t: (n, t, 0, j)),         # stats
            ),
        ),
        compiler_params=pltpu.CompilerParams(
            dimension_semantics=("parallel", "parallel", "parallel"),
            vmem_limit_bytes=_VMEM_LIMIT),
    )(xb, wk)
    return y, stats


# ----------------------------------------------------------------------------
# 3x3 conv, pass 2: tiled  out = ReLU(y * scale + shift)  [+ residual]
# ----------------------------------------------------------------------------
def _bn_relu_kernel(y_ref, sc_ref, sh_ref, o_ref):
    y = y_ref[...].astype(jnp.float32)
    o_ref[...] = jnp.maximum(y * sc_ref[...] + sh_ref[...],
                             0.0).astype(o_ref.dtype)


def _bn_relu_add_kernel(y_ref, sc_ref, sh_ref, r_ref, o_ref):
    y = y_ref[...].astype(jnp.float32)
    o = jnp.maximum(y * sc_ref[...] + sh_ref[...], 0.0)
    o_ref[...] = (o + r_ref[...].astype(jnp.float32)).astype(o_ref.dtype)


def _bn_relu_pass2(y, scale, shift, res=None):
    M, Cp = y.shape
    TM = _row_tile(M, Cp, elem_bytes=2, max_bytes=4 * 1024 * 1024)
    row_spec = pl.BlockSpec((TM, Cp), lambda i: (i, 0))
    vec_spec = pl.BlockSpec((1, Cp), lambda i: (0, 0))
    if res is None:
        kernel, operands = _bn_relu_kernel, (y, scale, shift)
        in_specs = [row_spec, vec_spec, vec_spec]
    else:
        kernel, operands = _bn_relu_add_kernel, (y, scale, shift, res)
        in_specs = [row_spec, vec_spec, vec_spec, row_spec]
    return pl.pallas_call(
        kernel,
        out_shape=jax.ShapeDtypeStruct((M, Cp), jnp.bfloat16),
        grid_spec=pltpu.PrefetchScalarGridSpec(
            num_scalar_prefetch=0, grid=(M // TM,),
            in_specs=in_specs, out_specs=row_spec),
        compiler_params=pltpu.CompilerParams(
            dimension_semantics=("parallel",),
            vmem_limit_bytes=_VMEM_LIMIT),
    )(*operands)


def conv3x3_bn_relu(s, conv_p, bn_p, post_add=None):
    """bf16 NHWC (padded C) -> bf16 NHWC: ReLU(BatchNorm(conv3x3(s))) [+ post_add].
    The conv bias is omitted: with train-mode BatchNorm directly after, a
    per-channel constant is exactly cancelled by mean subtraction."""
    N, H, W, Cp = s.shape
    assert conv_p["w"].shape[1] == 3 * Cp
    Coutp = conv_p["w"].shape[-1]
    TN = 256 if Coutp % 256 == 0 else _LANE
    TH = _choose_th(H, W, Cp, Coutp)
    T = H // TH

    sp = jnp.pad(s, ((0, 0), (1, 1), (1, 1), (0, 0)))     # bf16 spatial pad
    if T == 1:
        xb = sp[:, None]                                   # no halo gather
    else:
        # TODO(synk): for T > 1 overlapping halo blocks (~1.25x, bf16) are still
        # materialised XLA-side; an in-kernel window fetch would remove this.
        ridx = jnp.arange(T)[:, None] * TH + jnp.arange(TH + 2)[None, :]
        xb = jnp.take(sp, ridx, axis=1)                    # (N,T,TH+2,W+2,Cp)

    y, stats = _conv3x3_pass1(xb, conv_p["w"],
                              N=N, T=T, TH=TH, W=W, Coutp=Coutp, TN=TN)

    # Train-mode BN statistics over N*H*W (tiny per-channel JAX math).
    M = N * H * W
    st = jnp.sum(stats, axis=(0, 1))                       # (2, Coutp) f32
    mean = st[0] / M
    var = jnp.maximum(st[1] / M - mean * mean, 0.0)
    inv = lax.rsqrt(var + BN_EPS)
    scale = (bn_p["gamma"] * inv).reshape(1, Coutp)
    shift = (bn_p["beta"] - mean * bn_p["gamma"] * inv).reshape(1, Coutp)

    res = None if post_add is None else post_add.reshape(M, Coutp)
    out = _bn_relu_pass2(y.reshape(M, Coutp), scale, shift, res)
    return out.reshape(N, H, W, Coutp)


# ----------------------------------------------------------------------------
# 1x1 conv (bias, no BN / act) as a tiled matmul
# ----------------------------------------------------------------------------
def _conv1x1_kernel(x_ref, w_ref, b_ref, o_ref):
    o_ref[...] = (jnp.dot(x_ref[...], w_ref[...],
                          preferred_element_type=jnp.float32)
                  + b_ref[...]).astype(o_ref.dtype)


def conv1x1(x, conv_p):
    N, H, W, Cin = x.shape
    assert conv_p["w"].shape[0] == Cin
    Coutp = conv_p["w"].shape[-1]
    TN = 256 if Coutp % 256 == 0 else _LANE
    J = Coutp // TN
    M = N * H * W
    xf = x.reshape(M, Cin).astype(jnp.bfloat16)
    TM = _row_tile(M, max(Cin, TN), elem_bytes=4, max_bytes=4 * 1024 * 1024)
    out = pl.pallas_call(
        _conv1x1_kernel,
        out_shape=jax.ShapeDtypeStruct((M, Coutp), jnp.bfloat16),
        grid_spec=pltpu.PrefetchScalarGridSpec(
            num_scalar_prefetch=0,
            grid=(M // TM, J),
            in_specs=[
                pl.BlockSpec((TM, Cin), lambda i, j: (i, 0)),
                pl.BlockSpec((Cin, TN), lambda i, j: (0, j)),
                pl.BlockSpec((1, TN), lambda i, j: (0, j)),
            ],
            out_specs=pl.BlockSpec((TM, TN), lambda i, j: (i, j))),
        compiler_params=pltpu.CompilerParams(
            dimension_semantics=("parallel", "parallel"),
            vmem_limit_bytes=_VMEM_LIMIT),
    )(xf, conv_p["w"], conv_p["b"])
    return out.reshape(N, H, W, Coutp)


# ----------------------------------------------------------------------------
# parameters (shapes match RRCNN_block.__init__; deterministic init)
# ----------------------------------------------------------------------------
def _conv_params(key, cin, cout, ksize, cinp, coutp):
    kw_key, kb_key = jax.random.split(key)
    fan_in = cin * ksize * ksize
    w = jax.random.normal(kw_key, (cout, cin, ksize, ksize),
                          jnp.float32) / math.sqrt(fan_in)
    b = 0.01 * jax.random.normal(kb_key, (cout,), jnp.float32)
    if ksize == 1:
        wm = jnp.pad(w.reshape(cout, cin).T,
                     ((0, cinp - cin), (0, coutp - cout)))        # (cinp,coutp)
    else:
        wm = jnp.transpose(w, (2, 3, 1, 0))                       # (3,3,cin,cout)
        wm = jnp.pad(wm, ((0, 0), (0, 0),
                          (0, cinp - cin), (0, coutp - cout)))
        wm = wm.reshape(ksize, ksize * cinp, coutp)               # kw folded in K
    bp = jnp.pad(b, (0, coutp - cout)).reshape(1, coutp)
    return {"w": wm.astype(jnp.bfloat16), "b": bp}


def _bn_params(coutp):
    return {"gamma": jnp.ones((coutp,), jnp.float32),
            "beta": jnp.zeros((coutp,), jnp.float32)}


def make_rrcnn_params(seed, ch_in, ch_out, t=2):
    k1, k2, k3 = jax.random.split(jax.random.PRNGKey(seed), 3)
    coutp = _round_up(ch_out, _LANE)
    return {
        "conv1x1": _conv_params(k1, ch_in, ch_out, 1, ch_in, coutp),
        "r1": {"conv": _conv_params(k2, ch_out, ch_out, 3, coutp, coutp),
               "bn": _bn_params(coutp)},
        "r2": {"conv": _conv_params(k3, ch_out, ch_out, 3, coutp, coutp),
               "bn": _bn_params(coutp)},
        "t": t,
        "ch_out": ch_out,
    }


# ----------------------------------------------------------------------------
# forward pass (matches RRCNN_block / Recurrent_block semantics, BN train mode)
# ----------------------------------------------------------------------------
def recurrent_forward(rp, x, t, final_add=None):
    # PyTorch: x1 = conv(x); repeat t times: x1 = conv(x + x1); return x1.
    # The "x + x1" feed-back add is fused into the BN/ReLU pass of the conv
    # that produced x1, and final_add (the outer RRCNN residual) is fused into
    # the terminal step, so no standalone elementwise kernels remain.
    s = x
    for step in range(t + 1):
        post = x if step < t else final_add
        s = conv3x3_bn_relu(s, rp["conv"], rp["bn"], post_add=post)
    return s


def rrcnn_forward(params, x_nchw):
    x = jnp.transpose(x_nchw, (0, 2, 3, 1)).astype(jnp.float32)   # NCHW -> NHWC
    x0 = conv1x1(x, params["conv1x1"])                            # Conv_1x1 (bf16)
    h = recurrent_forward(params["r1"], x0, params["t"])
    out = recurrent_forward(params["r2"], h, params["t"],
                            final_add=x0)                         # x + RCNN(x)
    out = out[..., :params["ch_out"]].astype(jnp.float32)         # drop ch pad
    return jnp.transpose(out, (0, 3, 1, 2))                       # back to NCHW


if __name__ == "__main__":
    N, CH_IN, CH_OUT, H, W = 2, 4, 32, 16, 16
    params = make_rrcnn_params(seed=0, ch_in=CH_IN, ch_out=CH_OUT, t=2)
    x = jax.random.normal(jax.random.PRNGKey(0), (N, CH_IN, H, W), jnp.float32)
    fwd = jax.jit(functools.partial(rrcnn_forward, params))
    out = jax.block_until_ready(fwd(x))
    assert out.shape == (N, CH_OUT, H, W), out.shape
    assert bool(jnp.all(jnp.isfinite(out)))
    print("KERNEL_OK")
</pallas_src>

<mosaic_0001>
module attributes {stable_mosaic.version = 11 : i64} {
  func.func @_conv1x1_kernel(%arg0: i32, %arg1: i32, %arg2: memref<512x4xbf16, #tpu.memory_space<vmem>>, %arg3: memref<4x128xbf16, #tpu.memory_space<vmem>>, %arg4: memref<1x128xf32, #tpu.memory_space<vmem>>, %arg5: memref<512x128xbf16, #tpu.memory_space<vmem>>) attributes {dimension_semantics = [#tpu.dimension_semantics<parallel>, #tpu.dimension_semantics<parallel>], iteration_bounds = array<i64: 1, 1>, scalar_prefetch = 0 : i64, scratch_operands = 0 : i64, tpu.core_type = #tpu.core_type<tc>, window_params = [{transform_indices = @transform_0, window_bounds = array<i64: 512, 4>}, {transform_indices = @transform_1, window_bounds = array<i64: 4, 128>}, {transform_indices = @transform_2, window_bounds = array<i64: 1, 128>}, {transform_indices = @transform_3, window_bounds = array<i64: 512, 128>}]} {
    %c0 = arith.constant 0 : index
    %c0_0 = arith.constant 0 : index
    %0 = vector.load %arg2[%c0, %c0_0] : memref<512x4xbf16, #tpu.memory_space<vmem>>, vector<512x4xbf16>
    %c0_1 = arith.constant 0 : index
    %c0_2 = arith.constant 0 : index
    %1 = vector.load %arg3[%c0_1, %c0_2] : memref<4x128xbf16, #tpu.memory_space<vmem>>, vector<4x128xbf16>
    %cst = arith.constant dense<0.000000e+00> : vector<512x128xf32>
    %2 = tpu.matmul %0, %1, %cst {dimension_numbers = #tpu.dot_dimension_numbers<[1], [0], [0], [1], [0, 0, 1, 1], [], []>} : vector<512x4xbf16>, vector<4x128xbf16>, vector<512x128xf32> -> vector<512x128xf32>
    %c0_3 = arith.constant 0 : index
    %c0_4 = arith.constant 0 : index
    %3 = vector.load %arg4[%c0_3, %c0_4] : memref<1x128xf32, #tpu.memory_space<vmem>>, vector<1x128xf32>
    %4 = vector.broadcast %3 : vector<1x128xf32> to vector<512x128xf32>
    %5 = arith.addf %2, %4 : vector<512x128xf32>
    %6 = arith.truncf %5 : vector<512x128xf32> to vector<512x128xbf16>
    %c0_5 = arith.constant 0 : index
    %c0_6 = arith.constant 0 : index
    %7 = vector.load %arg5[%c0_5, %c0_6] : memref<512x128xbf16, #tpu.memory_space<vmem>>, vector<512x128xbf16>
    tpu.vector_store %arg5[%c0_5, %c0_6], %6 {strides = array<i32>} : memref<512x128xbf16, #tpu.memory_space<vmem>>, vector<512x128xbf16>,
    return
  }
  func.func @transform_0(%arg0: i32, %arg1: i32) -> (i32, i32) {
    %c0_i32 = arith.constant 0 : i32
    %c0_i32_0 = arith.constant 0 : i32
    return %arg0, %c0_i32 : i32, i32
  }
  func.func @transform_1(%arg0: i32, %arg1: i32) -> (i32, i32) {
    %c0_i32 = arith.constant 0 : i32
    %c0_i32_0 = arith.constant 0 : i32
    return %c0_i32, %arg1 : i32, i32
  }
  func.func @transform_2(%arg0: i32, %arg1: i32) -> (i32, i32) {
    %c0_i32 = arith.constant 0 : i32
    %c0_i32_0 = arith.constant 0 : i32
    return %c0_i32, %arg1 : i32, i32
  }
  func.func @transform_3(%arg0: i32, %arg1: i32) -> (i32, i32) {
    %c0_i32 = arith.constant 0 : i32
    return %arg0, %arg1 : i32, i32
  }
}

module attributes {stable_mosaic.version = 11 : i64} {
  func.func @_conv3x3_kernel(%arg0: i32, %arg1: i32, %arg2: i32, %arg3: memref<1x1x18x18x128xbf16, #tpu.memory_space<vmem>>, %arg4: memref<3x384x128xbf16, #tpu.memory_space<vmem>>, %arg5: memref<1x1x16x16x128xbf16, #tpu.memory_space<vmem>>, %arg6: memref<1x1x2x128xf32, #tpu.memory_space<vmem>>) attributes {dimension_semantics = [#tpu.dimension_semantics<parallel>, #tpu.dimension_semantics<parallel>, #tpu.dimension_semantics<parallel>], iteration_bounds = array<i64: 1, 2, 1>, scalar_prefetch = 0 : i64, scratch_operands = 0 : i64, tpu.core_type = #tpu.core_type<tc>, window_params = [{transform_indices = @transform_0, window_bounds = array<i64: 1, 1, 18, 18, 128>}, {transform_indices = @transform_1, window_bounds = array<i64: 3, 384, 128>}, {transform_indices = @transform_2, window_bounds = array<i64: 1, 1, 16, 16, 128>}, {transform_indices = @transform_3, window_bounds = array<i64: 1, 1, 2, 128>}]} {
    %c0 = arith.constant 0 : index
    %c0_0 = arith.constant 0 : index
    %c0_1 = arith.constant 0 : index
    %c0_2 = arith.constant 0 : index
    %c0_3 = arith.constant 0 : index
    %0 = vector.load %arg3[%c0, %c0_0, %c0_1, %c0_2, %c0_3] : memref<1x1x18x18x128xbf16, #tpu.memory_space<vmem>>, vector<1x1x18x18x128xbf16>
    %1 = vector.shape_cast %0 : vector<1x1x18x18x128xbf16> to vector<18x18x128xbf16>
    %2 = vector.extract_strided_slice %1 {offsets = [0, 0, 0], sizes = [18, 16, 128], strides = [1, 1, 1]} : vector<18x18x128xbf16> to vector<18x16x128xbf16>
    %3 = vector.extract_strided_slice %1 {offsets = [0, 1, 0], sizes = [18, 16, 128], strides = [1, 1, 1]} : vector<18x18x128xbf16> to vector<18x16x128xbf16>
    %4 = vector.extract_strided_slice %1 {offsets = [0, 2, 0], sizes = [18, 16, 128], strides = [1, 1, 1]} : vector<18x18x128xbf16> to vector<18x16x128xbf16>
    %5 = tpu.concatenate %2, %3, %4 in 2 : vector<18x16x128xbf16>, vector<18x16x128xbf16>, vector<18x16x128xbf16> -> vector<18x16x384xbf16>
    %cst = arith.constant 0.000000e+00 : f32
    %6 = vector.broadcast %cst : f32 to vector<256x128xf32>
    %7 = vector.extract_strided_slice %5 {offsets = [0, 0, 0], sizes = [16, 16, 384], strides = [1, 1, 1]} : vector<18x16x384xbf16> to vector<16x16x384xbf16>
    %8 = vector.shape_cast %7 : vector<16x16x384xbf16> to vector<256x384xbf16>
    %c0_4 = arith.constant 0 : index
    %c0_5 = arith.constant 0 : index
    %c0_6 = arith.constant 0 : index
    %9 = vector.load %arg4[%c0_4, %c0_5, %c0_6] : memref<3x384x128xbf16, #tpu.memory_space<vmem>>, vector<1x384x128xbf16>
    %10 = vector.shape_cast %9 : vector<1x384x128xbf16> to vector<384x128xbf16>
    %cst_7 = arith.constant dense<0.000000e+00> : vector<256x128xf32>
    %11 = tpu.matmul %8, %10, %cst_7 {dimension_numbers = #tpu.dot_dimension_numbers<[1], [0], [0], [1], [0, 0, 1, 1], [], []>} : vector<256x384xbf16>, vector<384x128xbf16>, vector<256x128xf32> -> vector<256x128xf32>
    %12 = arith.addf %6, %11 : vector<256x128xf32>
    %13 = vector.extract_strided_slice %5 {offsets = [1, 0, 0], sizes = [16, 16, 384], strides = [1, 1, 1]} : vector<18x16x384xbf16> to vector<16x16x384xbf16>
    %14 = vector.shape_cast %13 : vector<16x16x384xbf16> to vector<256x384xbf16>
    %c1 = arith.constant 1 : index
    %c0_8 = arith.constant 0 : index
    %c0_9 = arith.constant 0 : index
    %15 = vector.load %arg4[%c1, %c0_8, %c0_9] : memref<3x384x128xbf16, #tpu.memory_space<vmem>>, vector<1x384x128xbf16>
    %16 = vector.shape_cast %15 : vector<1x384x128xbf16> to vector<384x128xbf16>
    %cst_10 = arith.constant dense<0.000000e+00> : vector<256x128xf32>
    %17 = tpu.matmul %14, %16, %cst_10 {dimension_numbers = #tpu.dot_dimension_numbers<[1], [0], [0], [1], [0, 0, 1, 1], [], []>} : vector<256x384xbf16>, vector<384x128xbf16>, vector<256x128xf32> -> vector<256x128xf32>
    %18 = arith.addf %12, %17 : vector<256x128xf32>
    %19 = vector.extract_strided_slice %5 {offsets = [2, 0, 0], sizes = [16, 16, 384], strides = [1, 1, 1]} : vector<18x16x384xbf16> to vector<16x16x384xbf16>
    %20 = vector.shape_cast %19 : vector<16x16x384xbf16> to vector<256x384xbf16>
    %c2 = arith.constant 2 : index
    %c0_11 = arith.constant 0 : index
    %c0_12 = arith.constant 0 : index
    %21 = vector.load %arg4[%c2, %c0_11, %c0_12] : memref<3x384x128xbf16, #tpu.memory_space<vmem>>, vector<1x384x128xbf16>
    %22 = vector.shape_cast %21 : vector<1x384x128xbf16> to vector<384x128xbf16>
    %cst_13 = arith.constant dense<0.000000e+00> : vector<256x128xf32>
    %23 = tpu.matmul %20, %22, %cst_13 {dimension_numbers = #tpu.dot_dimension_numbers<[1], [0], [0], [1], [0, 0, 1, 1], [], []>} : vector<256x384xbf16>, vector<384x128xbf16>, vector<256x128xf32> -> vector<256x128xf32>
    %24 = arith.addf %18, %23 : vector<256x128xf32>
    %25 = vector.shape_cast %24 : vector<256x128xf32> to vector<16x16x128xf32>
    %26 = arith.truncf %25 : vector<16x16x128xf32> to vector<16x16x128xbf16>
    %c0_14 = arith.constant 0 : index
    %c0_15 = arith.constant 0 : index
    %c0_16 = arith.constant 0 : index
    %c0_17 = arith.constant 0 : index
    %c0_18 = arith.constant 0 : index
    %27 = vector.load %arg5[%c0_14, %c0_15, %c0_16, %c0_17, %c0_18] : memref<1x1x16x16x128xbf16, #tpu.memory_space<vmem>>, vector<1x1x16x16x128xbf16>
    %28 = vector.shape_cast %27 : vector<1x1x16x16x128xbf16> to vector<16x16x128xbf16>
    %29 = vector.shape_cast %26 : vector<16x16x128xbf16> to vector<1x1x16x16x128xbf16>
    tpu.vector_store %arg5[%c0_14, %c0_15, %c0_16, %c0_17, %c0_18], %29 {strides = array<i32>} : memref<1x1x16x16x128xbf16, #tpu.memory_space<vmem>>, vector<1x1x16x16x128xbf16>,
    %cst_19 = arith.constant dense<0.000000e+00> : vector<128xf32>
    %30 = vector.multi_reduction <add>, %24, %cst_19 [0] : vector<256x128xf32> to vector<128xf32>
    %31 = vector.shape_cast %30 : vector<128xf32> to vector<1x128xf32>
    %32 = arith.mulf %24, %24 : vector<256x128xf32>
    %cst_20 = arith.constant dense<0.000000e+00> : vector<128xf32>
    %33 = vector.multi_reduction <add>, %32, %cst_20 [0] : vector<256x128xf32> to vector<128xf32>
    %34 = vector.shape_cast %33 : vector<128xf32> to vector<1x128xf32>
    %35 = tpu.concatenate %31, %34 in 0 : vector<1x128xf32>, vector<1x128xf32> -> vector<2x128xf32>
    %c0_21 = arith.constant 0 : index
    %c0_22 = arith.constant 0 : index
    %c0_23 = arith.constant 0 : index
    %c0_24 = arith.constant 0 : index
    %36 = vector.load %arg6[%c0_21, %c0_22, %c0_23, %c0_24] : memref<1x1x2x128xf32, #tpu.memory_space<vmem>>, vector<1x1x2x128xf32>
    %37 = vector.shape_cast %36 : vector<1x1x2x128xf32> to vector<2x128xf32>
    %38 = vector.shape_cast %35 : vector<2x128xf32> to vector<1x1x2x128xf32>
    tpu.vector_store %arg6[%c0_21, %c0_22, %c0_23, %c0_24], %38 {strides = array<i32>} : memref<1x1x2x128xf32, #tpu.memory_space<vmem>>, vector<1x1x2x128xf32>,
    return
  }
  func.func @transform_0(%arg0: i32, %arg1: i32, %arg2: i32) -> (i32, i32, i32, i32, i32) {
    %c0_i32 = arith.constant 0 : i32
    %c0_i32_0 = arith.constant 0 : i32
    %c0_i32_1 = arith.constant 0 : i32
    %c0_i32_2 = arith.constant 0 : i32
    return %arg1, %arg2, %c0_i32, %c0_i32_0, %c0_i32_1 : i32, i32, i32, i32, i32
  }
  func.func @transform_1(%arg0: i32, %arg1: i32, %arg2: i32) -> (i32, i32, i32) {
    %c0_i32 = arith.constant 0 : i32
    %c0_i32_0 = arith.constant 0 : i32
    %c0_i32_1 = arith.constant 0 : i32
    return %c0_i32, %c0_i32_0, %arg0 : i32, i32, i32
  }
  func.func @transform_2(%arg0: i32, %arg1: i32, %arg2: i32) -> (i32, i32, i32, i32, i32) {
    %c0_i32 = arith.constant 0 : i32
    %c0_i32_0 = arith.constant 0 : i32
    %c0_i32_1 = arith.constant 0 : i32
    return %arg1, %arg2, %c0_i32, %c0_i32_0, %arg0 : i32, i32, i32, i32, i32
  }
  func.func @transform_3(%arg0: i32, %arg1: i32, %arg2: i32) -> (i32, i32, i32, i32) {
    %c0_i32 = arith.constant 0 : i32
    %c0_i32_0 = arith.constant 0 : i32
    return %arg1, %arg2, %c0_i32, %arg0 : i32, i32, i32, i32
  }
}

module attributes {stable_mosaic.version = 11 : i64} {
  func.func @_bn_relu_add_kernel(%arg0: i32, %arg1: memref<512x128xbf16, #tpu.memory_space<vmem>>, %arg2: memref<1x128xf32, #tpu.memory_space<vmem>>, %arg3: memref<1x128xf32, #tpu.memory_space<vmem>>, %arg4: memref<512x128xbf16, #tpu.memory_space<vmem>>, %arg5: memref<512x128xbf16, #tpu.memory_space<vmem>>) attributes {dimension_semantics = [#tpu.dimension_semantics<parallel>], iteration_bounds = array<i64: 1>, scalar_prefetch = 0 : i64, scratch_operands = 0 : i64, tpu.core_type = #tpu.core_type<tc>, window_params = [{transform_indices = @transform_0, window_bounds = array<i64: 512, 128>}, {pipeline_mode = #tpu.pipeline_mode<synchronous>, transform_indices = @transform_1, window_bounds = array<i64: 1, 128>}, {pipeline_mode = #tpu.pipeline_mode<synchronous>, transform_indices = @transform_2, window_bounds = array<i64: 1, 128>}, {transform_indices = @transform_3, window_bounds = array<i64: 512, 128>}, {transform_indices = @transform_4, window_bounds = array<i64: 512, 128>}]} {
    %c0 = arith.constant 0 : index
    %c0_0 = arith.constant 0 : index
    %0 = vector.load %arg1[%c0, %c0_0] : memref<512x128xbf16, #tpu.memory_space<vmem>>, vector<512x128xbf16>
    %1 = arith.extf %0 : vector<512x128xbf16> to vector<512x128xf32>
    %c0_1 = arith.constant 0 : index
    %c0_2 = arith.constant 0 : index
    %2 = vector.load %arg2[%c0_1, %c0_2] : memref<1x128xf32, #tpu.memory_space<vmem>>, vector<1x128xf32>
    %3 = vector.broadcast %2 : vector<1x128xf32> to vector<512x128xf32>
    %4 = arith.mulf %1, %3 : vector<512x128xf32>
    %c0_3 = arith.constant 0 : index
    %c0_4 = arith.constant 0 : index
    %5 = vector.load %arg3[%c0_3, %c0_4] : memref<1x128xf32, #tpu.memory_space<vmem>>, vector<1x128xf32>
    %6 = vector.broadcast %5 : vector<1x128xf32> to vector<512x128xf32>
    %7 = arith.addf %4, %6 : vector<512x128xf32>
    %cst = arith.constant 0.000000e+00 : f32
    %8 = vector.broadcast %cst : f32 to vector<512x128xf32>
    %9 = arith.maximumf %7, %8 : vector<512x128xf32>
    %c0_5 = arith.constant 0 : index
    %c0_6 = arith.constant 0 : index
    %10 = vector.load %arg4[%c0_5, %c0_6] : memref<512x128xbf16, #tpu.memory_space<vmem>>, vector<512x128xbf16>
    %11 = arith.extf %10 : vector<512x128xbf16> to vector<512x128xf32>
    %12 = arith.addf %9, %11 : vector<512x128xf32>
    %13 = arith.truncf %12 : vector<512x128xf32> to vector<512x128xbf16>
    %c0_7 = arith.constant 0 : index
    %c0_8 = arith.constant 0 : index
    %14 = vector.load %arg5[%c0_7, %c0_8] : memref<512x128xbf16, #tpu.memory_space<vmem>>, vector<512x128xbf16>
    tpu.vector_store %arg5[%c0_7, %c0_8], %13 {strides = array<i32>} : memref<512x128xbf16, #tpu.memory_space<vmem>>, vector<512x128xbf16>,
    return
  }
  func.func @transform_0(%arg0: i32) -> (i32, i32) {
    %c0_i32 = arith.constant 0 : i32
    %c0_i32_0 = arith.constant 0 : i32
    return %arg0, %c0_i32 : i32, i32
  }
  func.func @transform_1(%arg0: i32) -> (i32, i32) {
    %c0_i32 = arith.constant 0 : i32
    %c0_i32_0 = arith.constant 0 : i32
    %c0_i32_1 = arith.constant 0 : i32
    return %c0_i32, %c0_i32_0 : i32, i32
  }
  func.func @transform_2(%arg0: i32) -> (i32, i32) {
    %c0_i32 = arith.constant 0 : i32
    %c0_i32_0 = arith.constant 0 : i32
    %c0_i32_1 = arith.constant 0 : i32
    return %c0_i32, %c0_i32_0 : i32, i32
  }
  func.func @transform_3(%arg0: i32) -> (i32, i32) {
    %c0_i32 = arith.constant 0 : i32
    %c0_i32_0 = arith.constant 0 : i32
    return %arg0, %c0_i32 : i32, i32
  }
  func.func @transform_4(%arg0: i32) -> (i32, i32) {
    %c0_i32 = arith.constant 0 : i32
    %c0_i32_0 = arith.constant 0 : i32
    return %arg0, %c0_i32 : i32, i32
  }
}

module attributes {stable_mosaic.version = 11 : i64} {
  func.func @_bn_relu_kernel(%arg0: i32, %arg1: memref<512x128xbf16, #tpu.memory_space<vmem>>, %arg2: memref<1x128xf32, #tpu.memory_space<vmem>>, %arg3: memref<1x128xf32, #tpu.memory_space<vmem>>, %arg4: memref<512x128xbf16, #tpu.memory_space<vmem>>) attributes {dimension_semantics = [#tpu.dimension_semantics<parallel>], iteration_bounds = array<i64: 1>, scalar_prefetch = 0 : i64, scratch_operands = 0 : i64, tpu.core_type = #tpu.core_type<tc>, window_params = [{transform_indices = @transform_0, window_bounds = array<i64: 512, 128>}, {pipeline_mode = #tpu.pipeline_mode<synchronous>, transform_indices = @transform_1, window_bounds = array<i64: 1, 128>}, {pipeline_mode = #tpu.pipeline_mode<synchronous>, transform_indices = @transform_2, window_bounds = array<i64: 1, 128>}, {transform_indices = @transform_3, window_bounds = array<i64: 512, 128>}]} {
    %c0 = arith.constant 0 : index
    %c0_0 = arith.constant 0 : index
    %0 = vector.load %arg1[%c0, %c0_0] : memref<512x128xbf16, #tpu.memory_space<vmem>>, vector<512x128xbf16>
    %1 = arith.extf %0 : vector<512x128xbf16> to vector<512x128xf32>
    %c0_1 = arith.constant 0 : index
    %c0_2 = arith.constant 0 : index
    %2 = vector.load %arg2[%c0_1, %c0_2] : memref<1x128xf32, #tpu.memory_space<vmem>>, vector<1x128xf32>
    %3 = vector.broadcast %2 : vector<1x128xf32> to vector<512x128xf32>
    %4 = arith.mulf %1, %3 : vector<512x128xf32>
    %c0_3 = arith.constant 0 : index
    %c0_4 = arith.constant 0 : index
    %5 = vector.load %arg3[%c0_3, %c0_4] : memref<1x128xf32, #tpu.memory_space<vmem>>, vector<1x128xf32>
    %6 = vector.broadcast %5 : vector<1x128xf32> to vector<512x128xf32>
    %7 = arith.addf %4, %6 : vector<512x128xf32>
    %cst = arith.constant 0.000000e+00 : f32
    %8 = vector.broadcast %cst : f32 to vector<512x128xf32>
    %9 = arith.maximumf %7, %8 : vector<512x128xf32>
    %10 = arith.truncf %9 : vector<512x128xf32> to vector<512x128xbf16>
    %c0_5 = arith.constant 0 : index
    %c0_6 = arith.constant 0 : index
    %11 = vector.load %arg4[%c0_5, %c0_6] : memref<512x128xbf16, #tpu.memory_space<vmem>>, vector<512x128xbf16>
    tpu.vector_store %arg4[%c0_5, %c0_6], %10 {strides = array<i32>} : memref<512x128xbf16, #tpu.memory_space<vmem>>, vector<512x128xbf16>,
    return
  }
  func.func @transform_0(%arg0: i32) -> (i32, i32) {
    %c0_i32 = arith.constant 0 : i32
    %c0_i32_0 = arith.constant 0 : i32
    return %arg0, %c0_i32 : i32, i32
  }
  func.func @transform_1(%arg0: i32) -> (i32, i32) {
    %c0_i32 = arith.constant 0 : i32
    %c0_i32_0 = arith.constant 0 : i32
    %c0_i32_1 = arith.constant 0 : i32
    return %c0_i32, %c0_i32_0 : i32, i32
  }
  func.func @transform_2(%arg0: i32) -> (i32, i32) {
    %c0_i32 = arith.constant 0 : i32
    %c0_i32_0 = arith.constant 0 : i32
    %c0_i32_1 = arith.constant 0 : i32
    return %c0_i32, %c0_i32_0 : i32, i32
  }
  func.func @transform_3(%arg0: i32) -> (i32, i32) {
    %c0_i32 = arith.constant 0 : i32
    %c0_i32_0 = arith.constant 0 : i32
    return %arg0, %c0_i32 : i32, i32
  }
}

</mosaic_0001>

<llo_original>
// kernel: rrcnn_forward.13
$region0: #{rrcnn_forward.13}
  #allocation0 [shape = 'u32[]', space=smem, size = 0x4, offset = 0x4, fixed_abs, tag = 'smem constant byte address 0x4 - core index']
  #allocation1 [shape = 'u32[72,128]{1,0:T(1,128)}', space=vmem, size = 0x9000, scoped, tag = 'internal scratch']
  %s0 = inlined_call_operand.vmem [shape: bf16[512,4], index: 0, kind: input, shape index: {}]
  %s1 = inlined_call_operand.hbm [shape: bf16[4,128], index: 1, kind: input, shape index: {}]
  %s2 = inlined_call_operand.hbm [shape: f32[1,128], index: 2, kind: input, shape index: {}]
  %s3 = inlined_call_operand.vmem [shape: bf16[512,128], index: 3, kind: output, shape index: {}]
  %s4 = sld [smem:[#allocation0]]
  $region30: #{rrcnn_forward.13} parent=0
    _
  %s6 = ssub.s32 1, %s4
  %s7 = scalar_select 0, %s6, %s4
  $region1: #{rrcnn_forward.13} parent=0
    #allocation2 [shape = 'u8[1024]{0}', space=vmem, size = 0x400, scoped, tag = 'input window, operand 1, single buffered']
    #allocation3 [shape = 's32[1]{0}', space=sflag, size = 0x4, scoped, tag = 'scoped memory for rrcnn_forward.13']
    #allocation4 [shape = 'u8[512]{0}', space=vmem, size = 0x400, scoped, tag = 'input window, operand 2, single buffered']
    #allocation5 [shape = 's32[1]{0}', space=sflag, size = 0x4, scoped, tag = 'scoped memory for rrcnn_forward.13']
    %8 = vsyncpa [#allocation3], 0
    %9 = vsyncpa [#allocation5], 0
    // Predicated region
    $region2: #{rrcnn_forward.13} parent=1 // pred_check
      _
    $region3: #{rrcnn_forward.13} parent=1 // pred_check_branch
      %11 = sbr.rel (0) target = $region5
    $region4: #{rrcnn_forward.13} parent=1 // pred_region
      _
    $region5: #{rrcnn_forward.13} parent=1 // pred_fallthru
      _
    // Predicated region
    $region6: #{rrcnn_forward.13} parent=1 // pred_check
      _
    $region7: #{rrcnn_forward.13} parent=1 // pred_check_branch
      %13 = sbr.rel (0) target = $region9
    $region8: #{rrcnn_forward.13} parent=1 // pred_region
      %15 = vsyncadd [#allocation3], 0
      %s17 = sshll.u32 %s1, 4
      %s18 = int_to_ptr.hbm [resolvable:$true] %s17
      %s19 = sshll.u32 [#allocation2], 4
      %s20 = int_to_ptr.vmem [resolvable:$true] %s19
      %22 = dma.hbm_to_vmem [thread:$0]  %s18, 32, %s20, [#allocation3]
    $region9: #{rrcnn_forward.13} parent=1 // pred_fallthru
      _
    // Predicated region
    $region10: #{rrcnn_forward.13} parent=1 // pred_check
      _
    $region11: #{rrcnn_forward.13} parent=1 // pred_check_branch
      %24 = sbr.rel (0) target = $region13
    $region12: #{rrcnn_forward.13} parent=1 // pred_region
      %26 = vsyncadd [#allocation5], 0
      %s28 = sshll.u32 %s2, 4
      %s29 = int_to_ptr.hbm [resolvable:$true] %s28
      %s30 = sshll.u32 [#allocation4], 4
      %s31 = int_to_ptr.vmem [resolvable:$true] %s30
      %33 = dma.hbm_to_vmem [thread:$0]  %s29, 16, %s31, [#allocation5]
    $region13: #{rrcnn_forward.13} parent=1 // pred_fallthru
      _
    // Predicated region
    $region14: #{rrcnn_forward.13} parent=1 // pred_check
      _
    $region15: #{rrcnn_forward.13} parent=1 // pred_check_branch
      %35 = sbr.rel (0) target = $region17
    $region16: #{rrcnn_forward.13} parent=1 // pred_region
      %37 = dma.done [#allocation3], 32
    $region17: #{rrcnn_forward.13} parent=1 // pred_fallthru
      _
    // Predicated region
    $region18: #{rrcnn_forward.13} parent=1 // pred_check
      _
    $region19: #{rrcnn_forward.13} parent=1 // pred_check_branch
      %39 = sbr.rel (0) target = $region21
    $region20: #{rrcnn_forward.13} parent=1 // pred_region
      %41 = dma.done [#allocation5], 16
    $region21: #{rrcnn_forward.13} parent=1 // pred_fallthru
      _
    %v43 = vld [vmem:[%s0] sm:$0xf]
    %v44 = vld [vmem:[%s0 + $0x4] sm:$0xf]
    %v45 = vld [vmem:[%s0 + $0x8] sm:$0xf]
    %v46 = vld [vmem:[%s0 + $0xc] sm:$0xf]
    %v47 = vld [vmem:[%s0 + $0x10] sm:$0xf]
    %v48 = vld [vmem:[%s0 + $0x14] sm:$0xf]
    %v49 = vld [vmem:[%s0 + $0x18] sm:$0xf]
    %v50 = vld [vmem:[%s0 + $0x1c] sm:$0xf]
    %v51 = vld [vmem:[%s0 + $0x20] sm:$0xf]
    %v52 = vld [vmem:[%s0 + $0x24] sm:$0xf]
    %v53 = vld [vmem:[%s0 + $0x28] sm:$0xf]
    %v54 = vld [vmem:[%s0 + $0x2c] sm:$0xf]
    %v55 = vld [vmem:[%s0 + $0x30] sm:$0xf]
    %v56 = vld [vmem:[%s0 + $0x34] sm:$0xf]
    %v57 = vld [vmem:[%s0 + $0x38] sm:$0xf]
    %v58 = vld [vmem:[%s0 + $0x3c] sm:$0xf]
    %v59 = vld [vmem:[%s0 + $0x40] sm:$0xf]
    %v60 = vld [vmem:[%s0 + $0x44] sm:$0xf]
    %v61 = vld [vmem:[%s0 + $0x48] sm:$0xf]
    %v62 = vld [vmem:[%s0 + $0x4c] sm:$0xf]
    %v63 = vld [vmem:[%s0 + $0x50] sm:$0xf]
    %v64 = vld [vmem:[%s0 + $0x54] sm:$0xf]
    %v65 = vld [vmem:[%s0 + $0x58] sm:$0xf]
    %v66 = vld [vmem:[%s0 + $0x5c] sm:$0xf]
    %v67 = vld [vmem:[%s0 + $0x60] sm:$0xf]
    %v68 = vld [vmem:[%s0 + $0x64] sm:$0xf]
    %v69 = vld [vmem:[%s0 + $0x68] sm:$0xf]
    %v70 = vld [vmem:[%s0 + $0x6c] sm:$0xf]
    %v71 = vld [vmem:[%s0 + $0x70] sm:$0xf]
    %v72 = vld [vmem:[%s0 + $0x74] sm:$0xf]
    %v73 = vld [vmem:[%s0 + $0x78] sm:$0xf]
    %v74 = vld [vmem:[%s0 + $0x7c] sm:$0xf]
    %v75 = vld [vmem:[%s0 + $0x80] sm:$0xf]
    %v76 = vld [vmem:[%s0 + $0x84] sm:$0xf]
    %v77 = vld [vmem:[%s0 + $0x88] sm:$0xf]
    %v78 = vld [vmem:[%s0 + $0x8c] sm:$0xf]
    %v79 = vld [vmem:[%s0 + $0x90] sm:$0xf]
    %v80 = vld [vmem:[%s0 + $0x94] sm:$0xf]
    %v81 = vld [vmem:[%s0 + $0x98] sm:$0xf]
    %v82 = vld [vmem:[%s0 + $0x9c] sm:$0xf]
    %v83 = vld [vmem:[%s0 + $0xa0] sm:$0xf]
    %v84 = vld [vmem:[%s0 + $0xa4] sm:$0xf]
    %v85 = vld [vmem:[%s0 + $0xa8] sm:$0xf]
    %v86 = vld [vmem:[%s0 + $0xac] sm:$0xf]
    %v87 = vld [vmem:[%s0 + $0xb0] sm:$0xf]
    %v88 = vld [vmem:[%s0 + $0xb4] sm:$0xf]
    %v89 = vld [vmem:[%s0 + $0xb8] sm:$0xf]
    %v90 = vld [vmem:[%s0 + $0xbc] sm:$0xf]
    %v91 = vld [vmem:[%s0 + $0xc0] sm:$0xf]
    %v92 = vld [vmem:[%s0 + $0xc4] sm:$0xf]
    %v93 = vld [vmem:[%s0 + $0xc8] sm:$0xf]
    %v94 = vld [vmem:[%s0 + $0xcc] sm:$0xf]
    %v95 = vld [vmem:[%s0 + $0xd0] sm:$0xf]
    %v96 = vld [vmem:[%s0 + $0xd4] sm:$0xf]
    %v97 = vld [vmem:[%s0 + $0xd8] sm:$0xf]
    %v98 = vld [vmem:[%s0 + $0xdc] sm:$0xf]
    %v99 = vld [vmem:[%s0 + $0xe0] sm:$0xf]
    %v100 = vld [vmem:[%s0 + $0xe4] sm:$0xf]
    %v101 = vld [vmem:[%s0 + $0xe8] sm:$0xf]
    %v102 = vld [vmem:[%s0 + $0xec] sm:$0xf]
    %v103 = vld [vmem:[%s0 + $0xf0] sm:$0xf]
    %v104 = vld [vmem:[%s0 + $0xf4] sm:$0xf]
    %v105 = vld [vmem:[%s0 + $0xf8] sm:$0xf]
    %v106 = vld [vmem:[%s0 + $0xfc] sm:$0xf]
    %v107 = vld [vmem:[#allocation2] sm:$0x3]
    %v108 = vld [vmem:[#allocation4] sm:$0x1]
    %v110 = vperm.slane %v108, 0
    %v176 = vunpack.c.l.b16 %v43
    %v177 = vunpack.c.l.b16 %v44
    %v178 = vunpack.c.l.b16 %v45
    %v179 = vunpack.c.l.b16 %v46
    %v180 = vunpack.c.l.b16 %v47
    %v181 = vunpack.c.l.b16 %v48
    %v182 = vunpack.c.l.b16 %v49
    %v183 = vunpack.c.l.b16 %v50
    %v184 = vunpack.c.l.b16 %v51
    %v185 = vunpack.c.l.b16 %v52
    %v186 = vunpack.c.l.b16 %v53
    %v187 = vunpack.c.l.b16 %v54
    %v188 = vunpack.c.l.b16 %v55
    %v189 = vunpack.c.l.b16 %v56
    %v190 = vunpack.c.l.b16 %v57
    %v191 = vunpack.c.l.b16 %v58
    %v192 = vunpack.c.l.b16 %v59
    %v193 = vunpack.c.l.b16 %v60
    %v194 = vunpack.c.l.b16 %v61
    %v195 = vunpack.c.l.b16 %v62
    %v196 = vunpack.c.l.b16 %v63
    %v197 = vunpack.c.l.b16 %v64
    %v198 = vunpack.c.l.b16 %v65
    %v199 = vunpack.c.l.b16 %v66
    %v200 = vunpack.c.l.b16 %v67
    %v201 = vunpack.c.l.b16 %v68
    %v202 = vunpack.c.l.b16 %v69
    %v203 = vunpack.c.l.b16 %v70
    %v204 = vunpack.c.l.b16 %v71
    %v205 = vunpack.c.l.b16 %v72
    %v206 = vunpack.c.l.b16 %v73
    %v207 = vunpack.c.l.b16 %v74
    %v208 = vunpack.c.l.b16 %v75
    %v209 = vunpack.c.l.b16 %v76
    %v210 = vunpack.c.l.b16 %v77
    %v211 = vunpack.c.l.b16 %v78
    %v212 = vunpack.c.l.b16 %v79
    %v213 = vunpack.c.l.b16 %v80
    %v214 = vunpack.c.l.b16 %v81
    %v215 = vunpack.c.l.b16 %v82
    %v216 = vunpack.c.l.b16 %v83
    %v217 = vunpack.c.l.b16 %v84
    %v218 = vunpack.c.l.b16 %v85
    %v219 = vunpack.c.l.b16 %v86
    %v220 = vunpack.c.l.b16 %v87
    %v221 = vunpack.c.l.b16 %v88
    %v222 = vunpack.c.l.b16 %v89
    %v223 = vunpack.c.l.b16 %v90
    %v224 = vunpack.c.l.b16 %v91
    %v225 = vunpack.c.l.b16 %v92
    %v226 = vunpack.c.l.b16 %v93
    %v227 = vunpack.c.l.b16 %v94
    %v228 = vunpack.c.l.b16 %v95
    %v229 = vunpack.c.l.b16 %v96
    %v230 = vunpack.c.l.b16 %v97
    %v231 = vunpack.c.l.b16 %v98
    %v232 = vunpack.c.l.b16 %v99
    %v233 = vunpack.c.l.b16 %v100
    %v234 = vunpack.c.l.b16 %v101
    %v235 = vunpack.c.l.b16 %v102
    %v236 = vunpack.c.l.b16 %v103
    %v237 = vunpack.c.l.b16 %v104
    %v238 = vunpack.c.l.b16 %v105
    %v239 = vunpack.c.l.b16 %v106
    %v240 = vpack.c.b16 %v177, %v176
    %v241 = vpack.c.b16 %v179, %v178
    %v242 = vpack.c.b16 %v181, %v180
    %v243 = vpack.c.b16 %v183, %v182
    %v244 = vpack.c.b16 %v185, %v184
    %v245 = vpack.c.b16 %v187, %v186
    %v246 = vpack.c.b16 %v189, %v188
    %v247 = vpack.c.b16 %v191, %v190
    %v248 = vpack.c.b16 %v193, %v192
    %v249 = vpack.c.b16 %v195, %v194
    %v250 = vpack.c.b16 %v197, %v196
    %v251 = vpack.c.b16 %v199, %v198
    %v252 = vpack.c.b16 %v201, %v200
    %v253 = vpack.c.b16 %v203, %v202
    %v254 = vpack.c.b16 %v205, %v204
    %v255 = vpack.c.b16 %v207, %v206
    %v256 = vpack.c.b16 %v209, %v208
    %v257 = vpack.c.b16 %v211, %v210
    %v258 = vpack.c.b16 %v213, %v212
    %v259 = vpack.c.b16 %v215, %v214
    %v260 = vpack.c.b16 %v217, %v216
    %v261 = vpack.c.b16 %v219, %v218
    %v262 = vpack.c.b16 %v221, %v220
    %v263 = vpack.c.b16 %v223, %v222
    %v264 = vpack.c.b16 %v225, %v224
    %v265 = vpack.c.b16 %v227, %v226
    %v266 = vpack.c.b16 %v229, %v228
    %v267 = vpack.c.b16 %v231, %v230
    %v268 = vpack.c.b16 %v233, %v232
    %v269 = vpack.c.b16 %v235, %v234
    %v270 = vpack.c.b16 %v237, %v236
    %v271 = vpack.c.b16 %v239, %v238
    %vm272 = vcmask 31744
    %v274 = vsel %vm272, %v240, 0
    %v277 = vsel %vm272, %v241, 0
    %v280 = vsel %vm272, %v242, 0
    %v283 = vsel %vm272, %v243, 0
    %v286 = vsel %vm272, %v244, 0
    %v289 = vsel %vm272, %v245, 0
    %v292 = vsel %vm272, %v246, 0
    %v295 = vsel %vm272, %v247, 0
    %v298 = vsel %vm272, %v248, 0
    %v301 = vsel %vm272, %v249, 0
    %v304 = vsel %vm272, %v250, 0
    %v307 = vsel %vm272, %v251, 0
    %v310 = vsel %vm272, %v252, 0
    %v313 = vsel %vm272, %v253, 0
    %v316 = vsel %vm272, %v254, 0
    %v319 = vsel %vm272, %v255, 0
    %v322 = vsel %vm272, %v256, 0
    %v325 = vsel %vm272, %v257, 0
    %v328 = vsel %vm272, %v258, 0
    %v331 = vsel %vm272, %v259, 0
    %v334 = vsel %vm272, %v260, 0
    %v337 = vsel %vm272, %v261, 0
    %v340 = vsel %vm272, %v262, 0
    %v343 = vsel %vm272, %v263, 0
    %v346 = vsel %vm272, %v264, 0
    %v349 = vsel %vm272, %v265, 0
    %v352 = vsel %vm272, %v266, 0
    %v355 = vsel %vm272, %v267, 0
    %v358 = vsel %vm272, %v268, 0
    %v361 = vsel %vm272, %v269, 0
    %v364 = vsel %vm272, %v270, 0
    %v367 = vsel %vm272, %v271, 0
    %vm369 = vcmask 1041408
    %v371 = vsel %vm369, %v107, 0
    %373 = vmatpush.bf16.msra.mxu0 0
    %374 = vmatpush.bf16.msra.mxu0 0
    %375 = vmatpush.bf16.msra.mxu0 0
    %376 = vmatpush.bf16.msra.mxu0 0
    %377 = vmatpush.bf16.msra.mxu0 0
    %378 = vmatpush.bf16.msra.mxu0 0
    %379 = vmatpush.bf16.msra.mxu0 0
    %380 = vmatpush.bf16.msra.mxu0 %v371
    %381 = vmatmul.bf16.gmra.mxu0 %v274
    %v382 = vpop.f32.mrf.mxu0
    %v383 = vadd.f32 %v110, %v382
    %v384 = vpop.f32.mrf.mxu0
    %v385 = vadd.f32 %v110, %v384
    %386 = vmatmul.bf16.gmra.mxu0 %v277
    %v387 = vpop.f32.mrf.mxu0
    %v388 = vadd.f32 %v110, %v387
    %v389 = vpop.f32.mrf.mxu0
    %v390 = vadd.f32 %v110, %v389
    %391 = vmatmul.bf16.gmra.mxu0 %v280
    %v392 = vpop.f32.mrf.mxu0
    %v393 = vadd.f32 %v110, %v392
    %v394 = vpop.f32.mrf.mxu0
    %v395 = vadd.f32 %v110, %v394
    %396 = vmatmul.bf16.gmra.mxu0 %v283
    %v397 = vpop.f32.mrf.mxu0
    %v398 = vadd.f32 %v110, %v397
    %v399 = vpop.f32.mrf.mxu0
    %v400 = vadd.f32 %v110, %v399
    %401 = vmatmul.bf16.gmra.mxu0 %v286
    %v402 = vpop.f32.mrf.mxu0
    %v403 = vadd.f32 %v110, %v402
    %v404 = vpop.f32.mrf.mxu0
    %v405 = vadd.f32 %v110, %v404
    %406 = vmatmul.bf16.gmra.mxu0 %v289
    %v407 = vpop.f32.mrf.mxu0
    %v408 = vadd.f32 %v110, %v407
    %v409 = vpop.f32.mrf.mxu0
    %v410 = vadd.f32 %v110, %v409
    %411 = vmatmul.bf16.gmra.mxu0 %v292
    %v412 = vpop.f32.mrf.mxu0
    %v413 = vadd.f32 %v110, %v412
    %v414 = vpop.f32.mrf.mxu0
    %v415 = vadd.f32 %v110, %v414
    %416 = vmatmul.bf16.gmra.mxu0 %v295
    %v417 = vpop.f32.mrf.mxu0
    %v418 = vadd.f32 %v110, %v417
    %v419 = vpop.f32.mrf.mxu0
    %v420 = vadd.f32 %v110, %v419
    %421 = vmatmul.bf16.gmra.mxu0 %v298
    %v422 = vpop.f32.mrf.mxu0
    %v423 = vadd.f32 %v110, %v422
    %v424 = vpop.f32.mrf.mxu0
    %v425 = vadd.f32 %v110, %v424
    %426 = vmatmul.bf16.gmra.mxu0 %v301
    %v427 = vpop.f32.mrf.mxu0
    %v428 = vadd.f32 %v110, %v427
    %v429 = vpop.f32.mrf.mxu0
    %v430 = vadd.f32 %v110, %v429
    %431 = vmatmul.bf16.gmra.mxu0 %v304
    %v432 = vpop.f32.mrf.mxu0
    %v433 = vadd.f32 %v110, %v432
    %v434 = vpop.f32.mrf.mxu0
    %v435 = vadd.f32 %v110, %v434
    %436 = vmatmul.bf16.gmra.mxu0 %v307
    %v437 = vpop.f32.mrf.mxu0
    %v438 = vadd.f32 %v110, %v437
    %v439 = vpop.f32.mrf.mxu0
    %v440 = vadd.f32 %v110, %v439
    %441 = vmatmul.bf16.gmra.mxu0 %v310
    %v442 = vpop.f32.mrf.mxu0
    %v443 = vadd.f32 %v110, %v442
    %v444 = vpop.f32.mrf.mxu0
    %v445 = vadd.f32 %v110, %v444
    %446 = vmatmul.bf16.gmra.mxu0 %v313
    %v447 = vpop.f32.mrf.mxu0
    %v448 = vadd.f32 %v110, %v447
    %v449 = vpop.f32.mrf.mxu0
    %v450 = vadd.f32 %v110, %v449
    %451 = vmatmul.bf16.gmra.mxu0 %v316
    %v452 = vpop.f32.mrf.mxu0
    %v453 = vadd.f32 %v110, %v452
    %v454 = vpop.f32.mrf.mxu0
    %v455 = vadd.f32 %v110, %v454
    %456 = vmatmul.bf16.gmra.mxu0 %v319
    %v457 = vpop.f32.mrf.mxu0
    %v458 = vadd.f32 %v110, %v457
    %v459 = vpop.f32.mrf.mxu0
    %v460 = vadd.f32 %v110, %v459
    %461 = vmatmul.bf16.gmra.mxu0 %v322
    %v462 = vpop.f32.mrf.mxu0
    %v463 = vadd.f32 %v110, %v462
    %v464 = vpop.f32.mrf.mxu0
    %v465 = vadd.f32 %v110, %v464
    %466 = vmatmul.bf16.gmra.mxu0 %v325
    %v467 = vpop.f32.mrf.mxu0
    %v468 = vadd.f32 %v110, %v467
    %v469 = vpop.f32.mrf.mxu0
    %v470 = vadd.f32 %v110, %v469
    %471 = vmatmul.bf16.gmra.mxu0 %v328
    %v472 = vpop.f32.mrf.mxu0
    %v473 = vadd.f32 %v110, %v472
    %v474 = vpop.f32.mrf.mxu0
    %v475 = vadd.f32 %v110, %v474
    %476 = vmatmul.bf16.gmra.mxu0 %v331
    %v477 = vpop.f32.mrf.mxu0
    %v478 = vadd.f32 %v110, %v477
    %v479 = vpop.f32.mrf.mxu0
    %v480 = vadd.f32 %v110, %v479
    %481 = vmatmul.bf16.gmra.mxu0 %v334
    %v482 = vpop.f32.mrf.mxu0
    %v483 = vadd.f32 %v110, %v482
    %v484 = vpop.f32.mrf.mxu0
    %v485 = vadd.f32 %v110, %v484
    %486 = vmatmul.bf16.gmra.mxu0 %v337
    %v487 = vpop.f32.mrf.mxu0
    %v488 = vadd.f32 %v110, %v487
    %v489 = vpop.f32.mrf.mxu0
    %v490 = vadd.f32 %v110, %v489
    %491 = vmatmul.bf16.gmra.mxu0 %v340
    %v492 = vpop.f32.mrf.mxu0
    %v493 = vadd.f32 %v110, %v492
    %v494 = vpop.f32.mrf.mxu0
    %v495 = vadd.f32 %v110, %v494
    %496 = vmatmul.bf16.gmra.mxu0 %v343
    %v497 = vpop.f32.mrf.mxu0
    %v498 = vadd.f32 %v110, %v497
    %v499 = vpop.f32.mrf.mxu0
    %v500 = vadd.f32 %v110, %v499
    %501 = vmatmul.bf16.gmra.mxu0 %v346
    %v502 = vpop.f32.mrf.mxu0
    %v503 = vadd.f32 %v110, %v502
    %v504 = vpop.f32.mrf.mxu0
    %v505 = vadd.f32 %v110, %v504
    %506 = vmatmul.bf16.gmra.mxu0 %v349
    %v507 = vpop.f32.mrf.mxu0
    %v508 = vadd.f32 %v110, %v507
    %v509 = vpop.f32.mrf.mxu0
    %v510 = vadd.f32 %v110, %v509
    %511 = vmatmul.bf16.gmra.mxu0 %v352
    %v512 = vpop.f32.mrf.mxu0
    %v513 = vadd.f32 %v110, %v512
    %v514 = vpop.f32.mrf.mxu0
    %v515 = vadd.f32 %v110, %v514
    %516 = vmatmul.bf16.gmra.mxu0 %v355
    %v517 = vpop.f32.mrf.mxu0
    %v518 = vadd.f32 %v110, %v517
    %v519 = vpop.f32.mrf.mxu0
    %v520 = vadd.f32 %v110, %v519
    %521 = vmatmul.bf16.gmra.mxu0 %v358
    %v522 = vpop.f32.mrf.mxu0
    %v523 = vadd.f32 %v110, %v522
    %v524 = vpop.f32.mrf.mxu0
    %v525 = vadd.f32 %v110, %v524
    %526 = vmatmul.bf16.gmra.mxu0 %v361
    %v527 = vpop.f32.mrf.mxu0
    %v528 = vadd.f32 %v110, %v527
    %v529 = vpop.f32.mrf.mxu0
    %v530 = vadd.f32 %v110, %v529
    %531 = vmatmul.bf16.gmra.mxu0 %v364
    %v532 = vpop.f32.mrf.mxu0
    %v533 = vadd.f32 %v110, %v532
    %v534 = vpop.f32.mrf.mxu0
    %v535 = vadd.f32 %v110, %v534
    %536 = vmatmul.bf16.gmra.mxu0 %v367
    %v537 = vpop.f32.mrf.mxu0
    %v538 = vadd.f32 %v110, %v537
    %v539 = vpop.f32.mrf.mxu0
    %v540 = vadd.f32 %v110, %v539
    %541 = vdwg.mxu0
    %v542 = vpack.c.bf16 %v383, %v383
    %v543 = vpack.c.bf16 %v385, %v385
    %v544 = vpack.c.bf16 %v388, %v388
    %v545 = vpack.c.bf16 %v390, %v390
    %v546 = vpack.c.bf16 %v393, %v393
    %v547 = vpack.c.bf16 %v395, %v395
    %v548 = vpack.c.bf16 %v398, %v398
    %v549 = vpack.c.bf16 %v400, %v400
    %v550 = vpack.c.bf16 %v403, %v403
    %v551 = vpack.c.bf16 %v405, %v405
    %v552 = vpack.c.bf16 %v408, %v408
    %v553 = vpack.c.bf16 %v410, %v410
    %v554 = vpack.c.bf16 %v413, %v413
    %v555 = vpack.c.bf16 %v415, %v415
    %v556 = vpack.c.bf16 %v418, %v418
    %v557 = vpack.c.bf16 %v420, %v420
    %v558 = vpack.c.bf16 %v423, %v423
    %v559 = vpack.c.bf16 %v425, %v425
    %v560 = vpack.c.bf16 %v428, %v428
    %v561 = vpack.c.bf16 %v430, %v430
    %v562 = vpack.c.bf16 %v433, %v433
    %v563 = vpack.c.bf16 %v435, %v435
    %v564 = vpack.c.bf16 %v438, %v438
    %v565 = vpack.c.bf16 %v440, %v440
    %v566 = vpack.c.bf16 %v443, %v443
    %v567 = vpack.c.bf16 %v445, %v445
    %v568 = vpack.c.bf16 %v448, %v448
    %v569 = vpack.c.bf16 %v450, %v450
    %v570 = vpack.c.bf16 %v453, %v453
    %v571 = vpack.c.bf16 %v455, %v455
    %v572 = vpack.c.bf16 %v458, %v458
    %v573 = vpack.c.bf16 %v460, %v460
    %v574 = vpack.c.bf16 %v463, %v463
    %v575 = vpack.c.bf16 %v465, %v465
    %v576 = vpack.c.bf16 %v468, %v468
    %v577 = vpack.c.bf16 %v470, %v470
    %v578 = vpack.c.bf16 %v473, %v473
    %v579 = vpack.c.bf16 %v475, %v475
    %v580 = vpack.c.bf16 %v478, %v478
    %v581 = vpack.c.bf16 %v480, %v480
    %v582 = vpack.c.bf16 %v483, %v483
    %v583 = vpack.c.bf16 %v485, %v485
    %v584 = vpack.c.bf16 %v488, %v488
    %v585 = vpack.c.bf16 %v490, %v490
    %v586 = vpack.c.bf16 %v493, %v493
    %v587 = vpack.c.bf16 %v495, %v495
    %v588 = vpack.c.bf16 %v498, %v498
    %v589 = vpack.c.bf16 %v500, %v500
    %v590 = vpack.c.bf16 %v503, %v503
    %v591 = vpack.c.bf16 %v505, %v505
    %v592 = vpack.c.bf16 %v508, %v508
    %v593 = vpack.c.bf16 %v510, %v510
    %v594 = vpack.c.bf16 %v513, %v513
    %v595 = vpack.c.bf16 %v515, %v515
    %v596 = vpack.c.bf16 %v518, %v518
    %v597 = vpack.c.bf16 %v520, %v520
    %v598 = vpack.c.bf16 %v523, %v523
    %v599 = vpack.c.bf16 %v525, %v525
    %v600 = vpack.c.bf16 %v528, %v528
    %v601 = vpack.c.bf16 %v530, %v530
    %v602 = vpack.c.bf16 %v533, %v533
    %v603 = vpack.c.bf16 %v535, %v535
    %v604 = vpack.c.bf16 %v538, %v538
    %v605 = vpack.c.bf16 %v540, %v540
    %606 = vst [vmem:[%s3] sm:$0xf] %v542
    %607 = vst [vmem:[%s3 + $0x4] sm:$0xf] %v543
    %608 = vst [vmem:[%s3 + $0x8] sm:$0xf] %v544
    %609 = vst [vmem:[%s3 + $0xc] sm:$0xf] %v545
    %610 = vst [vmem:[%s3 + $0x10] sm:$0xf] %v546
    %611 = vst [vmem:[%s3 + $0x14] sm:$0xf] %v547
    %612 = vst [vmem:[%s3 + $0x18] sm:$0xf] %v548
    %613 = vst [vmem:[%s3 + $0x1c] sm:$0xf] %v549
    %614 = vst [vmem:[%s3 + $0x20] sm:$0xf] %v550
    %615 = vst [vmem:[%s3 + $0x24] sm:$0xf] %v551
    %616 = vst [vmem:[%s3 + $0x28] sm:$0xf] %v552
    %617 = vst [vmem:[%s3 + $0x2c] sm:$0xf] %v553
    %618 = vst [vmem:[%s3 + $0x30] sm:$0xf] %v554
    %619 = vst [vmem:[%s3 + $0x34] sm:$0xf] %v555
    %620 = vst [vmem:[%s3 + $0x38] sm:$0xf] %v556
    %621 = vst [vmem:[%s3 + $0x3c] sm:$0xf] %v557
    %622 = vst [vmem:[%s3 + $0x40] sm:$0xf] %v558
    %623 = vst [vmem:[%s3 + $0x44] sm:$0xf] %v559
    %624 = vst [vmem:[%s3 + $0x48] sm:$0xf] %v560
    %625 = vst [vmem:[%s3 + $0x4c] sm:$0xf] %v561
    %626 = vst [vmem:[%s3 + $0x50] sm:$0xf] %v562
    %627 = vst [vmem:[%s3 + $0x54] sm:$0xf] %v563
    %628 = vst [vmem:[%s3 + $0x58] sm:$0xf] %v564
    %629 = vst [vmem:[%s3 + $0x5c] sm:$0xf] %v565
    %630 = vst [vmem:[%s3 + $0x60] sm:$0xf] %v566
    %631 = vst [vmem:[%s3 + $0x64] sm:$0xf] %v567
    %632 = vst [vmem:[%s3 + $0x68] sm:$0xf] %v568
    %633 = vst [vmem:[%s3 + $0x6c] sm:$0xf] %v569
    %634 = vst [vmem:[%s3 + $0x70] sm:$0xf] %v570
    %635 = vst [vmem:[%s3 + $0x74] sm:$0xf] %v571
    %636 = vst [vmem:[%s3 + $0x78] sm:$0xf] %v572
    %637 = vst [vmem:[%s3 + $0x7c] sm:$0xf] %v573
    %638 = vst [vmem:[%s3 + $0x80] sm:$0xf] %v574
    %639 = vst [vmem:[%s3 + $0x84] sm:$0xf] %v575
    %640 = vst [vmem:[%s3 + $0x88] sm:$0xf] %v576
    %641 = vst [vmem:[%s3 + $0x8c] sm:$0xf] %v577
    %642 = vst [vmem:[%s3 + $0x90] sm:$0xf] %v578
    %643 = vst [vmem:[%s3 + $0x94] sm:$0xf] %v579
    %644 = vst [vmem:[%s3 + $0x98] sm:$0xf] %v580
    %645 = vst [vmem:[%s3 + $0x9c] sm:$0xf] %v581
    %646 = vst [vmem:[%s3 + $0xa0] sm:$0xf] %v582
    %647 = vst [vmem:[%s3 + $0xa4] sm:$0xf] %v583
    %648 = vst [vmem:[%s3 + $0xa8] sm:$0xf] %v584
    %649 = vst [vmem:[%s3 + $0xac] sm:$0xf] %v585
    %650 = vst [vmem:[%s3 + $0xb0] sm:$0xf] %v586
    %651 = vst [vmem:[%s3 + $0xb4] sm:$0xf] %v587
    %652 = vst [vmem:[%s3 + $0xb8] sm:$0xf] %v588
    %653 = vst [vmem:[%s3 + $0xbc] sm:$0xf] %v589
    %654 = vst [vmem:[%s3 + $0xc0] sm:$0xf] %v590
    %655 = vst [vmem:[%s3 + $0xc4] sm:$0xf] %v591
    %656 = vst [vmem:[%s3 + $0xc8] sm:$0xf] %v592
    %657 = vst [vmem:[%s3 + $0xcc] sm:$0xf] %v593
    %658 = vst [vmem:[%s3 + $0xd0] sm:$0xf] %v594
    %659 = vst [vmem:[%s3 + $0xd4] sm:$0xf] %v595
    %660 = vst [vmem:[%s3 + $0xd8] sm:$0xf] %v596
    %661 = vst [vmem:[%s3 + $0xdc] sm:$0xf] %v597
    %662 = vst [vmem:[%s3 + $0xe0] sm:$0xf] %v598
    %663 = vst [vmem:[%s3 + $0xe4] sm:$0xf] %v599
    %664 = vst [vmem:[%s3 + $0xe8] sm:$0xf] %v600
    %665 = vst [vmem:[%s3 + $0xec] sm:$0xf] %v601
    %666 = vst [vmem:[%s3 + $0xf0] sm:$0xf] %v602
    %667 = vst [vmem:[%s3 + $0xf4] sm:$0xf] %v603
    %668 = vst [vmem:[%s3 + $0xf8] sm:$0xf] %v604
    %669 = vst [vmem:[%s3 + $0xfc] sm:$0xf] %v605
    // Predicated region
    $region22: #{rrcnn_forward.13} parent=1 // pred_check
      _
    $region23: #{rrcnn_forward.13} parent=1 // pred_check_branch
      %671 = sbr.rel (0) target = $region25
    $region24: #{rrcnn_forward.13} parent=1 // pred_region
      _
    $region25: #{rrcnn_forward.13} parent=1 // pred_fallthru
      _
    // Predicated region
    $region26: #{rrcnn_forward.13} parent=1 // pred_check
      _
    $region27: #{rrcnn_forward.13} parent=1 // pred_check_branch
      %673 = sbr.rel (0) target = $region29
    $region28: #{rrcnn_forward.13} parent=1 // pred_region
      _
    $region29: #{rrcnn_forward.13} parent=1 // pred_fallthru
      _
    %674 = vsyncpa [#allocation3], 1
    %675 = vsyncpa [#allocation5], 1

// kernel: rrcnn_forward.19
$region0: #{rrcnn_forward.19}
  #allocation0 [shape = 'u32[]', space=smem, size = 0x4, offset = 0x4, fixed_abs, tag = 'smem constant byte address 0x4 - core index']
  #allocation1 [shape = 'u32[72,128]{1,0:T(1,128)}', space=vmem, size = 0x9000, scoped, tag = 'internal scratch']
  %s0 = inlined_call_operand.vmem [shape: bf16[512,128], index: 0, kind: input, shape index: {}]
  %s1 = inlined_call_operand.vmem [shape: f32[1,128], index: 1, kind: input, shape index: {}]
  %s2 = inlined_call_operand.vmem [shape: f32[1,128], index: 2, kind: input, shape index: {}]
  %s3 = inlined_call_operand.vmem [shape: bf16[512,128], index: 3, kind: output, shape index: {}]
  %s4 = sld [smem:[#allocation0]]
  $region22: #{rrcnn_forward.19} parent=0
    _
  %s6 = ssub.s32 1, %s4
  %s7 = scalar_select 0, %s6, %s4
  // Predicated region
  $region2: #{rrcnn_forward.19} parent=0 // pred_check
    _
  $region3: #{rrcnn_forward.19} parent=0 // pred_check_branch
    %9 = sbr.rel (0) target = $region5
  $region4: #{rrcnn_forward.19} parent=0 // pred_region
    _
  $region5: #{rrcnn_forward.19} parent=0 // pred_fallthru
    _
  // Predicated region
  $region6: #{rrcnn_forward.19} parent=0 // pred_check
    _
  $region7: #{rrcnn_forward.19} parent=0 // pred_check_branch
    %11 = sbr.rel (0) target = $region9
  $region8: #{rrcnn_forward.19} parent=0 // pred_region
    _
  $region9: #{rrcnn_forward.19} parent=0 // pred_fallthru
    _
  // Predicated region
  $region10: #{rrcnn_forward.19} parent=0 // pred_check
    _
  $region11: #{rrcnn_forward.19} parent=0 // pred_check_branch
    %13 = sbr.rel (0) target = $region13
  $region12: #{rrcnn_forward.19} parent=0 // pred_region
    _
  $region13: #{rrcnn_forward.19} parent=0 // pred_fallthru
    _
  %v14 = vld [vmem:[%s0] sm:$0xf]
  %v15 = vld [vmem:[%s0 + $0x4] sm:$0xf]
  %v16 = vld [vmem:[%s0 + $0x8] sm:$0xf]
  %v17 = vld [vmem:[%s0 + $0xc] sm:$0xf]
  %v18 = vld [vmem:[%s0 + $0x10] sm:$0xf]
  %v19 = vld [vmem:[%s0 + $0x14] sm:$0xf]
  %v20 = vld [vmem:[%s0 + $0x18] sm:$0xf]
  %v21 = vld [vmem:[%s0 + $0x1c] sm:$0xf]
  %v22 = vld [vmem:[%s0 + $0x20] sm:$0xf]
  %v23 = vld [vmem:[%s0 + $0x24] sm:$0xf]
  %v24 = vld [vmem:[%s0 + $0x28] sm:$0xf]
  %v25 = vld [vmem:[%s0 + $0x2c] sm:$0xf]
  %v26 = vld [vmem:[%s0 + $0x30] sm:$0xf]
  %v27 = vld [vmem:[%s0 + $0x34] sm:$0xf]
  %v28 = vld [vmem:[%s0 + $0x38] sm:$0xf]
  %v29 = vld [vmem:[%s0 + $0x3c] sm:$0xf]
  %v30 = vld [vmem:[%s0 + $0x40] sm:$0xf]
  %v31 = vld [vmem:[%s0 + $0x44] sm:$0xf]
  %v32 = vld [vmem:[%s0 + $0x48] sm:$0xf]
  %v33 = vld [vmem:[%s0 + $0x4c] sm:$0xf]
  %v34 = vld [vmem:[%s0 + $0x50] sm:$0xf]
  %v35 = vld [vmem:[%s0 + $0x54] sm:$0xf]
  %v36 = vld [vmem:[%s0 + $0x58] sm:$0xf]
  %v37 = vld [vmem:[%s0 + $0x5c] sm:$0xf]
  %v38 = vld [vmem:[%s0 + $0x60] sm:$0xf]
  %v39 = vld [vmem:[%s0 + $0x64] sm:$0xf]
  %v40 = vld [vmem:[%s0 + $0x68] sm:$0xf]
  %v41 = vld [vmem:[%s0 + $0x6c] sm:$0xf]
  %v42 = vld [vmem:[%s0 + $0x70] sm:$0xf]
  %v43 = vld [vmem:[%s0 + $0x74] sm:$0xf]
  %v44 = vld [vmem:[%s0 + $0x78] sm:$0xf]
  %v45 = vld [vmem:[%s0 + $0x7c] sm:$0xf]
  %v46 = vld [vmem:[%s0 + $0x80] sm:$0xf]
  %v47 = vld [vmem:[%s0 + $0x84] sm:$0xf]
  %v48 = vld [vmem:[%s0 + $0x88] sm:$0xf]
  %v49 = vld [vmem:[%s0 + $0x8c] sm:$0xf]
  %v50 = vld [vmem:[%s0 + $0x90] sm:$0xf]
  %v51 = vld [vmem:[%s0 + $0x94] sm:$0xf]
  %v52 = vld [vmem:[%s0 + $0x98] sm:$0xf]
  %v53 = vld [vmem:[%s0 + $0x9c] sm:$0xf]
  %v54 = vld [vmem:[%s0 + $0xa0] sm:$0xf]
  %v55 = vld [vmem:[%s0 + $0xa4] sm:$0xf]
  %v56 = vld [vmem:[%s0 + $0xa8] sm:$0xf]
  %v57 = vld [vmem:[%s0 + $0xac] sm:$0xf]
  %v58 = vld [vmem:[%s0 + $0xb0] sm:$0xf]
  %v59 = vld [vmem:[%s0 + $0xb4] sm:$0xf]
  %v60 = vld [vmem:[%s0 + $0xb8] sm:$0xf]
  %v61 = vld [vmem:[%s0 + $0xbc] sm:$0xf]
  %v62 = vld [vmem:[%s0 + $0xc0] sm:$0xf]
  %v63 = vld [vmem:[%s0 + $0xc4] sm:$0xf]
  %v64 = vld [vmem:[%s0 + $0xc8] sm:$0xf]
  %v65 = vld [vmem:[%s0 + $0xcc] sm:$0xf]
  %v66 = vld [vmem:[%s0 + $0xd0] sm:$0xf]
  %v67 = vld [vmem:[%s0 + $0xd4] sm:$0xf]
  %v68 = vld [vmem:[%s0 + $0xd8] sm:$0xf]
  %v69 = vld [vmem:[%s0 + $0xdc] sm:$0xf]
  %v70 = vld [vmem:[%s0 + $0xe0] sm:$0xf]
  %v71 = vld [vmem:[%s0 + $0xe4] sm:$0xf]
  %v72 = vld [vmem:[%s0 + $0xe8] sm:$0xf]
  %v73 = vld [vmem:[%s0 + $0xec] sm:$0xf]
  %v74 = vld [vmem:[%s0 + $0xf0] sm:$0xf]
  %v75 = vld [vmem:[%s0 + $0xf4] sm:$0xf]
  %v76 = vld [vmem:[%s0 + $0xf8] sm:$0xf]
  %v77 = vld [vmem:[%s0 + $0xfc] sm:$0xf]
  %v78 = vunpack.c.l.bf16 %v14
  %v79 = vunpack.c.l.bf16 %v15
  %v80 = vunpack.c.l.bf16 %v16
  %v81 = vunpack.c.l.bf16 %v17
  %v82 = vunpack.c.l.bf16 %v18
  %v83 = vunpack.c.l.bf16 %v19
  %v84 = vunpack.c.l.bf16 %v20
  %v85 = vunpack.c.l.bf16 %v21
  %v86 = vunpack.c.l.bf16 %v22
  %v87 = vunpack.c.l.bf16 %v23
  %v88 = vunpack.c.l.bf16 %v24
  %v89 = vunpack.c.l.bf16 %v25
  %v90 = vunpack.c.l.bf16 %v26
  %v91 = vunpack.c.l.bf16 %v27
  %v92 = vunpack.c.l.bf16 %v28
  %v93 = vunpack.c.l.bf16 %v29
  %v94 = vunpack.c.l.bf16 %v30
  %v95 = vunpack.c.l.bf16 %v31
  %v96 = vunpack.c.l.bf16 %v32
  %v97 = vunpack.c.l.bf16 %v33
  %v98 = vunpack.c.l.bf16 %v34
  %v99 = vunpack.c.l.bf16 %v35
  %v100 = vunpack.c.l.bf16 %v36
  %v101 = vunpack.c.l.bf16 %v37
  %v102 = vunpack.c.l.bf16 %v38
  %v103 = vunpack.c.l.bf16 %v39
  %v104 = vunpack.c.l.bf16 %v40
  %v105 = vunpack.c.l.bf16 %v41
  %v106 = vunpack.c.l.bf16 %v42
  %v107 = vunpack.c.l.bf16 %v43
  %v108 = vunpack.c.l.bf16 %v44
  %v109 = vunpack.c.l.bf16 %v45
  %v110 = vunpack.c.l.bf16 %v46
  %v111 = vunpack.c.l.bf16 %v47
  %v112 = vunpack.c.l.bf16 %v48
  %v113 = vunpack.c.l.bf16 %v49
  %v114 = vunpack.c.l.bf16 %v50
  %v115 = vunpack.c.l.bf16 %v51
  %v116 = vunpack.c.l.bf16 %v52
  %v117 = vunpack.c.l.bf16 %v53
  %v118 = vunpack.c.l.bf16 %v54
  %v119 = vunpack.c.l.bf16 %v55
  %v120 = vunpack.c.l.bf16 %v56
  %v121 = vunpack.c.l.bf16 %v57
  %v122 = vunpack.c.l.bf16 %v58
  %v123 = vunpack.c.l.bf16 %v59
  %v124 = vunpack.c.l.bf16 %v60
  %v125 = vunpack.c.l.bf16 %v61
  %v126 = vunpack.c.l.bf16 %v62
  %v127 = vunpack.c.l.bf16 %v63
  %v128 = vunpack.c.l.bf16 %v64
  %v129 = vunpack.c.l.bf16 %v65
  %v130 = vunpack.c.l.bf16 %v66
  %v131 = vunpack.c.l.bf16 %v67
  %v132 = vunpack.c.l.bf16 %v68
  %v133 = vunpack.c.l.bf16 %v69
  %v134 = vunpack.c.l.bf16 %v70
  %v135 = vunpack.c.l.bf16 %v71
  %v136 = vunpack.c.l.bf16 %v72
  %v137 = vunpack.c.l.bf16 %v73
  %v138 = vunpack.c.l.bf16 %v74
  %v139 = vunpack.c.l.bf16 %v75
  %v140 = vunpack.c.l.bf16 %v76
  %v141 = vunpack.c.l.bf16 %v77
  %v142 = vld [vmem:[%s1] sm:$0x1]
  %v144 = vperm.slane %v142, 0
  %v146 = vmul.f32 %v78, %v144
  %v147 = vmul.f32 %v79, %v144
  %v148 = vmul.f32 %v80, %v144
  %v149 = vmul.f32 %v81, %v144
  %v150 = vmul.f32 %v82, %v144
  %v151 = vmul.f32 %v83, %v144
  %v152 = vmul.f32 %v84, %v144
  %v153 = vmul.f32 %v85, %v144
  %v154 = vmul.f32 %v86, %v144
  %v155 = vmul.f32 %v87, %v144
  %v156 = vmul.f32 %v88, %v144
  %v157 = vmul.f32 %v89, %v144
  %v158 = vmul.f32 %v90, %v144
  %v159 = vmul.f32 %v91, %v144
  %v160 = vmul.f32 %v92, %v144
  %v161 = vmul.f32 %v93, %v144
  %v162 = vmul.f32 %v94, %v144
  %v163 = vmul.f32 %v95, %v144
  %v164 = vmul.f32 %v96, %v144
  %v165 = vmul.f32 %v97, %v144
  %v166 = vmul.f32 %v98, %v144
  %v167 = vmul.f32 %v99, %v144
  %v168 = vmul.f32 %v100, %v144
  %v169 = vmul.f32 %v101, %v144
  %v170 = vmul.f32 %v102, %v144
  %v171 = vmul.f32 %v103, %v144
  %v172 = vmul.f32 %v104, %v144
  %v173 = vmul.f32 %v105, %v144
  %v174 = vmul.f32 %v106, %v144
  %v175 = vmul.f32 %v107, %v144
  %v176 = vmul.f32 %v108, %v144
  %v177 = vmul.f32 %v109, %v144
  %v178 = vmul.f32 %v110, %v144
  %v179 = vmul.f32 %v111, %v144
  %v180 = vmul.f32 %v112, %v144
  %v181 = vmul.f32 %v113, %v144
  %v182 = vmul.f32 %v114, %v144
  %v183 = vmul.f32 %v115, %v144
  %v184 = vmul.f32 %v116, %v144
  %v185 = vmul.f32 %v117, %v144
  %v186 = vmul.f32 %v118, %v144
  %v187 = vmul.f32 %v119, %v144
  %v188 = vmul.f32 %v120, %v144
  %v189 = vmul.f32 %v121, %v144
  %v190 = vmul.f32 %v122, %v144
  %v191 = vmul.f32 %v123, %v144
  %v192 = vmul.f32 %v124, %v144
  %v193 = vmul.f32 %v125, %v144
  %v194 = vmul.f32 %v126, %v144
  %v195 = vmul.f32 %v127, %v144
  %v196 = vmul.f32 %v128, %v144
  %v197 = vmul.f32 %v129, %v144
  %v198 = vmul.f32 %v130, %v144
  %v199 = vmul.f32 %v131, %v144
  %v200 = vmul.f32 %v132, %v144
  %v201 = vmul.f32 %v133, %v144
  %v202 = vmul.f32 %v134, %v144
  %v203 = vmul.f32 %v135, %v144
  %v204 = vmul.f32 %v136, %v144
  %v205 = vmul.f32 %v137, %v144
  %v206 = vmul.f32 %v138, %v144
  %v207 = vmul.f32 %v139, %v144
  %v208 = vmul.f32 %v140, %v144
  %v209 = vmul.f32 %v141, %v144
  %v210 = vld [vmem:[%s2] sm:$0x1]
  %v212 = vperm.slane %v210, 0
  %v214 = vadd.f32 %v146, %v212
  %v215 = vadd.f32 %v147, %v212
  %v216 = vadd.f32 %v148, %v212
  %v217 = vadd.f32 %v149, %v212
  %v218 = vadd.f32 %v150, %v212
  %v219 = vadd.f32 %v151, %v212
  %v220 = vadd.f32 %v152, %v212
  %v221 = vadd.f32 %v153, %v212
  %v222 = vadd.f32 %v154, %v212
  %v223 = vadd.f32 %v155, %v212
  %v224 = vadd.f32 %v156, %v212
  %v225 = vadd.f32 %v157, %v212
  %v226 = vadd.f32 %v158, %v212
  %v227 = vadd.f32 %v159, %v212
  %v228 = vadd.f32 %v160, %v212
  %v229 = vadd.f32 %v161, %v212
  %v230 = vadd.f32 %v162, %v212
  %v231 = vadd.f32 %v163, %v212
  %v232 = vadd.f32 %v164, %v212
  %v233 = vadd.f32 %v165, %v212
  %v234 = vadd.f32 %v166, %v212
  %v235 = vadd.f32 %v167, %v212
  %v236 = vadd.f32 %v168, %v212
  %v237 = vadd.f32 %v169, %v212
  %v238 = vadd.f32 %v170, %v212
  %v239 = vadd.f32 %v171, %v212
  %v240 = vadd.f32 %v172, %v212
  %v241 = vadd.f32 %v173, %v212
  %v242 = vadd.f32 %v174, %v212
  %v243 = vadd.f32 %v175, %v212
  %v244 = vadd.f32 %v176, %v212
  %v245 = vadd.f32 %v177, %v212
  %v246 = vadd.f32 %v178, %v212
  %v247 = vadd.f32 %v179, %v212
  %v248 = vadd.f32 %v180, %v212
  %v249 = vadd.f32 %v181, %v212
  %v250 = vadd.f32 %v182, %v212
  %v251 = vadd.f32 %v183, %v212
  %v252 = vadd.f32 %v184, %v212
  %v253 = vadd.f32 %v185, %v212
  %v254 = vadd.f32 %v186, %v212
  %v255 = vadd.f32 %v187, %v212
  %v256 = vadd.f32 %v188, %v212
  %v257 = vadd.f32 %v189, %v212
  %v258 = vadd.f32 %v190, %v212
  %v259 = vadd.f32 %v191, %v212
  %v260 = vadd.f32 %v192, %v212
  %v261 = vadd.f32 %v193, %v212
  %v262 = vadd.f32 %v194, %v212
  %v263 = vadd.f32 %v195, %v212
  %v264 = vadd.f32 %v196, %v212
  %v265 = vadd.f32 %v197, %v212
  %v266 = vadd.f32 %v198, %v212
  %v267 = vadd.f32 %v199, %v212
  %v268 = vadd.f32 %v200, %v212
  %v269 = vadd.f32 %v201, %v212
  %v270 = vadd.f32 %v202, %v212
  %v271 = vadd.f32 %v203, %v212
  %v272 = vadd.f32 %v204, %v212
  %v273 = vadd.f32 %v205, %v212
  %v274 = vadd.f32 %v206, %v212
  %v275 = vadd.f32 %v207, %v212
  %v276 = vadd.f32 %v208, %v212
  %v277 = vadd.f32 %v209, %v212
  %v278 = vmax.f32 %v214, 0.0
  %v279 = vmax.f32 %v215, 0.0
  %v280 = vmax.f32 %v216, 0.0
  %v281 = vmax.f32 %v217, 0.0
  %v282 = vmax.f32 %v218, 0.0
  %v283 = vmax.f32 %v219, 0.0
  %v284 = vmax.f32 %v220, 0.0
  %v285 = vmax.f32 %v221, 0.0
  %v286 = vmax.f32 %v222, 0.0
  %v287 = vmax.f32 %v223, 0.0
  %v288 = vmax.f32 %v224, 0.0
  %v289 = vmax.f32 %v225, 0.0
  %v290 = vmax.f32 %v226, 0.0
  %v291 = vmax.f32 %v227, 0.0
  %v292 = vmax.f32 %v228, 0.0
  %v293 = vmax.f32 %v229, 0.0
  %v294 = vmax.f32 %v230, 0.0
  %v295 = vmax.f32 %v231, 0.0
  %v296 = vmax.f32 %v232, 0.0
  %v297 = vmax.f32 %v233, 0.0
  %v298 = vmax.f32 %v234, 0.0
  %v299 = vmax.f32 %v235, 0.0
  %v300 = vmax.f32 %v236, 0.0
  %v301 = vmax.f32 %v237, 0.0
  %v302 = vmax.f32 %v238, 0.0
  %v303 = vmax.f32 %v239, 0.0
  %v304 = vmax.f32 %v240, 0.0
  %v305 = vmax.f32 %v241, 0.0
  %v306 = vmax.f32 %v242, 0.0
  %v307 = vmax.f32 %v243, 0.0
  %v308 = vmax.f32 %v244, 0.0
  %v309 = vmax.f32 %v245, 0.0
  %v310 = vmax.f32 %v246, 0.0
  %v311 = vmax.f32 %v247, 0.0
  %v312 = vmax.f32 %v248, 0.0
  %v313 = vmax.f32 %v249, 0.0
  %v314 = vmax.f32 %v250, 0.0
  %v315 = vmax.f32 %v251, 0.0
  %v316 = vmax.f32 %v252, 0.0
  %v317 = vmax.f32 %v253, 0.0
  %v318 = vmax.f32 %v254, 0.0
  %v319 = vmax.f32 %v255, 0.0
  %v320 = vmax.f32 %v256, 0.0
  %v321 = vmax.f32 %v257, 0.0
  %v322 = vmax.f32 %v258, 0.0
  %v323 = vmax.f32 %v259, 0.0
  %v324 = vmax.f32 %v260, 0.0
  %v325 = vmax.f32 %v261, 0.0
  %v326 = vmax.f32 %v262, 0.0
  %v327 = vmax.f32 %v263, 0.0
  %v328 = vmax.f32 %v264, 0.0
  %v329 = vmax.f32 %v265, 0.0
  %v330 = vmax.f32 %v266, 0.0
  %v331 = vmax.f32 %v267, 0.0
  %v332 = vmax.f32 %v268, 0.0
  %v333 = vmax.f32 %v269, 0.0
  %v334 = vmax.f32 %v270, 0.0
  %v335 = vmax.f32 %v271, 0.0
  %v336 = vmax.f32 %v272, 0.0
  %v337 = vmax.f32 %v273, 0.0
  %v338 = vmax.f32 %v274, 0.0
  %v339 = vmax.f32 %v275, 0.0
  %v340 = vmax.f32 %v276, 0.0
  %v341 = vmax.f32 %v277, 0.0
  %v342 = vpack.c.bf16 %v278, %v278
  %v343 = vpack.c.bf16 %v279, %v279
  %v344 = vpack.c.bf16 %v280, %v280
  %v345 = vpack.c.bf16 %v281, %v281
  %v346 = vpack.c.bf16 %v282, %v282
  %v347 = vpack.c.bf16 %v283, %v283
  %v348 = vpack.c.bf16 %v284, %v284
  %v349 = vpack.c.bf16 %v285, %v285
  %v350 = vpack.c.bf16 %v286, %v286
  %v351 = vpack.c.bf16 %v287, %v287
  %v352 = vpack.c.bf16 %v288, %v288
  %v353 = vpack.c.bf16 %v289, %v289
  %v354 = vpack.c.bf16 %v290, %v290
  %v355 = vpack.c.bf16 %v291, %v291
  %v356 = vpack.c.bf16 %v292, %v292
  %v357 = vpack.c.bf16 %v293, %v293
  %v358 = vpack.c.bf16 %v294, %v294
  %v359 = vpack.c.bf16 %v295, %v295
  %v360 = vpack.c.bf16 %v296, %v296
  %v361 = vpack.c.bf16 %v297, %v297
  %v362 = vpack.c.bf16 %v298, %v298
  %v363 = vpack.c.bf16 %v299, %v299
  %v364 = vpack.c.bf16 %v300, %v300
  %v365 = vpack.c.bf16 %v301, %v301
  %v366 = vpack.c.bf16 %v302, %v302
  %v367 = vpack.c.bf16 %v303, %v303
  %v368 = vpack.c.bf16 %v304, %v304
  %v369 = vpack.c.bf16 %v305, %v305
  %v370 = vpack.c.bf16 %v306, %v306
  %v371 = vpack.c.bf16 %v307, %v307
  %v372 = vpack.c.bf16 %v308, %v308
  %v373 = vpack.c.bf16 %v309, %v309
  %v374 = vpack.c.bf16 %v310, %v310
  %v375 = vpack.c.bf16 %v311, %v311
  %v376 = vpack.c.bf16 %v312, %v312
  %v377 = vpack.c.bf16 %v313, %v313
  %v378 = vpack.c.bf16 %v314, %v314
  %v379 = vpack.c.bf16 %v315, %v315
  %v380 = vpack.c.bf16 %v316, %v316
  %v381 = vpack.c.bf16 %v317, %v317
  %v382 = vpack.c.bf16 %v318, %v318
  %v383 = vpack.c.bf16 %v319, %v319
  %v384 = vpack.c.bf16 %v320, %v320
  %v385 = vpack.c.bf16 %v321, %v321
  %v386 = vpack.c.bf16 %v322, %v322
  %v387 = vpack.c.bf16 %v323, %v323
  %v388 = vpack.c.bf16 %v324, %v324
  %v389 = vpack.c.bf16 %v325, %v325
  %v390 = vpack.c.bf16 %v326, %v326
  %v391 = vpack.c.bf16 %v327, %v327
  %v392 = vpack.c.bf16 %v328, %v328
  %v393 = vpack.c.bf16 %v329, %v329
  %v394 = vpack.c.bf16 %v330, %v330
  %v395 = vpack.c.bf16 %v331, %v331
  %v396 = vpack.c.bf16 %v332, %v332
  %v397 = vpack.c.bf16 %v333, %v333
  %v398 = vpack.c.bf16 %v334, %v334
  %v399 = vpack.c.bf16 %v335, %v335
  %v400 = vpack.c.bf16 %v336, %v336
  %v401 = vpack.c.bf16 %v337, %v337
  %v402 = vpack.c.bf16 %v338, %v338
  %v403 = vpack.c.bf16 %v339, %v339
  %v404 = vpack.c.bf16 %v340, %v340
  %v405 = vpack.c.bf16 %v341, %v341
  %406 = vst [vmem:[%s3] sm:$0xf] %v342
  %407 = vst [vmem:[%s3 + $0x4] sm:$0xf] %v343
  %408 = vst [vmem:[%s3 + $0x8] sm:$0xf] %v344
  %409 = vst [vmem:[%s3 + $0xc] sm:$0xf] %v345
  %410 = vst [vmem:[%s3 + $0x10] sm:$0xf] %v346
  %411 = vst [vmem:[%s3 + $0x14] sm:$0xf] %v347
  %412 = vst [vmem:[%s3 + $0x18] sm:$0xf] %v348
  %413 = vst [vmem:[%s3 + $0x1c] sm:$0xf] %v349
  %414 = vst [vmem:[%s3 + $0x20] sm:$0xf] %v350
  %415 = vst [vmem:[%s3 + $0x24] sm:$0xf] %v351
  %416 = vst [vmem:[%s3 + $0x28] sm:$0xf] %v352
  %417 = vst [vmem:[%s3 + $0x2c] sm:$0xf] %v353
  %418 = vst [vmem:[%s3 + $0x30] sm:$0xf] %v354
  %419 = vst [vmem:[%s3 + $0x34] sm:$0xf] %v355
  %420 = vst [vmem:[%s3 + $0x38] sm:$0xf] %v356
  %421 = vst [vmem:[%s3 + $0x3c] sm:$0xf] %v357
  %422 = vst [vmem:[%s3 + $0x40] sm:$0xf] %v358
  %423 = vst [vmem:[%s3 + $0x44] sm:$0xf] %v359
  %424 = vst [vmem:[%s3 + $0x48] sm:$0xf] %v360
  %425 = vst [vmem:[%s3 + $0x4c] sm:$0xf] %v361
  %426 = vst [vmem:[%s3 + $0x50] sm:$0xf] %v362
  %427 = vst [vmem:[%s3 + $0x54] sm:$0xf] %v363
  %428 = vst [vmem:[%s3 + $0x58] sm:$0xf] %v364
  %429 = vst [vmem:[%s3 + $0x5c] sm:$0xf] %v365
  %430 = vst [vmem:[%s3 + $0x60] sm:$0xf] %v366
  %431 = vst [vmem:[%s3 + $0x64] sm:$0xf] %v367
  %432 = vst [vmem:[%s3 + $0x68] sm:$0xf] %v368
  %433 = vst [vmem:[%s3 + $0x6c] sm:$0xf] %v369
  %434 = vst [vmem:[%s3 + $0x70] sm:$0xf] %v370
  %435 = vst [vmem:[%s3 + $0x74] sm:$0xf] %v371
  %436 = vst [vmem:[%s3 + $0x78] sm:$0xf] %v372
  %437 = vst [vmem:[%s3 + $0x7c] sm:$0xf] %v373
  %438 = vst [vmem:[%s3 + $0x80] sm:$0xf] %v374
  %439 = vst [vmem:[%s3 + $0x84] sm:$0xf] %v375
  %440 = vst [vmem:[%s3 + $0x88] sm:$0xf] %v376
  %441 = vst [vmem:[%s3 + $0x8c] sm:$0xf] %v377
  %442 = vst [vmem:[%s3 + $0x90] sm:$0xf] %v378
  %443 = vst [vmem:[%s3 + $0x94] sm:$0xf] %v379
  %444 = vst [vmem:[%s3 + $0x98] sm:$0xf] %v380
  %445 = vst [vmem:[%s3 + $0x9c] sm:$0xf] %v381
  %446 = vst [vmem:[%s3 + $0xa0] sm:$0xf] %v382
  %447 = vst [vmem:[%s3 + $0xa4] sm:$0xf] %v383
  %448 = vst [vmem:[%s3 + $0xa8] sm:$0xf] %v384
  %449 = vst [vmem:[%s3 + $0xac] sm:$0xf] %v385
  %450 = vst [vmem:[%s3 + $0xb0] sm:$0xf] %v386
  %451 = vst [vmem:[%s3 + $0xb4] sm:$0xf] %v387
  %452 = vst [vmem:[%s3 + $0xb8] sm:$0xf] %v388
  %453 = vst [vmem:[%s3 + $0xbc] sm:$0xf] %v389
  %454 = vst [vmem:[%s3 + $0xc0] sm:$0xf] %v390
  %455 = vst [vmem:[%s3 + $0xc4] sm:$0xf] %v391
  %456 = vst [vmem:[%s3 + $0xc8] sm:$0xf] %v392
  %457 = vst [vmem:[%s3 + $0xcc] sm:$0xf] %v393
  %458 = vst [vmem:[%s3 + $0xd0] sm:$0xf] %v394
  %459 = vst [vmem:[%s3 + $0xd4] sm:$0xf] %v395
  %460 = vst [vmem:[%s3 + $0xd8] sm:$0xf] %v396
  %461 = vst [vmem:[%s3 + $0xdc] sm:$0xf] %v397
  %462 = vst [vmem:[%s3 + $0xe0] sm:$0xf] %v398
  %463 = vst [vmem:[%s3 + $0xe4] sm:$0xf] %v399
  %464 = vst [vmem:[%s3 + $0xe8] sm:$0xf] %v400
  %465 = vst [vmem:[%s3 + $0xec] sm:$0xf] %v401
  %466 = vst [vmem:[%s3 + $0xf0] sm:$0xf] %v402
  %467 = vst [vmem:[%s3 + $0xf4] sm:$0xf] %v403
  %468 = vst [vmem:[%s3 + $0xf8] sm:$0xf] %v404
  %469 = vst [vmem:[%s3 + $0xfc] sm:$0xf] %v405
  // Predicated region
  $region14: #{rrcnn_forward.19} parent=0 // pred_check
    _
  $region15: #{rrcnn_forward.19} parent=0 // pred_check_branch
    %471 = sbr.rel (0) target = $region17
  $region16: #{rrcnn_forward.19} parent=0 // pred_region
    _
  $region17: #{rrcnn_forward.19} parent=0 // pred_fallthru
    _
  // Predicated region
  $region18: #{rrcnn_forward.19} parent=0 // pred_check
    _
  $region19: #{rrcnn_forward.19} parent=0 // pred_check_branch
    %473 = sbr.rel (0) target = $region21
  $region20: #{rrcnn_forward.19} parent=0 // pred_region
    _
  $region21: #{rrcnn_forward.19} parent=0 // pred_fallthru
    _

// kernel: rrcnn_forward.15
$region0: #{rrcnn_forward.15}
  #allocation0 [shape = 'u32[]', space=smem, size = 0x4, offset = 0x4, fixed_abs, tag = 'smem constant byte address 0x4 - core index']
  #allocation1 [shape = 'u32[72,128]{1,0:T(1,128)}', space=vmem, size = 0x9000, scoped, tag = 'internal scratch']
  %s0 = inlined_call_operand.vmem [shape: bf16[512,128], index: 0, kind: input, shape index: {}]
  %s1 = inlined_call_operand.vmem [shape: f32[1,128], index: 1, kind: input, shape index: {}]
  %s2 = inlined_call_operand.vmem [shape: f32[1,128], index: 2, kind: input, shape index: {}]
  %s3 = inlined_call_operand.vmem [shape: bf16[512,128], index: 3, kind: input, shape index: {}]
  %s4 = inlined_call_operand.vmem [shape: bf16[512,128], index: 4, kind: output, shape index: {}]
  %s5 = sld [smem:[#allocation0]]
  $region26: #{rrcnn_forward.15} parent=0
    _
  %s7 = ssub.s32 1, %s5
  %s8 = scalar_select 0, %s7, %s5
  // Predicated region
  $region2: #{rrcnn_forward.15} parent=0 // pred_check
    _
  $region3: #{rrcnn_forward.15} parent=0 // pred_check_branch
    %10 = sbr.rel (0) target = $region5
  $region4: #{rrcnn_forward.15} parent=0 // pred_region
    _
  $region5: #{rrcnn_forward.15} parent=0 // pred_fallthru
    _
  // Predicated region
  $region6: #{rrcnn_forward.15} parent=0 // pred_check
    _
  $region7: #{rrcnn_forward.15} parent=0 // pred_check_branch
    %12 = sbr.rel (0) target = $region9
  $region8: #{rrcnn_forward.15} parent=0 // pred_region
    _
  $region9: #{rrcnn_forward.15} parent=0 // pred_fallthru
    _
  // Predicated region
  $region10: #{rrcnn_forward.15} parent=0 // pred_check
    _
  $region11: #{rrcnn_forward.15} parent=0 // pred_check_branch
    %14 = sbr.rel (0) target = $region13
  $region12: #{rrcnn_forward.15} parent=0 // pred_region
    _
  $region13: #{rrcnn_forward.15} parent=0 // pred_fallthru
    _
  // Predicated region
  $region14: #{rrcnn_forward.15} parent=0 // pred_check
    _
  $region15: #{rrcnn_forward.15} parent=0 // pred_check_branch
    %16 = sbr.rel (0) target = $region17
  $region16: #{rrcnn_forward.15} parent=0 // pred_region
    _
  $region17: #{rrcnn_forward.15} parent=0 // pred_fallthru
    _
  %v17 = vld [vmem:[%s0] sm:$0xf]
  %v18 = vld [vmem:[%s0 + $0x4] sm:$0xf]
  %v19 = vld [vmem:[%s0 + $0x8] sm:$0xf]
  %v20 = vld [vmem:[%s0 + $0xc] sm:$0xf]
  %v21 = vld [vmem:[%s0 + $0x10] sm:$0xf]
  %v22 = vld [vmem:[%s0 + $0x14] sm:$0xf]
  %v23 = vld [vmem:[%s0 + $0x18] sm:$0xf]
  %v24 = vld [vmem:[%s0 + $0x1c] sm:$0xf]
  %v25 = vld [vmem:[%s0 + $0x20] sm:$0xf]
  %v26 = vld [vmem:[%s0 + $0x24] sm:$0xf]
  %v27 = vld [vmem:[%s0 + $0x28] sm:$0xf]
  %v28 = vld [vmem:[%s0 + $0x2c] sm:$0xf]
  %v29 = vld [vmem:[%s0 + $0x30] sm:$0xf]
  %v30 = vld [vmem:[%s0 + $0x34] sm:$0xf]
  %v31 = vld [vmem:[%s0 + $0x38] sm:$0xf]
  %v32 = vld [vmem:[%s0 + $0x3c] sm:$0xf]
  %v33 = vld [vmem:[%s0 + $0x40] sm:$0xf]
  %v34 = vld [vmem:[%s0 + $0x44] sm:$0xf]
  %v35 = vld [vmem:[%s0 + $0x48] sm:$0xf]
  %v36 = vld [vmem:[%s0 + $0x4c] sm:$0xf]
  %v37 = vld [vmem:[%s0 + $0x50] sm:$0xf]
  %v38 = vld [vmem:[%s0 + $0x54] sm:$0xf]
  %v39 = vld [vmem:[%s0 + $0x58] sm:$0xf]
  %v40 = vld [vmem:[%s0 + $0x5c] sm:$0xf]
  %v41 = vld [vmem:[%s0 + $0x60] sm:$0xf]
  %v42 = vld [vmem:[%s0 + $0x64] sm:$0xf]
  %v43 = vld [vmem:[%s0 + $0x68] sm:$0xf]
  %v44 = vld [vmem:[%s0 + $0x6c] sm:$0xf]
  %v45 = vld [vmem:[%s0 + $0x70] sm:$0xf]
  %v46 = vld [vmem:[%s0 + $0x74] sm:$0xf]
  %v47 = vld [vmem:[%s0 + $0x78] sm:$0xf]
  %v48 = vld [vmem:[%s0 + $0x7c] sm:$0xf]
  %v49 = vld [vmem:[%s0 + $0x80] sm:$0xf]
  %v50 = vld [vmem:[%s0 + $0x84] sm:$0xf]
  %v51 = vld [vmem:[%s0 + $0x88] sm:$0xf]
  %v52 = vld [vmem:[%s0 + $0x8c] sm:$0xf]
  %v53 = vld [vmem:[%s0 + $0x90] sm:$0xf]
  %v54 = vld [vmem:[%s0 + $0x94] sm:$0xf]
  %v55 = vld [vmem:[%s0 + $0x98] sm:$0xf]
  %v56 = vld [vmem:[%s0 + $0x9c] sm:$0xf]
  %v57 = vld [vmem:[%s0 + $0xa0] sm:$0xf]
  %v58 = vld [vmem:[%s0 + $0xa4] sm:$0xf]
  %v59 = vld [vmem:[%s0 + $0xa8] sm:$0xf]
  %v60 = vld [vmem:[%s0 + $0xac] sm:$0xf]
  %v61 = vld [vmem:[%s0 + $0xb0] sm:$0xf]
  %v62 = vld [vmem:[%s0 + $0xb4] sm:$0xf]
  %v63 = vld [vmem:[%s0 + $0xb8] sm:$0xf]
  %v64 = vld [vmem:[%s0 + $0xbc] sm:$0xf]
  %v65 = vld [vmem:[%s0 + $0xc0] sm:$0xf]
  %v66 = vld [vmem:[%s0 + $0xc4] sm:$0xf]
  %v67 = vld [vmem:[%s0 + $0xc8] sm:$0xf]
  %v68 = vld [vmem:[%s0 + $0xcc] sm:$0xf]
  %v69 = vld [vmem:[%s0 + $0xd0] sm:$0xf]
  %v70 = vld [vmem:[%s0 + $0xd4] sm:$0xf]
  %v71 = vld [vmem:[%s0 + $0xd8] sm:$0xf]
  %v72 = vld [vmem:[%s0 + $0xdc] sm:$0xf]
  %v73 = vld [vmem:[%s0 + $0xe0] sm:$0xf]
  %v74 = vld [vmem:[%s0 + $0xe4] sm:$0xf]
  %v75 = vld [vmem:[%s0 + $0xe8] sm:$0xf]
  %v76 = vld [vmem:[%s0 + $0xec] sm:$0xf]
  %v77 = vld [vmem:[%s0 + $0xf0] sm:$0xf]
  %v78 = vld [vmem:[%s0 + $0xf4] sm:$0xf]
  %v79 = vld [vmem:[%s0 + $0xf8] sm:$0xf]
  %v80 = vld [vmem:[%s0 + $0xfc] sm:$0xf]
  %v81 = vunpack.c.l.bf16 %v17
  %v82 = vunpack.c.l.bf16 %v18
  %v83 = vunpack.c.l.bf16 %v19
  %v84 = vunpack.c.l.bf16 %v20
  %v85 = vunpack.c.l.bf16 %v21
  %v86 = vunpack.c.l.bf16 %v22
  %v87 = vunpack.c.l.bf16 %v23
  %v88 = vunpack.c.l.bf16 %v24
  %v89 = vunpack.c.l.bf16 %v25
  %v90 = vunpack.c.l.bf16 %v26
  %v91 = vunpack.c.l.bf16 %v27
  %v92 = vunpack.c.l.bf16 %v28
  %v93 = vunpack.c.l.bf16 %v29
  %v94 = vunpack.c.l.bf16 %v30
  %v95 = vunpack.c.l.bf16 %v31
  %v96 = vunpack.c.l.bf16 %v32
  %v97 = vunpack.c.l.bf16 %v33
  %v98 = vunpack.c.l.bf16 %v34
  %v99 = vunpack.c.l.bf16 %v35
  %v100 = vunpack.c.l.bf16 %v36
  %v101 = vunpack.c.l.bf16 %v37
  %v102 = vunpack.c.l.bf16 %v38
  %v103 = vunpack.c.l.bf16 %v39
  %v104 = vunpack.c.l.bf16 %v40
  %v105 = vunpack.c.l.bf16 %v41
  %v106 = vunpack.c.l.bf16 %v42
  %v107 = vunpack.c.l.bf16 %v43
  %v108 = vunpack.c.l.bf16 %v44
  %v109 = vunpack.c.l.bf16 %v45
  %v110 = vunpack.c.l.bf16 %v46
  %v111 = vunpack.c.l.bf16 %v47
  %v112 = vunpack.c.l.bf16 %v48
  %v113 = vunpack.c.l.bf16 %v49
  %v114 = vunpack.c.l.bf16 %v50
  %v115 = vunpack.c.l.bf16 %v51
  %v116 = vunpack.c.l.bf16 %v52
  %v117 = vunpack.c.l.bf16 %v53
  %v118 = vunpack.c.l.bf16 %v54
  %v119 = vunpack.c.l.bf16 %v55
  %v120 = vunpack.c.l.bf16 %v56
  %v121 = vunpack.c.l.bf16 %v57
  %v122 = vunpack.c.l.bf16 %v58
  %v123 = vunpack.c.l.bf16 %v59
  %v124 = vunpack.c.l.bf16 %v60
  %v125 = vunpack.c.l.bf16 %v61
  %v126 = vunpack.c.l.bf16 %v62
  %v127 = vunpack.c.l.bf16 %v63
  %v128 = vunpack.c.l.bf16 %v64
  %v129 = vunpack.c.l.bf16 %v65
  %v130 = vunpack.c.l.bf16 %v66
  %v131 = vunpack.c.l.bf16 %v67
  %v132 = vunpack.c.l.bf16 %v68
  %v133 = vunpack.c.l.bf16 %v69
  %v134 = vunpack.c.l.bf16 %v70
  %v135 = vunpack.c.l.bf16 %v71
  %v136 = vunpack.c.l.bf16 %v72
  %v137 = vunpack.c.l.bf16 %v73
  %v138 = vunpack.c.l.bf16 %v74
  %v139 = vunpack.c.l.bf16 %v75
  %v140 = vunpack.c.l.bf16 %v76
  %v141 = vunpack.c.l.bf16 %v77
  %v142 = vunpack.c.l.bf16 %v78
  %v143 = vunpack.c.l.bf16 %v79
  %v144 = vunpack.c.l.bf16 %v80
  %v145 = vld [vmem:[%s1] sm:$0x1]
  %v147 = vperm.slane %v145, 0
  %v149 = vmul.f32 %v81, %v147
  %v150 = vmul.f32 %v82, %v147
  %v151 = vmul.f32 %v83, %v147
  %v152 = vmul.f32 %v84, %v147
  %v153 = vmul.f32 %v85, %v147
  %v154 = vmul.f32 %v86, %v147
  %v155 = vmul.f32 %v87, %v147
  %v156 = vmul.f32 %v88, %v147
  %v157 = vmul.f32 %v89, %v147
  %v158 = vmul.f32 %v90, %v147
  %v159 = vmul.f32 %v91, %v147
  %v160 = vmul.f32 %v92, %v147
  %v161 = vmul.f32 %v93, %v147
  %v162 = vmul.f32 %v94, %v147
  %v163 = vmul.f32 %v95, %v147
  %v164 = vmul.f32 %v96, %v147
  %v165 = vmul.f32 %v97, %v147
  %v166 = vmul.f32 %v98, %v147
  %v167 = vmul.f32 %v99, %v147
  %v168 = vmul.f32 %v100, %v147
  %v169 = vmul.f32 %v101, %v147
  %v170 = vmul.f32 %v102, %v147
  %v171 = vmul.f32 %v103, %v147
  %v172 = vmul.f32 %v104, %v147
  %v173 = vmul.f32 %v105, %v147
  %v174 = vmul.f32 %v106, %v147
  %v175 = vmul.f32 %v107, %v147
  %v176 = vmul.f32 %v108, %v147
  %v177 = vmul.f32 %v109, %v147
  %v178 = vmul.f32 %v110, %v147
  %v179 = vmul.f32 %v111, %v147
  %v180 = vmul.f32 %v112, %v147
  %v181 = vmul.f32 %v113, %v147
  %v182 = vmul.f32 %v114, %v147
  %v183 = vmul.f32 %v115, %v147
  %v184 = vmul.f32 %v116, %v147
  %v185 = vmul.f32 %v117, %v147
  %v186 = vmul.f32 %v118, %v147
  %v187 = vmul.f32 %v119, %v147
  %v188 = vmul.f32 %v120, %v147
  %v189 = vmul.f32 %v121, %v147
  %v190 = vmul.f32 %v122, %v147
  %v191 = vmul.f32 %v123, %v147
  %v192 = vmul.f32 %v124, %v147
  %v193 = vmul.f32 %v125, %v147
  %v194 = vmul.f32 %v126, %v147
  %v195 = vmul.f32 %v127, %v147
  %v196 = vmul.f32 %v128, %v147
  %v197 = vmul.f32 %v129, %v147
  %v198 = vmul.f32 %v130, %v147
  %v199 = vmul.f32 %v131, %v147
  %v200 = vmul.f32 %v132, %v147
  %v201 = vmul.f32 %v133, %v147
  %v202 = vmul.f32 %v134, %v147
  %v203 = vmul.f32 %v135, %v147
  %v204 = vmul.f32 %v136, %v147
  %v205 = vmul.f32 %v137, %v147
  %v206 = vmul.f32 %v138, %v147
  %v207 = vmul.f32 %v139, %v147
  %v208 = vmul.f32 %v140, %v147
  %v209 = vmul.f32 %v141, %v147
  %v210 = vmul.f32 %v142, %v147
  %v211 = vmul.f32 %v143, %v147
  %v212 = vmul.f32 %v144, %v147
  %v213 = vld [vmem:[%s2] sm:$0x1]
  %v215 = vperm.slane %v213, 0
  %v217 = vadd.f32 %v149, %v215
  %v218 = vadd.f32 %v150, %v215
  %v219 = vadd.f32 %v151, %v215
  %v220 = vadd.f32 %v152, %v215
  %v221 = vadd.f32 %v153, %v215
  %v222 = vadd.f32 %v154, %v215
  %v223 = vadd.f32 %v155, %v215
  %v224 = vadd.f32 %v156, %v215
  %v225 = vadd.f32 %v157, %v215
  %v226 = vadd.f32 %v158, %v215
  %v227 = vadd.f32 %v159, %v215
  %v228 = vadd.f32 %v160, %v215
  %v229 = vadd.f32 %v161, %v215
  %v230 = vadd.f32 %v162, %v215
  %v231 = vadd.f32 %v163, %v215
  %v232 = vadd.f32 %v164, %v215
  %v233 = vadd.f32 %v165, %v215
  %v234 = vadd.f32 %v166, %v215
  %v235 = vadd.f32 %v167, %v215
  %v236 = vadd.f32 %v168, %v215
  %v237 = vadd.f32 %v169, %v215
  %v238 = vadd.f32 %v170, %v215
  %v239 = vadd.f32 %v171, %v215
  %v240 = vadd.f32 %v172, %v215
  %v241 = vadd.f32 %v173, %v215
  %v242 = vadd.f32 %v174, %v215
  %v243 = vadd.f32 %v175, %v215
  %v244 = vadd.f32 %v176, %v215
  %v245 = vadd.f32 %v177, %v215
  %v246 = vadd.f32 %v178, %v215
  %v247 = vadd.f32 %v179, %v215
  %v248 = vadd.f32 %v180, %v215
  %v249 = vadd.f32 %v181, %v215
  %v250 = vadd.f32 %v182, %v215
  %v251 = vadd.f32 %v183, %v215
  %v252 = vadd.f32 %v184, %v215
  %v253 = vadd.f32 %v185, %v215
  %v254 = vadd.f32 %v186, %v215
  %v255 = vadd.f32 %v187, %v215
  %v256 = vadd.f32 %v188, %v215
  %v257 = vadd.f32 %v189, %v215
  %v258 = vadd.f32 %v190, %v215
  %v259 = vadd.f32 %v191, %v215
  %v260 = vadd.f32 %v192, %v215
  %v261 = vadd.f32 %v193, %v215
  %v262 = vadd.f32 %v194, %v215
  %v263 = vadd.f32 %v195, %v215
  %v264 = vadd.f32 %v196, %v215
  %v265 = vadd.f32 %v197, %v215
  %v266 = vadd.f32 %v198, %v215
  %v267 = vadd.f32 %v199, %v215
  %v268 = vadd.f32 %v200, %v215
  %v269 = vadd.f32 %v201, %v215
  %v270 = vadd.f32 %v202, %v215
  %v271 = vadd.f32 %v203, %v215
  %v272 = vadd.f32 %v204, %v215
  %v273 = vadd.f32 %v205, %v215
  %v274 = vadd.f32 %v206, %v215
  %v275 = vadd.f32 %v207, %v215
  %v276 = vadd.f32 %v208, %v215
  %v277 = vadd.f32 %v209, %v215
  %v278 = vadd.f32 %v210, %v215
  %v279 = vadd.f32 %v211, %v215
  %v280 = vadd.f32 %v212, %v215
  %v281 = vmax.f32 %v217, 0.0
  %v282 = vmax.f32 %v218, 0.0
  %v283 = vmax.f32 %v219, 0.0
  %v284 = vmax.f32 %v220, 0.0
  %v285 = vmax.f32 %v221, 0.0
  %v286 = vmax.f32 %v222, 0.0
  %v287 = vmax.f32 %v223, 0.0
  %v288 = vmax.f32 %v224, 0.0
  %v289 = vmax.f32 %v225, 0.0
  %v290 = vmax.f32 %v226, 0.0
  %v291 = vmax.f32 %v227, 0.0
  %v292 = vmax.f32 %v228, 0.0
  %v293 = vmax.f32 %v229, 0.0
  %v294 = vmax.f32 %v230, 0.0
  %v295 = vmax.f32 %v231, 0.0
  %v296 = vmax.f32 %v232, 0.0
  %v297 = vmax.f32 %v233, 0.0
  %v298 = vmax.f32 %v234, 0.0
  %v299 = vmax.f32 %v235, 0.0
  %v300 = vmax.f32 %v236, 0.0
  %v301 = vmax.f32 %v237, 0.0
  %v302 = vmax.f32 %v238, 0.0
  %v303 = vmax.f32 %v239, 0.0
  %v304 = vmax.f32 %v240, 0.0
  %v305 = vmax.f32 %v241, 0.0
  %v306 = vmax.f32 %v242, 0.0
  %v307 = vmax.f32 %v243, 0.0
  %v308 = vmax.f32 %v244, 0.0
  %v309 = vmax.f32 %v245, 0.0
  %v310 = vmax.f32 %v246, 0.0
  %v311 = vmax.f32 %v247, 0.0
  %v312 = vmax.f32 %v248, 0.0
  %v313 = vmax.f32 %v249, 0.0
  %v314 = vmax.f32 %v250, 0.0
  %v315 = vmax.f32 %v251, 0.0
  %v316 = vmax.f32 %v252, 0.0
  %v317 = vmax.f32 %v253, 0.0
  %v318 = vmax.f32 %v254, 0.0
  %v319 = vmax.f32 %v255, 0.0
  %v320 = vmax.f32 %v256, 0.0
  %v321 = vmax.f32 %v257, 0.0
  %v322 = vmax.f32 %v258, 0.0
  %v323 = vmax.f32 %v259, 0.0
  %v324 = vmax.f32 %v260, 0.0
  %v325 = vmax.f32 %v261, 0.0
  %v326 = vmax.f32 %v262, 0.0
  %v327 = vmax.f32 %v263, 0.0
  %v328 = vmax.f32 %v264, 0.0
  %v329 = vmax.f32 %v265, 0.0
  %v330 = vmax.f32 %v266, 0.0
  %v331 = vmax.f32 %v267, 0.0
  %v332 = vmax.f32 %v268, 0.0
  %v333 = vmax.f32 %v269, 0.0
  %v334 = vmax.f32 %v270, 0.0
  %v335 = vmax.f32 %v271, 0.0
  %v336 = vmax.f32 %v272, 0.0
  %v337 = vmax.f32 %v273, 0.0
  %v338 = vmax.f32 %v274, 0.0
  %v339 = vmax.f32 %v275, 0.0
  %v340 = vmax.f32 %v276, 0.0
  %v341 = vmax.f32 %v277, 0.0
  %v342 = vmax.f32 %v278, 0.0
  %v343 = vmax.f32 %v279, 0.0
  %v344 = vmax.f32 %v280, 0.0
  %v345 = vld [vmem:[%s3] sm:$0xf]
  %v346 = vld [vmem:[%s3 + $0x4] sm:$0xf]
  %v347 = vld [vmem:[%s3 + $0x8] sm:$0xf]
  %v348 = vld [vmem:[%s3 + $0xc] sm:$0xf]
  %v349 = vld [vmem:[%s3 + $0x10] sm:$0xf]
  %v350 = vld [vmem:[%s3 + $0x14] sm:$0xf]
  %v351 = vld [vmem:[%s3 + $0x18] sm:$0xf]
  %v352 = vld [vmem:[%s3 + $0x1c] sm:$0xf]
  %v353 = vld [vmem:[%s3 + $0x20] sm:$0xf]
  %v354 = vld [vmem:[%s3 + $0x24] sm:$0xf]
  %v355 = vld [vmem:[%s3 + $0x28] sm:$0xf]
  %v356 = vld [vmem:[%s3 + $0x2c] sm:$0xf]
  %v357 = vld [vmem:[%s3 + $0x30] sm:$0xf]
  %v358 = vld [vmem:[%s3 + $0x34] sm:$0xf]
  %v359 = vld [vmem:[%s3 + $0x38] sm:$0xf]
  %v360 = vld [vmem:[%s3 + $0x3c] sm:$0xf]
  %v361 = vld [vmem:[%s3 + $0x40] sm:$0xf]
  %v362 = vld [vmem:[%s3 + $0x44] sm:$0xf]
  %v363 = vld [vmem:[%s3 + $0x48] sm:$0xf]
  %v364 = vld [vmem:[%s3 + $0x4c] sm:$0xf]
  %v365 = vld [vmem:[%s3 + $0x50] sm:$0xf]
  %v366 = vld [vmem:[%s3 + $0x54] sm:$0xf]
  %v367 = vld [vmem:[%s3 + $0x58] sm:$0xf]
  %v368 = vld [vmem:[%s3 + $0x5c] sm:$0xf]
  %v369 = vld [vmem:[%s3 + $0x60] sm:$0xf]
  %v370 = vld [vmem:[%s3 + $0x64] sm:$0xf]
  %v371 = vld [vmem:[%s3 + $0x68] sm:$0xf]
  %v372 = vld [vmem:[%s3 + $0x6c] sm:$0xf]
  %v373 = vld [vmem:[%s3 + $0x70] sm:$0xf]
  %v374 = vld [vmem:[%s3 + $0x74] sm:$0xf]
  %v375 = vld [vmem:[%s3 + $0x78] sm:$0xf]
  %v376 = vld [vmem:[%s3 + $0x7c] sm:$0xf]
  %v377 = vld [vmem:[%s3 + $0x80] sm:$0xf]
  %v378 = vld [vmem:[%s3 + $0x84] sm:$0xf]
  %v379 = vld [vmem:[%s3 + $0x88] sm:$0xf]
  %v380 = vld [vmem:[%s3 + $0x8c] sm:$0xf]
  %v381 = vld [vmem:[%s3 + $0x90] sm:$0xf]
  %v382 = vld [vmem:[%s3 + $0x94] sm:$0xf]
  %v383 = vld [vmem:[%s3 + $0x98] sm:$0xf]
  %v384 = vld [vmem:[%s3 + $0x9c] sm:$0xf]
  %v385 = vld [vmem:[%s3 + $0xa0] sm:$0xf]
  %v386 = vld [vmem:[%s3 + $0xa4] sm:$0xf]
  %v387 = vld [vmem:[%s3 + $0xa8] sm:$0xf]
  %v388 = vld [vmem:[%s3 + $0xac] sm:$0xf]
  %v389 = vld [vmem:[%s3 + $0xb0] sm:$0xf]
  %v390 = vld [vmem:[%s3 + $0xb4] sm:$0xf]
  %v391 = vld [vmem:[%s3 + $0xb8] sm:$0xf]
  %v392 = vld [vmem:[%s3 + $0xbc] sm:$0xf]
  %v393 = vld [vmem:[%s3 + $0xc0] sm:$0xf]
  %v394 = vld [vmem:[%s3 + $0xc4] sm:$0xf]
  %v395 = vld [vmem:[%s3 + $0xc8] sm:$0xf]
  %v396 = vld [vmem:[%s3 + $0xcc] sm:$0xf]
  %v397 = vld [vmem:[%s3 + $0xd0] sm:$0xf]
  %v398 = vld [vmem:[%s3 + $0xd4] sm:$0xf]
  %v399 = vld [vmem:[%s3 + $0xd8] sm:$0xf]
  %v400 = vld [vmem:[%s3 + $0xdc] sm:$0xf]
  %v401 = vld [vmem:[%s3 + $0xe0] sm:$0xf]
  %v402 = vld [vmem:[%s3 + $0xe4] sm:$0xf]
  %v403 = vld [vmem:[%s3 + $0xe8] sm:$0xf]
  %v404 = vld [vmem:[%s3 + $0xec] sm:$0xf]
  %v405 = vld [vmem:[%s3 + $0xf0] sm:$0xf]
  %v406 = vld [vmem:[%s3 + $0xf4] sm:$0xf]
  %v407 = vld [vmem:[%s3 + $0xf8] sm:$0xf]
  %v408 = vld [vmem:[%s3 + $0xfc] sm:$0xf]
  %v409 = vunpack.c.l.bf16 %v345
  %v410 = vunpack.c.l.bf16 %v346
  %v411 = vunpack.c.l.bf16 %v347
  %v412 = vunpack.c.l.bf16 %v348
  %v413 = vunpack.c.l.bf16 %v349
  %v414 = vunpack.c.l.bf16 %v350
  %v415 = vunpack.c.l.bf16 %v351
  %v416 = vunpack.c.l.bf16 %v352
  %v417 = vunpack.c.l.bf16 %v353
  %v418 = vunpack.c.l.bf16 %v354
  %v419 = vunpack.c.l.bf16 %v355
  %v420 = vunpack.c.l.bf16 %v356
  %v421 = vunpack.c.l.bf16 %v357
  %v422 = vunpack.c.l.bf16 %v358
  %v423 = vunpack.c.l.bf16 %v359
  %v424 = vunpack.c.l.bf16 %v360
  %v425 = vunpack.c.l.bf16 %v361
  %v426 = vunpack.c.l.bf16 %v362
  %v427 = vunpack.c.l.bf16 %v363
  %v428 = vunpack.c.l.bf16 %v364
  %v429 = vunpack.c.l.bf16 %v365
  %v430 = vunpack.c.l.bf16 %v366
  %v431 = vunpack.c.l.bf16 %v367
  %v432 = vunpack.c.l.bf16 %v368
  %v433 = vunpack.c.l.bf16 %v369
  %v434 = vunpack.c.l.bf16 %v370
  %v435 = vunpack.c.l.bf16 %v371
  %v436 = vunpack.c.l.bf16 %v372
  %v437 = vunpack.c.l.bf16 %v373
  %v438 = vunpack.c.l.bf16 %v374
  %v439 = vunpack.c.l.bf16 %v375
  %v440 = vunpack.c.l.bf16 %v376
  %v441 = vunpack.c.l.bf16 %v377
  %v442 = vunpack.c.l.bf16 %v378
  %v443 = vunpack.c.l.bf16 %v379
  %v444 = vunpack.c.l.bf16 %v380
  %v445 = vunpack.c.l.bf16 %v381
  %v446 = vunpack.c.l.bf16 %v382
  %v447 = vunpack.c.l.bf16 %v383
  %v448 = vunpack.c.l.bf16 %v384
  %v449 = vunpack.c.l.bf16 %v385
  %v450 = vunpack.c.l.bf16 %v386
  %v451 = vunpack.c.l.bf16 %v387
  %v452 = vunpack.c.l.bf16 %v388
  %v453 = vunpack.c.l.bf16 %v389
  %v454 = vunpack.c.l.bf16 %v390
  %v455 = vunpack.c.l.bf16 %v391
  %v456 = vunpack.c.l.bf16 %v392
  %v457 = vunpack.c.l.bf16 %v393
  %v458 = vunpack.c.l.bf16 %v394
  %v459 = vunpack.c.l.bf16 %v395
  %v460 = vunpack.c.l.bf16 %v396
  %v461 = vunpack.c.l.bf16 %v397
  %v462 = vunpack.c.l.bf16 %v398
  %v463 = vunpack.c.l.bf16 %v399
  %v464 = vunpack.c.l.bf16 %v400
  %v465 = vunpack.c.l.bf16 %v401
  %v466 = vunpack.c.l.bf16 %v402
  %v467 = vunpack.c.l.bf16 %v403
  %v468 = vunpack.c.l.bf16 %v404
  %v469 = vunpack.c.l.bf16 %v405
  %v470 = vunpack.c.l.bf16 %v406
  %v471 = vunpack.c.l.bf16 %v407
  %v472 = vunpack.c.l.bf16 %v408
  %v473 = vadd.f32 %v281, %v409
  %v474 = vadd.f32 %v282, %v410
  %v475 = vadd.f32 %v283, %v411
  %v476 = vadd.f32 %v284, %v412
  %v477 = vadd.f32 %v285, %v413
  %v478 = vadd.f32 %v286, %v414
  %v479 = vadd.f32 %v287, %v415
  %v480 = vadd.f32 %v288, %v416
  %v481 = vadd.f32 %v289, %v417
  %v482 = vadd.f32 %v290, %v418
  %v483 = vadd.f32 %v291, %v419
  %v484 = vadd.f32 %v292, %v420
  %v485 = vadd.f32 %v293, %v421
  %v486 = vadd.f32 %v294, %v422
  %v487 = vadd.f32 %v295, %v423
  %v488 = vadd.f32 %v296, %v424
  %v489 = vadd.f32 %v297, %v425
  %v490 = vadd.f32 %v298, %v426
  %v491 = vadd.f32 %v299, %v427
  %v492 = vadd.f32 %v300, %v428
  %v493 = vadd.f32 %v301, %v429
  %v494 = vadd.f32 %v302, %v430
  %v495 = vadd.f32 %v303, %v431
  %v496 = vadd.f32 %v304, %v432
  %v497 = vadd.f32 %v305, %v433
  %v498 = vadd.f32 %v306, %v434
  %v499 = vadd.f32 %v307, %v435
  %v500 = vadd.f32 %v308, %v436
  %v501 = vadd.f32 %v309, %v437
  %v502 = vadd.f32 %v310, %v438
  %v503 = vadd.f32 %v311, %v439
  %v504 = vadd.f32 %v312, %v440
  %v505 = vadd.f32 %v313, %v441
  %v506 = vadd.f32 %v314, %v442
  %v507 = vadd.f32 %v315, %v443
  %v508 = vadd.f32 %v316, %v444
  %v509 = vadd.f32 %v317, %v445
  %v510 = vadd.f32 %v318, %v446
  %v511 = vadd.f32 %v319, %v447
  %v512 = vadd.f32 %v320, %v448
  %v513 = vadd.f32 %v321, %v449
  %v514 = vadd.f32 %v322, %v450
  %v515 = vadd.f32 %v323, %v451
  %v516 = vadd.f32 %v324, %v452
  %v517 = vadd.f32 %v325, %v453
  %v518 = vadd.f32 %v326, %v454
  %v519 = vadd.f32 %v327, %v455
  %v520 = vadd.f32 %v328, %v456
  %v521 = vadd.f32 %v329, %v457
  %v522 = vadd.f32 %v330, %v458
  %v523 = vadd.f32 %v331, %v459
  %v524 = vadd.f32 %v332, %v460
  %v525 = vadd.f32 %v333, %v461
  %v526 = vadd.f32 %v334, %v462
  %v527 = vadd.f32 %v335, %v463
  %v528 = vadd.f32 %v336, %v464
  %v529 = vadd.f32 %v337, %v465
  %v530 = vadd.f32 %v338, %v466
  %v531 = vadd.f32 %v339, %v467
  %v532 = vadd.f32 %v340, %v468
  %v533 = vadd.f32 %v341, %v469
  %v534 = vadd.f32 %v342, %v470
  %v535 = vadd.f32 %v343, %v471
  %v536 = vadd.f32 %v344, %v472
  %v537 = vpack.c.bf16 %v473, %v473
  %v538 = vpack.c.bf16 %v474, %v474
  %v539 = vpack.c.bf16 %v475, %v475
  %v540 = vpack.c.bf16 %v476, %v476
  %v541 = vpack.c.bf16 %v477, %v477
  %v542 = vpack.c.bf16 %v478, %v478
  %v543 = vpack.c.bf16 %v479, %v479
  %v544 = vpack.c.bf16 %v480, %v480
  %v545 = vpack.c.bf16 %v481, %v481
  %v546 = vpack.c.bf16 %v482, %v482
  %v547 = vpack.c.bf16 %v483, %v483
  %v548 = vpack.c.bf16 %v484, %v484
  %v549 = vpack.c.bf16 %v485, %v485
  %v550 = vpack.c.bf16 %v486, %v486
  %v551 = vpack.c.bf16 %v487, %v487
  %v552 = vpack.c.bf16 %v488, %v488
  %v553 = vpack.c.bf16 %v489, %v489
  %v554 = vpack.c.bf16 %v490, %v490
  %v555 = vpack.c.bf16 %v491, %v491
  %v556 = vpack.c.bf16 %v492, %v492
  %v557 = vpack.c.bf16 %v493, %v493
  %v558 = vpack.c.bf16 %v494, %v494
  %v559 = vpack.c.bf16 %v495, %v495
  %v560 = vpack.c.bf16 %v496, %v496
  %v561 = vpack.c.bf16 %v497, %v497
  %v562 = vpack.c.bf16 %v498, %v498
  %v563 = vpack.c.bf16 %v499, %v499
  %v564 = vpack.c.bf16 %v500, %v500
  %v565 = vpack.c.bf16 %v501, %v501
  %v566 = vpack.c.bf16 %v502, %v502
  %v567 = vpack.c.bf16 %v503, %v503
  %v568 = vpack.c.bf16 %v504, %v504
  %v569 = vpack.c.bf16 %v505, %v505
  %v570 = vpack.c.bf16 %v506, %v506
  %v571 = vpack.c.bf16 %v507, %v507
  %v572 = vpack.c.bf16 %v508, %v508
  %v573 = vpack.c.bf16 %v509, %v509
  %v574 = vpack.c.bf16 %v510, %v510
  %v575 = vpack.c.bf16 %v511, %v511
  %v576 = vpack.c.bf16 %v512, %v512
  %v577 = vpack.c.bf16 %v513, %v513
  %v578 = vpack.c.bf16 %v514, %v514
  %v579 = vpack.c.bf16 %v515, %v515
  %v580 = vpack.c.bf16 %v516, %v516
  %v581 = vpack.c.bf16 %v517, %v517
  %v582 = vpack.c.bf16 %v518, %v518
  %v583 = vpack.c.bf16 %v519, %v519
  %v584 = vpack.c.bf16 %v520, %v520
  %v585 = vpack.c.bf16 %v521, %v521
  %v586 = vpack.c.bf16 %v522, %v522
  %v587 = vpack.c.bf16 %v523, %v523
  %v588 = vpack.c.bf16 %v524, %v524
  %v589 = vpack.c.bf16 %v525, %v525
  %v590 = vpack.c.bf16 %v526, %v526
  %v591 = vpack.c.bf16 %v527, %v527
  %v592 = vpack.c.bf16 %v528, %v528
  %v593 = vpack.c.bf16 %v529, %v529
  %v594 = vpack.c.bf16 %v530, %v530
  %v595 = vpack.c.bf16 %v531, %v531
  %v596 = vpack.c.bf16 %v532, %v532
  %v597 = vpack.c.bf16 %v533, %v533
  %v598 = vpack.c.bf16 %v534, %v534
  %v599 = vpack.c.bf16 %v535, %v535
  %v600 = vpack.c.bf16 %v536, %v536
  %601 = vst [vmem:[%s4] sm:$0xf] %v537
  %602 = vst [vmem:[%s4 + $0x4] sm:$0xf] %v538
  %603 = vst [vmem:[%s4 + $0x8] sm:$0xf] %v539
  %604 = vst [vmem:[%s4 + $0xc] sm:$0xf] %v540
  %605 = vst [vmem:[%s4 + $0x10] sm:$0xf] %v541
  %606 = vst [vmem:[%s4 + $0x14] sm:$0xf] %v542
  %607 = vst [vmem:[%s4 + $0x18] sm:$0xf] %v543
  %608 = vst [vmem:[%s4 + $0x1c] sm:$0xf] %v544
  %609 = vst [vmem:[%s4 + $0x20] sm:$0xf] %v545
  %610 = vst [vmem:[%s4 + $0x24] sm:$0xf] %v546
  %611 = vst [vmem:[%s4 + $0x28] sm:$0xf] %v547
  %612 = vst [vmem:[%s4 + $0x2c] sm:$0xf] %v548
  %613 = vst [vmem:[%s4 + $0x30] sm:$0xf] %v549
  %614 = vst [vmem:[%s4 + $0x34] sm:$0xf] %v550
  %615 = vst [vmem:[%s4 + $0x38] sm:$0xf] %v551
  %616 = vst [vmem:[%s4 + $0x3c] sm:$0xf] %v552
  %617 = vst [vmem:[%s4 + $0x40] sm:$0xf] %v553
  %618 = vst [vmem:[%s4 + $0x44] sm:$0xf] %v554
  %619 = vst [vmem:[%s4 + $0x48] sm:$0xf] %v555
  %620 = vst [vmem:[%s4 + $0x4c] sm:$0xf] %v556
  %621 = vst [vmem:[%s4 + $0x50] sm:$0xf] %v557
  %622 = vst [vmem:[%s4 + $0x54] sm:$0xf] %v558
  %623 = vst [vmem:[%s4 + $0x58] sm:$0xf] %v559
  %624 = vst [vmem:[%s4 + $0x5c] sm:$0xf] %v560
  %625 = vst [vmem:[%s4 + $0x60] sm:$0xf] %v561
  %626 = vst [vmem:[%s4 + $0x64] sm:$0xf] %v562
  %627 = vst [vmem:[%s4 + $0x68] sm:$0xf] %v563
  %628 = vst [vmem:[%s4 + $0x6c] sm:$0xf] %v564
  %629 = vst [vmem:[%s4 + $0x70] sm:$0xf] %v565
  %630 = vst [vmem:[%s4 + $0x74] sm:$0xf] %v566
  %631 = vst [vmem:[%s4 + $0x78] sm:$0xf] %v567
  %632 = vst [vmem:[%s4 + $0x7c] sm:$0xf] %v568
  %633 = vst [vmem:[%s4 + $0x80] sm:$0xf] %v569
  %634 = vst [vmem:[%s4 + $0x84] sm:$0xf] %v570
  %635 = vst [vmem:[%s4 + $0x88] sm:$0xf] %v571
  %636 = vst [vmem:[%s4 + $0x8c] sm:$0xf] %v572
  %637 = vst [vmem:[%s4 + $0x90] sm:$0xf] %v573
  %638 = vst [vmem:[%s4 + $0x94] sm:$0xf] %v574
  %639 = vst [vmem:[%s4 + $0x98] sm:$0xf] %v575
  %640 = vst [vmem:[%s4 + $0x9c] sm:$0xf] %v576
  %641 = vst [vmem:[%s4 + $0xa0] sm:$0xf] %v577
  %642 = vst [vmem:[%s4 + $0xa4] sm:$0xf] %v578
  %643 = vst [vmem:[%s4 + $0xa8] sm:$0xf] %v579
  %644 = vst [vmem:[%s4 + $0xac] sm:$0xf] %v580
  %645 = vst [vmem:[%s4 + $0xb0] sm:$0xf] %v581
  %646 = vst [vmem:[%s4 + $0xb4] sm:$0xf] %v582
  %647 = vst [vmem:[%s4 + $0xb8] sm:$0xf] %v583
  %648 = vst [vmem:[%s4 + $0xbc] sm:$0xf] %v584
  %649 = vst [vmem:[%s4 + $0xc0] sm:$0xf] %v585
  %650 = vst [vmem:[%s4 + $0xc4] sm:$0xf] %v586
  %651 = vst [vmem:[%s4 + $0xc8] sm:$0xf] %v587
  %652 = vst [vmem:[%s4 + $0xcc] sm:$0xf] %v588
  %653 = vst [vmem:[%s4 + $0xd0] sm:$0xf] %v589
  %654 = vst [vmem:[%s4 + $0xd4] sm:$0xf] %v590
  %655 = vst [vmem:[%s4 + $0xd8] sm:$0xf] %v591
  %656 = vst [vmem:[%s4 + $0xdc] sm:$0xf] %v592
  %657 = vst [vmem:[%s4 + $0xe0] sm:$0xf] %v593
  %658 = vst [vmem:[%s4 + $0xe4] sm:$0xf] %v594
  %659 = vst [vmem:[%s4 + $0xe8] sm:$0xf] %v595
  %660 = vst [vmem:[%s4 + $0xec] sm:$0xf] %v596
  %661 = vst [vmem:[%s4 + $0xf0] sm:$0xf] %v597
  %662 = vst [vmem:[%s4 + $0xf4] sm:$0xf] %v598
  %663 = vst [vmem:[%s4 + $0xf8] sm:$0xf] %v599
  %664 = vst [vmem:[%s4 + $0xfc] sm:$0xf] %v600
  // Predicated region
  $region18: #{rrcnn_forward.15} parent=0 // pred_check
    _
  $region19: #{rrcnn_forward.15} parent=0 // pred_check_branch
    %666 = sbr.rel (0) target = $region21
  $region20: #{rrcnn_forward.15} parent=0 // pred_region
    _
  $region21: #{rrcnn_forward.15} parent=0 // pred_fallthru
    _
  // Predicated region
  $region22: #{rrcnn_forward.15} parent=0 // pred_check
    _
  $region23: #{rrcnn_forward.15} parent=0 // pred_check_branch
    %668 = sbr.rel (0) target = $region25
  $region24: #{rrcnn_forward.15} parent=0 // pred_region
    _
  $region25: #{rrcnn_forward.15} parent=0 // pred_fallthru
    _

// kernel: rrcnn_forward.14
$region0: #{rrcnn_forward.14}
  #allocation0 [shape = 'u32[]', space=smem, size = 0x4, offset = 0x4, fixed_abs, tag = 'smem constant byte address 0x4 - core index']
  #allocation1 [shape = 'u32[72,128]{1,0:T(1,128)}', space=vmem, size = 0x9000, scoped, tag = 'internal scratch']
  %s0 = inlined_call_operand.vmem [shape: bf16[2,1,18,18,128], index: 0, kind: input, shape index: {}]
  %s1 = inlined_call_operand.vmem [shape: bf16[3,384,128], index: 1, kind: input, shape index: {}]
  %s2 = inlined_call_operand.vmem [shape: bf16[2,1,16,16,128], index: 2, kind: output, shape index: {0}]
  %s3 = inlined_call_operand.vmem [shape: f32[2,1,2,128], index: 3, kind: output, shape index: {1}]
  %4 = xla_tuple %s2, %s3
  %s5 = sld [smem:[#allocation0]]
  $region49: #{rrcnn_forward.14} parent=0
    _
  %s7 = ssub.s32 1, %s5
  %s8 = scalar_select 0, %s7, %s5
  loop: start=0, step=1, limit=4
  $region2: #{rrcnn_forward.14} parent=0 // loop_pre_header
    _
  $region3: #{rrcnn_forward.14} parent=0 // loop_header
    %s10 = sphi 0, %s14
    %p11 = scmp.ge.s32.totalorder %s10, 4
    %s17 = sphi 0, %s36
    %s18 = sphi 0, %s32
    %s19 = sphi 0, %s28
    %s20 = sphi 0, %s17
    %s21 = sphi 0, %s18
    %s22 = sphi 0, %s19
    %s23 = sphi 0, %s20
    %s24 = sphi 0, %s21
    %s25 = sphi 0, %s22
    %s41 = sphi 0, %s43
    %s44 = sphi 0, %s41
    %s45 = sphi 0, %s44
    %s61 = sphi 0, %s45
    %s67 = sphi 0, %s69
    %s70 = sphi 0, %s67
    %s71 = sphi 0, %s70
    %s87 = sphi 0, %s71
    %s97 = sphi 0, %s99
    %s100 = sphi 0, %s97
    %s101 = sphi 0, %s100
    %s117 = sphi 0, %s101
    %s127 = sphi 0, %s129
    %s130 = sphi 0, %s127
    %s131 = sphi 0, %s130
    %s147 = sphi 0, %s131
  $region4: #{rrcnn_forward.14} parent=0 // loop_header_branch
    %13 = sbr.rel (%p11) target = $region8
  $region5: #{rrcnn_forward.14} parent=0 // loop_body
    %s15 = ssub.s32 %s10, 1
    %s16 = ssub.s32 %s10, 2
    %s26 = sadd.s32 1, %s19
    %p27 = scmp.ge.s32.totalorder %s26, 1
    %s28 = scalar_select %p27, 0, %s26
    %s29 = sadd.s32 1, %s18
    %s30 = scalar_select %p27, %s29, %s18
    %p31 = scmp.ge.s32.totalorder %s30, 2
    %s32 = scalar_select %p31, 0, %s30
    %s33 = sadd.s32 1, %s17
    %s34 = scalar_select %p31, %s33, %s17
    %p35 = scmp.ge.s32.totalorder %s34, 1
    %s36 = scalar_select %p35, 0, %s34
    %s37 = ssub.s32 %s18, %s32
    %s38 = ssub.s32 %s19, %s28
    %s39 = sor.u32 %s37, %s38
    %p40 = scmp.eq.s32.totalorder %s39, 0
    %s42 = sadd.s32 %s41, 1
    %s43 = scalar_select %p40, %s41, %s42
    %p46 = pneg %p40
    %p47 = scmp.eq.s32.totalorder %s10, 1
    %p48 = por %p46, %p47
    %p49 = scmp.ne.s32.totalorder %s41, %s44
    %p50 = scmp.eq.s32.totalorder %s10, 0
    %p51 = por %p49, %p50
    %p52 = scmp.ne.s32.totalorder %s41, %s44
    %p53 = scmp.eq.s32.totalorder %s15, 1
    %p54 = por %p52, %p53
    %p55 = scmp.ne.s32.totalorder %s44, %s45
    %p56 = scmp.eq.s32.totalorder %s15, 0
    %p57 = por %p55, %p56
    %p58 = scmp.ne.s32.totalorder %s44, %s45
    %p59 = scmp.eq.s32.totalorder %s16, 1
    %p60 = por %p58, %p59
    %p62 = scmp.ne.s32.totalorder %s45, %s61
    %p63 = scmp.eq.s32.totalorder %s16, 0
    %p64 = por %p62, %p63
    %s65 = ssub.s32 %s17, %s36
    %p66 = scmp.eq.s32.totalorder %s65, 0
    %s68 = sadd.s32 %s67, 1
    %s69 = scalar_select %p66, %s67, %s68
    %p72 = pneg %p66
    %p73 = scmp.eq.s32.totalorder %s10, 1
    %p74 = por %p72, %p73
    %p75 = scmp.ne.s32.totalorder %s67, %s70
    %p76 = scmp.eq.s32.totalorder %s10, 0
    %p77 = por %p75, %p76
    %p78 = scmp.ne.s32.totalorder %s67, %s70
    %p79 = scmp.eq.s32.totalorder %s15, 1
    %p80 = por %p78, %p79
    %p81 = scmp.ne.s32.totalorder %s70, %s71
    %p82 = scmp.eq.s32.totalorder %s15, 0
    %p83 = por %p81, %p82
    %p84 = scmp.ne.s32.totalorder %s70, %s71
    %p85 = scmp.eq.s32.totalorder %s16, 1
    %p86 = por %p84, %p85
    %p88 = scmp.ne.s32.totalorder %s71, %s87
    %p89 = scmp.eq.s32.totalorder %s16, 0
    %p90 = por %p88, %p89
    %s91 = ssub.s32 %s18, %s32
    %s92 = ssub.s32 %s19, %s28
    %s93 = sor.u32 %s91, %s92
    %s94 = ssub.s32 %s17, %s36
    %s95 = sor.u32 %s93, %s94
    %p96 = scmp.eq.s32.totalorder %s95, 0
    %s98 = sadd.s32 %s97, 1
    %s99 = scalar_select %p96, %s97, %s98
    %p102 = pneg %p96
    %p103 = scmp.eq.s32.totalorder %s10, 1
    %p104 = por %p102, %p103
    %p105 = scmp.ne.s32.totalorder %s97, %s100
    %p106 = scmp.eq.s32.totalorder %s10, 0
    %p107 = por %p105, %p106
    %p108 = scmp.ne.s32.totalorder %s97, %s100
    %p109 = scmp.eq.s32.totalorder %s15, 1
    %p110 = por %p108, %p109
    %p111 = scmp.ne.s32.totalorder %s100, %s101
    %p112 = scmp.eq.s32.totalorder %s15, 0
    %p113 = por %p111, %p112
    %p114 = scmp.ne.s32.totalorder %s100, %s101
    %p115 = scmp.eq.s32.totalorder %s16, 1
    %p116 = por %p114, %p115
    %p118 = scmp.ne.s32.totalorder %s101, %s117
    %p119 = scmp.eq.s32.totalorder %s16, 0
    %p120 = por %p118, %p119
    %s121 = ssub.s32 %s18, %s32
    %s122 = ssub.s32 %s19, %s28
    %s123 = sor.u32 %s121, %s122
    %s124 = ssub.s32 %s17, %s36
    %s125 = sor.u32 %s123, %s124
    %p126 = scmp.eq.s32.totalorder %s125, 0
    %s128 = sadd.s32 %s127, 1
    %s129 = scalar_select %p126, %s127, %s128
    %p132 = pneg %p126
    %p133 = scmp.eq.s32.totalorder %s10, 1
    %p134 = por %p132, %p133
    %p135 = scmp.ne.s32.totalorder %s127, %s130
    %p136 = scmp.eq.s32.totalorder %s10, 0
    %p137 = por %p135, %p136
    %p138 = scmp.ne.s32.totalorder %s127, %s130
    %p139 = scmp.eq.s32.totalorder %s15, 1
    %p140 = por %p138, %p139
    %p141 = scmp.ne.s32.totalorder %s130, %s131
    %p142 = scmp.eq.s32.totalorder %s15, 0
    %p143 = por %p141, %p142
    %p144 = scmp.ne.s32.totalorder %s130, %s131
    %p145 = scmp.eq.s32.totalorder %s16, 1
    %p146 = por %p144, %p145
    %p148 = scmp.ne.s32.totalorder %s131, %s147
    %p149 = scmp.eq.s32.totalorder %s16, 0
    %p150 = por %p148, %p149
    %p151 = scmp.le.s32.totalorder 1, %s10
    %p152 = scmp.lt.s32.totalorder %s10, 3
    %p153 = pnand %p151, %p152
    %p154 = pneg %p153
    // Predicated region
    $region9: #{rrcnn_forward.14} parent=5 // pred_check
      _
    $region10: #{rrcnn_forward.14} parent=5 // pred_check_branch
      %156 = sbr.rel (%p153) target = $region12
    $region11: #{rrcnn_forward.14} parent=5 // pred_region
      %s157 = ssub.s32 %s10, 1
      // Predicated region
      $region13: #{rrcnn_forward.14} parent=11 // pred_check
        %p158 = pneg %p83
      $region14: #{rrcnn_forward.14} parent=11 // pred_check_branch
        %160 = sbr.rel (%p158) target = $region16
      $region15: #{rrcnn_forward.14} parent=11 // pred_region
        %p161 = scmp.lt.s32.totalorder %s20, 0
        %s162 = scalar_select %p161, %s20, 0
        %s163 = smul.addr %s162, 4
        %s164 = scalar_lea.vmem %s1, %s163
      $region16: #{rrcnn_forward.14} parent=11 // pred_fallthru
        _
    $region12: #{rrcnn_forward.14} parent=5 // pred_fallthru
      _
    %p165 = scmp.lt.s32.totalorder %s10, 2
    // Predicated region
    $region17: #{rrcnn_forward.14} parent=5 // pred_check
      %p166 = pneg %p165
    $region18: #{rrcnn_forward.14} parent=5 // pred_check_branch
      %168 = sbr.rel (%p166) target = $region20
    $region19: #{rrcnn_forward.14} parent=5 // pred_region
      // Predicated region
      $region21: #{rrcnn_forward.14} parent=19 // pred_check
        %p169 = pneg %p51
      $region22: #{rrcnn_forward.14} parent=19 // pred_check_branch
        %171 = sbr.rel (%p169) target = $region24
      $region23: #{rrcnn_forward.14} parent=19 // pred_region
        %p172 = scmp.lt.s32.totalorder %s18, 1
        %s173 = scalar_select %p172, %s18, 1
        %p174 = scmp.lt.s32.totalorder %s19, 0
        %s175 = scalar_select %p174, %s19, 0
        %s176 = smul.addr %s175, 54
        %s177 = smul.addr %s173, 54
        %s178 = sadd.s32 %s176, %s177
        %s179 = smul.addr %s178, 4
        %s180 = scalar_lea.vmem %s0, %s179
      $region24: #{rrcnn_forward.14} parent=19 // pred_fallthru
        _
    $region20: #{rrcnn_forward.14} parent=5 // pred_fallthru
      _
    %p181 = scmp.le.s32.totalorder 1, %s10
    %p182 = scmp.lt.s32.totalorder %s10, 3
    %p183 = pnand %p181, %p182
    %p184 = pneg %p183
    // Predicated region
    $region25: #{rrcnn_forward.14} parent=5 // pred_check
      _
    $region26: #{rrcnn_forward.14} parent=5 // pred_check_branch
      %186 = sbr.rel (%p183) target = $region28
    $region27: #{rrcnn_forward.14} parent=5 // pred_region
      %s187 = ssub.s32 %s10, 1
      %p188 = scmp.lt.s32.totalorder %s21, 1
      %s189 = scalar_select %p188, %s21, 1
      %p190 = scmp.lt.s32.totalorder %s22, 0
      %s191 = scalar_select %p190, %s22, 0
      %s192 = smul.addr %s191, 54
      %s193 = smul.addr %s189, 54
      %s194 = sadd.s32 %s192, %s193
      %s195 = smul.addr %s194, 4
      %s196 = scalar_lea.vmem %s0, %s195
      %p197 = pneg %p57
      %p198 = pneg %p54
      %p199 = scmp.lt.s32.totalorder %s20, 0
      %s200 = scalar_select %p199, %s20, 0
      %s201 = smul.addr %s200, 4
      %s202 = scalar_lea.vmem %s1, %s201
      %p203 = pneg %p83
      %p204 = pneg %p80
      %p205 = pneg %p113
      %p206 = pneg %p110
      %p207 = scmp.lt.s32.totalorder %s21, 1
      %s208 = scalar_select %p207, %s21, 1
      %p209 = scmp.lt.s32.totalorder %s22, 0
      %s210 = scalar_select %p209, %s22, 0
      %p211 = scmp.lt.s32.totalorder %s20, 0
      %s212 = scalar_select %p211, %s20, 0
      %s213 = smul.addr %s210, 32
      %s214 = sadd.s32 %s212, %s213
      %s215 = smul.addr %s208, 32
      %s216 = sadd.s32 %s214, %s215
      %s217 = smul.addr %s216, 4
      %s218 = scalar_lea.vmem %s2, %s217
      %p219 = pneg %p143
      %p220 = pneg %p140
      %p221 = scmp.lt.s32.totalorder %s21, 1
      %s222 = scalar_select %p221, %s21, 1
      %p223 = scmp.lt.s32.totalorder %s22, 0
      %s224 = scalar_select %p223, %s22, 0
      %p225 = scmp.lt.s32.totalorder %s20, 0
      %s226 = scalar_select %p225, %s20, 0
      %s227 = sadd.s32 %s226, %s224
      %s228 = sadd.s32 %s227, %s222
      %s229 = smul.addr %s228, 2
      %s230 = scalar_lea.vmem %s3, %s229
      %p231 = scmp.lt.s32.totalorder %s21, 1
      %s232 = scalar_select %p231, %s21, 1
      %p233 = scmp.lt.s32.totalorder %s22, 0
      %s234 = scalar_select %p233, %s22, 0
      %s235 = smul.addr %s234, 54
      %s236 = smul.addr %s232, 54
      %s237 = sadd.s32 %s235, %s236
      %s238 = smul.addr %s237, 4
      %s239 = scalar_lea.vmem %s0, %s238
      %p240 = scmp.lt.s32.totalorder %s20, 0
      %s241 = scalar_select %p240, %s20, 0
      %s242 = smul.addr %s241, 4
      %s243 = scalar_lea.vmem %s1, %s242
      %p244 = scmp.lt.s32.totalorder %s21, 1
      %s245 = scalar_select %p244, %s21, 1
      %p246 = scmp.lt.s32.totalorder %s22, 0
      %s247 = scalar_select %p246, %s22, 0
      %p248 = scmp.lt.s32.totalorder %s20, 0
      %s249 = scalar_select %p248, %s20, 0
      %s250 = smul.addr %s247, 32
      %s251 = sadd.s32 %s249, %s250
      %s252 = smul.addr %s245, 32
      %s253 = sadd.s32 %s251, %s252
      %s254 = smul.addr %s253, 4
      %s255 = scalar_lea.vmem %s2, %s254
      %p256 = scmp.lt.s32.totalorder %s21, 1
      %s257 = scalar_select %p256, %s21, 1
      %p258 = scmp.lt.s32.totalorder %s22, 0
      %s259 = scalar_select %p258, %s22, 0
      %p260 = scmp.lt.s32.totalorder %s20, 0
      %s261 = scalar_select %p260, %s20, 0
      %s262 = sadd.s32 %s261, %s259
      %s263 = sadd.s32 %s262, %s257
      %s264 = smul.addr %s263, 2
      %s265 = scalar_lea.vmem %s3, %s264
      %v266 = vld [vmem:[%s239] sm:$0xf]
      %v267 = vld [vmem:[%s239 + $0x4] sm:$0xf]
      %v268 = vld [vmem:[%s239 + $0x8] sm:$0x1]
      %v269 = vld [vmem:[%s239 + $0xc] sm:$0xf]
      %v270 = vld [vmem:[%s239 + $0x10] sm:$0xf]
      %v271 = vld [vmem:[%s239 + $0x14] sm:$0x1]
      %v272 = vld [vmem:[%s239 + $0x18] sm:$0xf]
      %v273 = vld [vmem:[%s239 + $0x1c] sm:$0xf]
      %v274 = vld [vmem:[%s239 + $0x20] sm:$0x1]
      %v275 = vld [vmem:[%s239 + $0x24] sm:$0xf]
      %v276 = vld [vmem:[%s239 + $0x28] sm:$0xf]
      %v277 = vld [vmem:[%s239 + $0x2c] sm:$0x1]
      %v278 = vld [vmem:[%s239 + $0x30] sm:$0xf]
      %v279 = vld [vmem:[%s239 + $0x34] sm:$0xf]
      %v280 = vld [vmem:[%s239 + $0x38] sm:$0x1]
      %v281 = vld [vmem:[%s239 + $0x3c] sm:$0xf]
      %v282 = vld [vmem:[%s239 + $0x40] sm:$0xf]
      %v283 = vld [vmem:[%s239 + $0x44] sm:$0x1]
      %v284 = vld [vmem:[%s239 + $0x48] sm:$0xf]
      %v285 = vld [vmem:[%s239 + $0x4c] sm:$0xf]
      %v286 = vld [vmem:[%s239 + $0x50] sm:$0x1]
      %v287 = vld [vmem:[%s239 + $0x54] sm:$0xf]
      %v288 = vld [vmem:[%s239 + $0x58] sm:$0xf]
      %v289 = vld [vmem:[%s239 + $0x5c] sm:$0x1]
      %v290 = vld [vmem:[%s239 + $0x60] sm:$0xf]
      %v291 = vld [vmem:[%s239 + $0x64] sm:$0xf]
      %v292 = vld [vmem:[%s239 + $0x68] sm:$0x1]
      %v293 = vld [vmem:[%s239 + $0x6c] sm:$0xf]
      %v294 = vld [vmem:[%s239 + $0x70] sm:$0xf]
      %v295 = vld [vmem:[%s239 + $0x74] sm:$0x1]
      %v296 = vld [vmem:[%s239 + $0x78] sm:$0xf]
      %v297 = vld [vmem:[%s239 + $0x7c] sm:$0xf]
      %v298 = vld [vmem:[%s239 + $0x80] sm:$0x1]
      %v299 = vld [vmem:[%s239 + $0x84] sm:$0xf]
      %v300 = vld [vmem:[%s239 + $0x88] sm:$0xf]
      %v301 = vld [vmem:[%s239 + $0x8c] sm:$0x1]
      %v302 = vld [vmem:[%s239 + $0x90] sm:$0xf]
      %v303 = vld [vmem:[%s239 + $0x94] sm:$0xf]
      %v304 = vld [vmem:[%s239 + $0x98] sm:$0x1]
      %v305 = vld [vmem:[%s239 + $0x9c] sm:$0xf]
      %v306 = vld [vmem:[%s239 + $0xa0] sm:$0xf]
      %v307 = vld [vmem:[%s239 + $0xa4] sm:$0x1]
      %v308 = vld [vmem:[%s239 + $0xa8] sm:$0xf]
      %v309 = vld [vmem:[%s239 + $0xac] sm:$0xf]
      %v310 = vld [vmem:[%s239 + $0xb0] sm:$0x1]
      %v311 = vld [vmem:[%s239 + $0xb4] sm:$0xf]
      %v312 = vld [vmem:[%s239 + $0xb8] sm:$0xf]
      %v313 = vld [vmem:[%s239 + $0xbc] sm:$0x1]
      %v314 = vld [vmem:[%s239 + $0xc0] sm:$0xf]
      %v315 = vld [vmem:[%s239 + $0xc4] sm:$0xf]
      %v316 = vld [vmem:[%s239 + $0xc8] sm:$0x1]
      %v317 = vld [vmem:[%s239 + $0xcc] sm:$0xf]
      %v318 = vld [vmem:[%s239 + $0xd0] sm:$0xf]
      %v319 = vld [vmem:[%s239 + $0xd4] sm:$0x1]
      %v356 = vunpack.c.l.b16 %v266
      %v357 = vunpack.c.l.b16 %v267
      %v358 = vunpack.c.l.b16 %v269
      %v359 = vunpack.c.l.b16 %v270
      %v360 = vunpack.c.l.b16 %v272
      %v361 = vunpack.c.l.b16 %v273
      %v362 = vunpack.c.l.b16 %v275
      %v363 = vunpack.c.l.b16 %v276
      %v364 = vunpack.c.l.b16 %v278
      %v365 = vunpack.c.l.b16 %v279
      %v366 = vunpack.c.l.b16 %v281
      %v367 = vunpack.c.l.b16 %v282
      %v368 = vunpack.c.l.b16 %v284
      %v369 = vunpack.c.l.b16 %v285
      %v370 = vunpack.c.l.b16 %v287
      %v371 = vunpack.c.l.b16 %v288
      %v372 = vunpack.c.l.b16 %v290
      %v373 = vunpack.c.l.b16 %v291
      %v374 = vunpack.c.l.b16 %v293
      %v375 = vunpack.c.l.b16 %v294
      %v376 = vunpack.c.l.b16 %v296
      %v377 = vunpack.c.l.b16 %v297
      %v378 = vunpack.c.l.b16 %v299
      %v379 = vunpack.c.l.b16 %v300
      %v380 = vunpack.c.l.b16 %v302
      %v381 = vunpack.c.l.b16 %v303
      %v382 = vunpack.c.l.b16 %v305
      %v383 = vunpack.c.l.b16 %v306
      %v384 = vunpack.c.l.b16 %v308
      %v385 = vunpack.c.l.b16 %v309
      %v386 = vunpack.c.l.b16 %v311
      %v387 = vunpack.c.l.b16 %v312
      %v388 = vunpack.c.l.b16 %v314
      %v389 = vunpack.c.l.b16 %v315
      %v390 = vunpack.c.l.b16 %v317
      %v391 = vunpack.c.l.b16 %v318
      %v392 = vpack.c.b16 %v357, %v356
      %v393 = vpack.c.b16 %v359, %v358
      %v394 = vpack.c.b16 %v361, %v360
      %v395 = vpack.c.b16 %v363, %v362
      %v396 = vpack.c.b16 %v365, %v364
      %v397 = vpack.c.b16 %v367, %v366
      %v398 = vpack.c.b16 %v369, %v368
      %v399 = vpack.c.b16 %v371, %v370
      %v400 = vpack.c.b16 %v373, %v372
      %v401 = vpack.c.b16 %v375, %v374
      %v402 = vpack.c.b16 %v377, %v376
      %v403 = vpack.c.b16 %v379, %v378
      %v404 = vpack.c.b16 %v381, %v380
      %v405 = vpack.c.b16 %v383, %v382
      %v406 = vpack.c.b16 %v385, %v384
      %v407 = vpack.c.b16 %v387, %v386
      %v408 = vpack.c.b16 %v389, %v388
      %v409 = vpack.c.b16 %v391, %v390
      %v446 = vunpack.c.l.b16 %v268
      %v447 = vunpack.c.l.b16 %v271
      %v448 = vunpack.c.l.b16 %v274
      %v449 = vunpack.c.l.b16 %v277
      %v450 = vunpack.c.l.b16 %v280
      %v451 = vunpack.c.l.b16 %v283
      %v452 = vunpack.c.l.b16 %v286
      %v453 = vunpack.c.l.b16 %v289
      %v454 = vunpack.c.l.b16 %v292
      %v455 = vunpack.c.l.b16 %v295
      %v456 = vunpack.c.l.b16 %v298
      %v457 = vunpack.c.l.b16 %v301
      %v458 = vunpack.c.l.b16 %v304
      %v459 = vunpack.c.l.b16 %v307
      %v460 = vunpack.c.l.b16 %v310
      %v461 = vunpack.c.l.b16 %v313
      %v462 = vunpack.c.l.b16 %v316
      %v463 = vunpack.c.l.b16 %v319
      %v464 = vpack.c.b16 %v446, %v446
      %v465 = vpack.c.b16 %v447, %v447
      %v466 = vpack.c.b16 %v448, %v448
      %v467 = vpack.c.b16 %v449, %v449
      %v468 = vpack.c.b16 %v450, %v450
      %v469 = vpack.c.b16 %v451, %v451
      %v470 = vpack.c.b16 %v452, %v452
      %v471 = vpack.c.b16 %v453, %v453
      %v472 = vpack.c.b16 %v454, %v454
      %v473 = vpack.c.b16 %v455, %v455
      %v474 = vpack.c.b16 %v456, %v456
      %v475 = vpack.c.b16 %v457, %v457
      %v476 = vpack.c.b16 %v458, %v458
      %v477 = vpack.c.b16 %v459, %v459
      %v478 = vpack.c.b16 %v460, %v460
      %v479 = vpack.c.b16 %v461, %v461
      %v480 = vpack.c.b16 %v462, %v462
      %v481 = vpack.c.b16 %v463, %v463
      %vm482 = vsmask.f32 7424
      %v484 = vshrl.u32 %v392, 16
      %v486 = vshll.u32 %v392, 16
      %v488 = vrot.slane %v486, 1
      %v489 = vor.u32 %v484, %v488
      %v491 = vshll.u32 %v464, 16
      %v493 = vrot.slane %v491, 1
      %v494 = vsel %vm482, %v489, %v493
      %v496 = vshrl.u32 %v393, 16
      %v498 = vshll.u32 %v393, 16
      %v500 = vrot.slane %v498, 1
      %v501 = vor.u32 %v496, %v500
      %v503 = vshll.u32 %v465, 16
      %v505 = vrot.slane %v503, 1
      %v506 = vsel %vm482, %v501, %v505
      %v508 = vshrl.u32 %v394, 16
      %v510 = vshll.u32 %v394, 16
      %v512 = vrot.slane %v510, 1
      %v513 = vor.u32 %v508, %v512
      %v515 = vshll.u32 %v466, 16
      %v517 = vrot.slane %v515, 1
      %v518 = vsel %vm482, %v513, %v517
      %v520 = vshrl.u32 %v395, 16
      %v522 = vshll.u32 %v395, 16
      %v524 = vrot.slane %v522, 1
      %v525 = vor.u32 %v520, %v524
      %v527 = vshll.u32 %v467, 16
      %v529 = vrot.slane %v527, 1
      %v530 = vsel %vm482, %v525, %v529
      %v532 = vshrl.u32 %v396, 16
      %v534 = vshll.u32 %v396, 16
      %v536 = vrot.slane %v534, 1
      %v537 = vor.u32 %v532, %v536
      %v539 = vshll.u32 %v468, 16
      %v541 = vrot.slane %v539, 1
      %v542 = vsel %vm482, %v537, %v541
      %v544 = vshrl.u32 %v397, 16
      %v546 = vshll.u32 %v397, 16
      %v548 = vrot.slane %v546, 1
      %v549 = vor.u32 %v544, %v548
      %v551 = vshll.u32 %v469, 16
      %v553 = vrot.slane %v551, 1
      %v554 = vsel %vm482, %v549, %v553
      %v556 = vshrl.u32 %v398, 16
      %v558 = vshll.u32 %v398, 16
      %v560 = vrot.slane %v558, 1
      %v561 = vor.u32 %v556, %v560
      %v563 = vshll.u32 %v470, 16
      %v565 = vrot.slane %v563, 1
      %v566 = vsel %vm482, %v561, %v565
      %v568 = vshrl.u32 %v399, 16
      %v570 = vshll.u32 %v399, 16
      %v572 = vrot.slane %v570, 1
      %v573 = vor.u32 %v568, %v572
      %v575 = vshll.u32 %v471, 16
      %v577 = vrot.slane %v575, 1
      %v578 = vsel %vm482, %v573, %v577
      %v580 = vshrl.u32 %v400, 16
      %v582 = vshll.u32 %v400, 16
      %v584 = vrot.slane %v582, 1
      %v585 = vor.u32 %v580, %v584
      %v587 = vshll.u32 %v472, 16
      %v589 = vrot.slane %v587, 1
      %v590 = vsel %vm482, %v585, %v589
      %v592 = vshrl.u32 %v401, 16
      %v594 = vshll.u32 %v401, 16
      %v596 = vrot.slane %v594, 1
      %v597 = vor.u32 %v592, %v596
      %v599 = vshll.u32 %v473, 16
      %v601 = vrot.slane %v599, 1
      %v602 = vsel %vm482, %v597, %v601
      %v604 = vshrl.u32 %v402, 16
      %v606 = vshll.u32 %v402, 16
      %v608 = vrot.slane %v606, 1
      %v609 = vor.u32 %v604, %v608
      %v611 = vshll.u32 %v474, 16
      %v613 = vrot.slane %v611, 1
      %v614 = vsel %vm482, %v609, %v613
      %v616 = vshrl.u32 %v403, 16
      %v618 = vshll.u32 %v403, 16
      %v620 = vrot.slane %v618, 1
      %v621 = vor.u32 %v616, %v620
      %v623 = vshll.u32 %v475, 16
      %v625 = vrot.slane %v623, 1
      %v626 = vsel %vm482, %v621, %v625
      %v628 = vshrl.u32 %v404, 16
      %v630 = vshll.u32 %v404, 16
      %v632 = vrot.slane %v630, 1
      %v633 = vor.u32 %v628, %v632
      %v635 = vshll.u32 %v476, 16
      %v637 = vrot.slane %v635, 1
      %v638 = vsel %vm482, %v633, %v637
      %v640 = vshrl.u32 %v405, 16
      %v642 = vshll.u32 %v405, 16
      %v644 = vrot.slane %v642, 1
      %v645 = vor.u32 %v640, %v644
      %v647 = vshll.u32 %v477, 16
      %v649 = vrot.slane %v647, 1
      %v650 = vsel %vm482, %v645, %v649
      %v652 = vshrl.u32 %v406, 16
      %v654 = vshll.u32 %v406, 16
      %v656 = vrot.slane %v654, 1
      %v657 = vor.u32 %v652, %v656
      %v659 = vshll.u32 %v478, 16
      %v661 = vrot.slane %v659, 1
      %v662 = vsel %vm482, %v657, %v661
      %v664 = vshrl.u32 %v407, 16
      %v666 = vshll.u32 %v407, 16
      %v668 = vrot.slane %v666, 1
      %v669 = vor.u32 %v664, %v668
      %v671 = vshll.u32 %v479, 16
      %v673 = vrot.slane %v671, 1
      %v674 = vsel %vm482, %v669, %v673
      %v676 = vshrl.u32 %v408, 16
      %v678 = vshll.u32 %v408, 16
      %v680 = vrot.slane %v678, 1
      %v681 = vor.u32 %v676, %v680
      %v683 = vshll.u32 %v480, 16
      %v685 = vrot.slane %v683, 1
      %v686 = vsel %vm482, %v681, %v685
      %v688 = vshrl.u32 %v409, 16
      %v690 = vshll.u32 %v409, 16
      %v692 = vrot.slane %v690, 1
      %v693 = vor.u32 %v688, %v692
      %v695 = vshll.u32 %v481, 16
      %v697 = vrot.slane %v695, 1
      %v698 = vsel %vm482, %v693, %v697
      %vm717 = vcmask 1046528
      %v718 = vrot.slane %v392, 1
      %v719 = vrot.slane %v464, 1
      %v720 = vsel %vm717, %v718, %v719
      %v721 = vrot.slane %v393, 1
      %v722 = vrot.slane %v465, 1
      %v723 = vsel %vm717, %v721, %v722
      %v724 = vrot.slane %v394, 1
      %v725 = vrot.slane %v466, 1
      %v726 = vsel %vm717, %v724, %v725
      %v727 = vrot.slane %v395, 1
      %v728 = vrot.slane %v467, 1
      %v729 = vsel %vm717, %v727, %v728
      %v730 = vrot.slane %v396, 1
      %v731 = vrot.slane %v468, 1
      %v732 = vsel %vm717, %v730, %v731
      %v733 = vrot.slane %v397, 1
      %v734 = vrot.slane %v469, 1
      %v735 = vsel %vm717, %v733, %v734
      %v736 = vrot.slane %v398, 1
      %v737 = vrot.slane %v470, 1
      %v738 = vsel %vm717, %v736, %v737
      %v739 = vrot.slane %v399, 1
      %v740 = vrot.slane %v471, 1
      %v741 = vsel %vm717, %v739, %v740
      %v742 = vrot.slane %v400, 1
      %v743 = vrot.slane %v472, 1
      %v744 = vsel %vm717, %v742, %v743
      %v745 = vrot.slane %v401, 1
      %v746 = vrot.slane %v473, 1
      %v747 = vsel %vm717, %v745, %v746
      %v748 = vrot.slane %v402, 1
      %v749 = vrot.slane %v474, 1
      %v750 = vsel %vm717, %v748, %v749
      %v751 = vrot.slane %v403, 1
      %v752 = vrot.slane %v475, 1
      %v753 = vsel %vm717, %v751, %v752
      %v754 = vrot.slane %v404, 1
      %v755 = vrot.slane %v476, 1
      %v756 = vsel %vm717, %v754, %v755
      %v757 = vrot.slane %v405, 1
      %v758 = vrot.slane %v477, 1
      %v759 = vsel %vm717, %v757, %v758
      %v760 = vrot.slane %v406, 1
      %v761 = vrot.slane %v478, 1
      %v762 = vsel %vm717, %v760, %v761
      %v763 = vrot.slane %v407, 1
      %v764 = vrot.slane %v479, 1
      %v765 = vsel %vm717, %v763, %v764
      %v766 = vrot.slane %v408, 1
      %v767 = vrot.slane %v480, 1
      %v768 = vsel %vm717, %v766, %v767
      %v769 = vrot.slane %v409, 1
      %v770 = vrot.slane %v481, 1
      %v771 = vsel %vm717, %v769, %v770
      %v790 = vld [vmem:[%s243] sm:$0xf]
      %v791 = vld [vmem:[%s243 + $0x4] sm:$0xf]
      %v792 = vld [vmem:[%s243 + $0x8] sm:$0xf]
      %v793 = vld [vmem:[%s243 + $0xc] sm:$0xf]
      %v794 = vld [vmem:[%s243 + $0x10] sm:$0xf]
      %v795 = vld [vmem:[%s243 + $0x14] sm:$0xf]
      %v796 = vld [vmem:[%s243 + $0x18] sm:$0xf]
      %v797 = vld [vmem:[%s243 + $0x1c] sm:$0xf]
      %v798 = vld [vmem:[%s243 + $0x20] sm:$0xf]
      %v799 = vld [vmem:[%s243 + $0x24] sm:$0xf]
      %v800 = vld [vmem:[%s243 + $0x28] sm:$0xf]
      %v801 = vld [vmem:[%s243 + $0x2c] sm:$0xf]
      %v802 = vld [vmem:[%s243 + $0x30] sm:$0xf]
      %v803 = vld [vmem:[%s243 + $0x34] sm:$0xf]
      %v804 = vld [vmem:[%s243 + $0x38] sm:$0xf]
      %v805 = vld [vmem:[%s243 + $0x3c] sm:$0xf]
      %v806 = vld [vmem:[%s243 + $0x40] sm:$0xf]
      %v807 = vld [vmem:[%s243 + $0x44] sm:$0xf]
      %v808 = vld [vmem:[%s243 + $0x48] sm:$0xf]
      %v809 = vld [vmem:[%s243 + $0x4c] sm:$0xf]
      %v810 = vld [vmem:[%s243 + $0x50] sm:$0xf]
      %v811 = vld [vmem:[%s243 + $0x54] sm:$0xf]
      %v812 = vld [vmem:[%s243 + $0x58] sm:$0xf]
      %v813 = vld [vmem:[%s243 + $0x5c] sm:$0xf]
      %v814 = vld [vmem:[%s243 + $0x60] sm:$0xf]
      %v815 = vld [vmem:[%s243 + $0x64] sm:$0xf]
      %v816 = vld [vmem:[%s243 + $0x68] sm:$0xf]
      %v817 = vld [vmem:[%s243 + $0x6c] sm:$0xf]
      %v818 = vld [vmem:[%s243 + $0x70] sm:$0xf]
      %v819 = vld [vmem:[%s243 + $0x74] sm:$0xf]
      %v820 = vld [vmem:[%s243 + $0x78] sm:$0xf]
      %v821 = vld [vmem:[%s243 + $0x7c] sm:$0xf]
      %v822 = vld [vmem:[%s243 + $0x80] sm:$0xf]
      %v823 = vld [vmem:[%s243 + $0x84] sm:$0xf]
      %v824 = vld [vmem:[%s243 + $0x88] sm:$0xf]
      %v825 = vld [vmem:[%s243 + $0x8c] sm:$0xf]
      %v826 = vld [vmem:[%s243 + $0x90] sm:$0xf]
      %v827 = vld [vmem:[%s243 + $0x94] sm:$0xf]
      %v828 = vld [vmem:[%s243 + $0x98] sm:$0xf]
      %v829 = vld [vmem:[%s243 + $0x9c] sm:$0xf]
      %v830 = vld [vmem:[%s243 + $0xa0] sm:$0xf]
      %v831 = vld [vmem:[%s243 + $0xa4] sm:$0xf]
      %v832 = vld [vmem:[%s243 + $0xa8] sm:$0xf]
      %v833 = vld [vmem:[%s243 + $0xac] sm:$0xf]
      %v834 = vld [vmem:[%s243 + $0xb0] sm:$0xf]
      %v835 = vld [vmem:[%s243 + $0xb4] sm:$0xf]
      %v836 = vld [vmem:[%s243 + $0xb8] sm:$0xf]
      %v837 = vld [vmem:[%s243 + $0xbc] sm:$0xf]
      %s838 = scalar_lea.vmem %s243, 192
      %v839 = vld [vmem:[%s838] sm:$0xf]
      %v840 = vld [vmem:[%s838 + $0x4] sm:$0xf]
      %v841 = vld [vmem:[%s838 + $0x8] sm:$0xf]
      %v842 = vld [vmem:[%s838 + $0xc] sm:$0xf]
      %v843 = vld [vmem:[%s838 + $0x10] sm:$0xf]
      %v844 = vld [vmem:[%s838 + $0x14] sm:$0xf]
      %v845 = vld [vmem:[%s838 + $0x18] sm:$0xf]
      %v846 = vld [vmem:[%s838 + $0x1c] sm:$0xf]
      %v847 = vld [vmem:[%s838 + $0x20] sm:$0xf]
      %v848 = vld [vmem:[%s838 + $0x24] sm:$0xf]
      %v849 = vld [vmem:[%s838 + $0x28] sm:$0xf]
      %v850 = vld [vmem:[%s838 + $0x2c] sm:$0xf]
      %v851 = vld [vmem:[%s838 + $0x30] sm:$0xf]
      %v852 = vld [vmem:[%s838 + $0x34] sm:$0xf]
      %v853 = vld [vmem:[%s838 + $0x38] sm:$0xf]
      %v854 = vld [vmem:[%s838 + $0x3c] sm:$0xf]
      %v855 = vld [vmem:[%s838 + $0x40] sm:$0xf]
      %v856 = vld [vmem:[%s838 + $0x44] sm:$0xf]
      %v857 = vld [vmem:[%s838 + $0x48] sm:$0xf]
      %v858 = vld [vmem:[%s838 + $0x4c] sm:$0xf]
      %v859 = vld [vmem:[%s838 + $0x50] sm:$0xf]
      %v860 = vld [vmem:[%s838 + $0x54] sm:$0xf]
      %v861 = vld [vmem:[%s838 + $0x58] sm:$0xf]
      %v862 = vld [vmem:[%s838 + $0x5c] sm:$0xf]
      %v863 = vld [vmem:[%s838 + $0x60] sm:$0xf]
      %v864 = vld [vmem:[%s838 + $0x64] sm:$0xf]
      %v865 = vld [vmem:[%s838 + $0x68] sm:$0xf]
      %v866 = vld [vmem:[%s838 + $0x6c] sm:$0xf]
      %v867 = vld [vmem:[%s838 + $0x70] sm:$0xf]
      %v868 = vld [vmem:[%s838 + $0x74] sm:$0xf]
      %v869 = vld [vmem:[%s838 + $0x78] sm:$0xf]
      %v870 = vld [vmem:[%s838 + $0x7c] sm:$0xf]
      %v871 = vld [vmem:[%s838 + $0x80] sm:$0xf]
      %v872 = vld [vmem:[%s838 + $0x84] sm:$0xf]
      %v873 = vld [vmem:[%s838 + $0x88] sm:$0xf]
      %v874 = vld [vmem:[%s838 + $0x8c] sm:$0xf]
      %v875 = vld [vmem:[%s838 + $0x90] sm:$0xf]
      %v876 = vld [vmem:[%s838 + $0x94] sm:$0xf]
      %v877 = vld [vmem:[%s838 + $0x98] sm:$0xf]
      %v878 = vld [vmem:[%s838 + $0x9c] sm:$0xf]
      %v879 = vld [vmem:[%s838 + $0xa0] sm:$0xf]
      %v880 = vld [vmem:[%s838 + $0xa4] sm:$0xf]
      %v881 = vld [vmem:[%s838 + $0xa8] sm:$0xf]
      %v882 = vld [vmem:[%s838 + $0xac] sm:$0xf]
      %v883 = vld [vmem:[%s838 + $0xb0] sm:$0xf]
      %v884 = vld [vmem:[%s838 + $0xb4] sm:$0xf]
      %v885 = vld [vmem:[%s838 + $0xb8] sm:$0xf]
      %v886 = vld [vmem:[%s838 + $0xbc] sm:$0xf]
      %v935 = vunpack.c.l.b16 %v839
      %v936 = vunpack.c.l.b16 %v840
      %v937 = vunpack.c.l.b16 %v841
      %v938 = vunpack.c.l.b16 %v842
      %v939 = vunpack.c.l.b16 %v843
      %v940 = vunpack.c.l.b16 %v844
      %v941 = vunpack.c.l.b16 %v845
      %v942 = vunpack.c.l.b16 %v846
      %v943 = vunpack.c.l.b16 %v847
      %v944 = vunpack.c.l.b16 %v848
      %v945 = vunpack.c.l.b16 %v849
      %v946 = vunpack.c.l.b16 %v850
      %v947 = vunpack.c.l.b16 %v851
      %v948 = vunpack.c.l.b16 %v852
      %v949 = vunpack.c.l.b16 %v853
      %v950 = vunpack.c.l.b16 %v854
      %v951 = vunpack.c.l.b16 %v855
      %v952 = vunpack.c.l.b16 %v856
      %v953 = vunpack.c.l.b16 %v857
      %v954 = vunpack.c.l.b16 %v858
      %v955 = vunpack.c.l.b16 %v859
      %v956 = vunpack.c.l.b16 %v860
      %v957 = vunpack.c.l.b16 %v861
      %v958 = vunpack.c.l.b16 %v862
      %v959 = vunpack.c.l.b16 %v863
      %v960 = vunpack.c.l.b16 %v864
      %v961 = vunpack.c.l.b16 %v865
      %v962 = vunpack.c.l.b16 %v866
      %v963 = vunpack.c.l.b16 %v867
      %v964 = vunpack.c.l.b16 %v868
      %v965 = vunpack.c.l.b16 %v869
      %v966 = vunpack.c.l.b16 %v870
      %v967 = vunpack.c.l.b16 %v871
      %v968 = vunpack.c.l.b16 %v872
      %v969 = vunpack.c.l.b16 %v873
      %v970 = vunpack.c.l.b16 %v874
      %v971 = vunpack.c.l.b16 %v875
      %v972 = vunpack.c.l.b16 %v876
      %v973 = vunpack.c.l.b16 %v877
      %v974 = vunpack.c.l.b16 %v878
      %v975 = vunpack.c.l.b16 %v879
      %v976 = vunpack.c.l.b16 %v880
      %v977 = vunpack.c.l.b16 %v881
      %v978 = vunpack.c.l.b16 %v882
      %v979 = vunpack.c.l.b16 %v883
      %v980 = vunpack.c.l.b16 %v884
      %v981 = vunpack.c.l.b16 %v885
      %v982 = vunpack.c.l.b16 %v886
      %v983 = vpack.c.b16 %v936, %v935
      %v984 = vpack.c.b16 %v938, %v937
      %v985 = vpack.c.b16 %v940, %v939
      %v986 = vpack.c.b16 %v942, %v941
      %v987 = vpack.c.b16 %v944, %v943
      %v988 = vpack.c.b16 %v946, %v945
      %v989 = vpack.c.b16 %v948, %v947
      %v990 = vpack.c.b16 %v950, %v949
      %v991 = vpack.c.b16 %v952, %v951
      %v992 = vpack.c.b16 %v954, %v953
      %v993 = vpack.c.b16 %v956, %v955
      %v994 = vpack.c.b16 %v958, %v957
      %v995 = vpack.c.b16 %v960, %v959
      %v996 = vpack.c.b16 %v962, %v961
      %v997 = vpack.c.b16 %v964, %v963
      %v998 = vpack.c.b16 %v966, %v965
      %v999 = vpack.c.b16 %v968, %v967
      %v1000 = vpack.c.b16 %v970, %v969
      %v1001 = vpack.c.b16 %v972, %v971
      %v1002 = vpack.c.b16 %v974, %v973
      %v1003 = vpack.c.b16 %v976, %v975
      %v1004 = vpack.c.b16 %v978, %v977
      %v1005 = vpack.c.b16 %v980, %v979
      %v1006 = vpack.c.b16 %v982, %v981
      %1031 = vmatpush.bf16.msra.mxu0 %v990
      %1032 = vmatpush.bf16.msra.mxu0 %v989
      %1033 = vmatpush.bf16.msra.mxu0 %v988
      %1034 = vmatpush.bf16.msra.mxu0 %v987
      %1035 = vmatpush.bf16.msra.mxu0 %v986
      %1036 = vmatpush.bf16.msra.mxu0 %v985
      %1037 = vmatpush.bf16.msra.mxu0 %v984
      %1038 = vmatpush.bf16.msra.mxu0 %v983
      %1039 = vmatmul.bf16.gmra.mxu0 %v393
      %v1040 = vpop.f32.mrf.mxu0
      %v1041 = vadd.f32 0.0, %v1040
      %v1042 = vpop.f32.mrf.mxu0
      %v1043 = vadd.f32 0.0, %v1042
      %1044 = vmatmul.bf16.gmra.mxu0 %v394
      %v1045 = vpop.f32.mrf.mxu0
      %v1046 = vadd.f32 0.0, %v1045
      %v1047 = vpop.f32.mrf.mxu0
      %v1048 = vadd.f32 0.0, %v1047
      %1049 = vmatmul.bf16.gmra.mxu0 %v395
      %v1050 = vpop.f32.mrf.mxu0
      %v1051 = vadd.f32 0.0, %v1050
      %v1052 = vpop.f32.mrf.mxu0
      %v1053 = vadd.f32 0.0, %v1052
      %1054 = vmatmul.bf16.gmra.mxu0 %v396
      %v1055 = vpop.f32.mrf.mxu0
      %v1056 = vadd.f32 0.0, %v1055
      %v1057 = vpop.f32.mrf.mxu0
      %v1058 = vadd.f32 0.0, %v1057
      %1059 = vmatmul.bf16.gmra.mxu0 %v397
      %v1060 = vpop.f32.mrf.mxu0
      %v1061 = vadd.f32 0.0, %v1060
      %v1062 = vpop.f32.mrf.mxu0
      %v1063 = vadd.f32 0.0, %v1062
      %1064 = vmatmul.bf16.gmra.mxu0 %v398
      %v1065 = vpop.f32.mrf.mxu0
      %v1066 = vadd.f32 0.0, %v1065
      %v1067 = vpop.f32.mrf.mxu0
      %v1068 = vadd.f32 0.0, %v1067
      %1069 = vmatmul.bf16.gmra.mxu0 %v399
      %v1070 = vpop.f32.mrf.mxu0
      %v1071 = vadd.f32 0.0, %v1070
      %v1072 = vpop.f32.mrf.mxu0
      %v1073 = vadd.f32 0.0, %v1072
      %1074 = vmatmul.bf16.gmra.mxu0 %v400
      %v1075 = vpop.f32.mrf.mxu0
      %v1076 = vadd.f32 0.0, %v1075
      %v1077 = vpop.f32.mrf.mxu0
      %v1078 = vadd.f32 0.0, %v1077
      %1079 = vmatmul.bf16.gmra.mxu0 %v401
      %v1080 = vpop.f32.mrf.mxu0
      %v1081 = vadd.f32 0.0, %v1080
      %v1082 = vpop.f32.mrf.mxu0
      %v1083 = vadd.f32 0.0, %v1082
      %1084 = vmatmul.bf16.gmra.mxu0 %v402
      %v1085 = vpop.f32.mrf.mxu0
      %v1086 = vadd.f32 0.0, %v1085
      %v1087 = vpop.f32.mrf.mxu0
      %v1088 = vadd.f32 0.0, %v1087
      %1089 = vmatmul.bf16.gmra.mxu0 %v403
      %v1090 = vpop.f32.mrf.mxu0
      %v1091 = vadd.f32 0.0, %v1090
      %v1092 = vpop.f32.mrf.mxu0
      %v1093 = vadd.f32 0.0, %v1092
      %1094 = vmatmul.bf16.gmra.mxu0 %v404
      %v1095 = vpop.f32.mrf.mxu0
      %v1096 = vadd.f32 0.0, %v1095
      %v1097 = vpop.f32.mrf.mxu0
      %v1098 = vadd.f32 0.0, %v1097
      %1099 = vmatmul.bf16.gmra.mxu0 %v405
      %v1100 = vpop.f32.mrf.mxu0
      %v1101 = vadd.f32 0.0, %v1100
      %v1102 = vpop.f32.mrf.mxu0
      %v1103 = vadd.f32 0.0, %v1102
      %1104 = vmatmul.bf16.gmra.mxu0 %v406
      %v1105 = vpop.f32.mrf.mxu0
      %v1106 = vadd.f32 0.0, %v1105
      %v1107 = vpop.f32.mrf.mxu0
      %v1108 = vadd.f32 0.0, %v1107
      %1109 = vmatmul.bf16.gmra.mxu0 %v407
      %v1110 = vpop.f32.mrf.mxu0
      %v1111 = vadd.f32 0.0, %v1110
      %v1112 = vpop.f32.mrf.mxu0
      %v1113 = vadd.f32 0.0, %v1112
      %1114 = vmatmul.bf16.gmra.mxu0 %v408
      %v1115 = vpop.f32.mrf.mxu0
      %v1116 = vadd.f32 0.0, %v1115
      %v1117 = vpop.f32.mrf.mxu0
      %v1118 = vadd.f32 0.0, %v1117
      %1119 = vdwg.mxu0
      %1120 = vmatpush.bf16.msra.mxu0 %v998
      %1121 = vmatpush.bf16.msra.mxu0 %v997
      %1122 = vmatpush.bf16.msra.mxu0 %v996
      %1123 = vmatpush.bf16.msra.mxu0 %v995
      %1124 = vmatpush.bf16.msra.mxu0 %v994
      %1125 = vmatpush.bf16.msra.mxu0 %v993
      %1126 = vmatpush.bf16.msra.mxu0 %v992
      %1127 = vmatpush.bf16.msra.mxu0 %v991
      %1128 = vmatmul.bf16.gmra.mxu0 %v506
      %v1129 = vpop.f32.mrf.mxu0
      %v1130 = vadd.f32 %v1041, %v1129
      %v1131 = vpop.f32.mrf.mxu0
      %v1132 = vadd.f32 %v1043, %v1131
      %1133 = vmatmul.bf16.gmra.mxu0 %v518
      %v1134 = vpop.f32.mrf.mxu0
      %v1135 = vadd.f32 %v1046, %v1134
      %v1136 = vpop.f32.mrf.mxu0
      %v1137 = vadd.f32 %v1048, %v1136
      %1138 = vmatmul.bf16.gmra.mxu0 %v530
      %v1139 = vpop.f32.mrf.mxu0
      %v1140 = vadd.f32 %v1051, %v1139
      %v1141 = vpop.f32.mrf.mxu0
      %v1142 = vadd.f32 %v1053, %v1141
      %1143 = vmatmul.bf16.gmra.mxu0 %v542
      %v1144 = vpop.f32.mrf.mxu0
      %v1145 = vadd.f32 %v1056, %v1144
      %v1146 = vpop.f32.mrf.mxu0
      %v1147 = vadd.f32 %v1058, %v1146
      %1148 = vmatmul.bf16.gmra.mxu0 %v554
      %v1149 = vpop.f32.mrf.mxu0
      %v1150 = vadd.f32 %v1061, %v1149
      %v1151 = vpop.f32.mrf.mxu0
      %v1152 = vadd.f32 %v1063, %v1151
      %1153 = vmatmul.bf16.gmra.mxu0 %v566
      %v1154 = vpop.f32.mrf.mxu0
      %v1155 = vadd.f32 %v1066, %v1154
      %v1156 = vpop.f32.mrf.mxu0
      %v1157 = vadd.f32 %v1068, %v1156
      %1158 = vmatmul.bf16.gmra.mxu0 %v578
      %v1159 = vpop.f32.mrf.mxu0
      %v1160 = vadd.f32 %v1071, %v1159
      %v1161 = vpop.f32.mrf.mxu0
      %v1162 = vadd.f32 %v1073, %v1161
      %1163 = vmatmul.bf16.gmra.mxu0 %v590
      %v1164 = vpop.f32.mrf.mxu0
      %v1165 = vadd.f32 %v1076, %v1164
      %v1166 = vpop.f32.mrf.mxu0
      %v1167 = vadd.f32 %v1078, %v1166
      %1168 = vmatmul.bf16.gmra.mxu0 %v602
      %v1169 = vpop.f32.mrf.mxu0
      %v1170 = vadd.f32 %v1081, %v1169
      %v1171 = vpop.f32.mrf.mxu0
      %v1172 = vadd.f32 %v1083, %v1171
      %1173 = vmatmul.bf16.gmra.mxu0 %v614
      %v1174 = vpop.f32.mrf.mxu0
      %v1175 = vadd.f32 %v1086, %v1174
      %v1176 = vpop.f32.mrf.mxu0
      %v1177 = vadd.f32 %v1088, %v1176
      %1178 = vmatmul.bf16.gmra.mxu0 %v626
      %v1179 = vpop.f32.mrf.mxu0
      %v1180 = vadd.f32 %v1091, %v1179
      %v1181 = vpop.f32.mrf.mxu0
      %v1182 = vadd.f32 %v1093, %v1181
      %1183 = vmatmul.bf16.gmra.mxu0 %v638
      %v1184 = vpop.f32.mrf.mxu0
      %v1185 = vadd.f32 %v1096, %v1184
      %v1186 = vpop.f32.mrf.mxu0
      %v1187 = vadd.f32 %v1098, %v1186
      %1188 = vmatmul.bf16.gmra.mxu0 %v650
      %v1189 = vpop.f32.mrf.mxu0
      %v1190 = vadd.f32 %v1101, %v1189
      %v1191 = vpop.f32.mrf.mxu0
      %v1192 = vadd.f32 %v1103, %v1191
      %1193 = vmatmul.bf16.gmra.mxu0 %v662
      %v1194 = vpop.f32.mrf.mxu0
      %v1195 = vadd.f32 %v1106, %v1194
      %v1196 = vpop.f32.mrf.mxu0
      %v1197 = vadd.f32 %v1108, %v1196
      %1198 = vmatmul.bf16.gmra.mxu0 %v674
      %v1199 = vpop.f32.mrf.mxu0
      %v1200 = vadd.f32 %v1111, %v1199
      %v1201 = vpop.f32.mrf.mxu0
      %v1202 = vadd.f32 %v1113, %v1201
      %1203 = vmatmul.bf16.gmra.mxu0 %v686
      %v1204 = vpop.f32.mrf.mxu0
      %v1205 = vadd.f32 %v1116, %v1204
      %v1206 = vpop.f32.mrf.mxu0
      %v1207 = vadd.f32 %v1118, %v1206
      %1208 = vdwg.mxu0
      %1209 = vmatpush.bf16.msra.mxu0 %v1006
      %1210 = vmatpush.bf16.msra.mxu0 %v1005
      %1211 = vmatpush.bf16.msra.mxu0 %v1004
      %1212 = vmatpush.bf16.msra.mxu0 %v1003
      %1213 = vmatpush.bf16.msra.mxu0 %v1002
      %1214 = vmatpush.bf16.msra.mxu0 %v1001
      %1215 = vmatpush.bf16.msra.mxu0 %v1000
      %1216 = vmatpush.bf16.msra.mxu0 %v999
      %1217 = vmatmul.bf16.gmra.mxu0 %v723
      %v1218 = vpop.f32.mrf.mxu0
      %v1219 = vadd.f32 %v1130, %v1218
      %v1220 = vpop.f32.mrf.mxu0
      %v1221 = vadd.f32 %v1132, %v1220
      %1222 = vmatmul.bf16.gmra.mxu0 %v726
      %v1223 = vpop.f32.mrf.mxu0
      %v1224 = vadd.f32 %v1135, %v1223
      %v1225 = vpop.f32.mrf.mxu0
      %v1226 = vadd.f32 %v1137, %v1225
      %1227 = vmatmul.bf16.gmra.mxu0 %v729
      %v1228 = vpop.f32.mrf.mxu0
      %v1229 = vadd.f32 %v1140, %v1228
      %v1230 = vpop.f32.mrf.mxu0
      %v1231 = vadd.f32 %v1142, %v1230
      %1232 = vmatmul.bf16.gmra.mxu0 %v732
      %v1233 = vpop.f32.mrf.mxu0
      %v1234 = vadd.f32 %v1145, %v1233
      %v1235 = vpop.f32.mrf.mxu0
      %v1236 = vadd.f32 %v1147, %v1235
      %1237 = vmatmul.bf16.gmra.mxu0 %v735
      %v1238 = vpop.f32.mrf.mxu0
      %v1239 = vadd.f32 %v1150, %v1238
      %v1240 = vpop.f32.mrf.mxu0
      %v1241 = vadd.f32 %v1152, %v1240
      %1242 = vmatmul.bf16.gmra.mxu0 %v738
      %v1243 = vpop.f32.mrf.mxu0
      %v1244 = vadd.f32 %v1155, %v1243
      %v1245 = vpop.f32.mrf.mxu0
      %v1246 = vadd.f32 %v1157, %v1245
      %1247 = vmatmul.bf16.gmra.mxu0 %v741
      %v1248 = vpop.f32.mrf.mxu0
      %v1249 = vadd.f32 %v1160, %v1248
      %v1250 = vpop.f32.mrf.mxu0
      %v1251 = vadd.f32 %v1162, %v1250
      %1252 = vmatmul.bf16.gmra.mxu0 %v744
      %v1253 = vpop.f32.mrf.mxu0
      %v1254 = vadd.f32 %v1165, %v1253
      %v1255 = vpop.f32.mrf.mxu0
      %v1256 = vadd.f32 %v1167, %v1255
      %1257 = vmatmul.bf16.gmra.mxu0 %v747
      %v1258 = vpop.f32.mrf.mxu0
      %v1259 = vadd.f32 %v1170, %v1258
      %v1260 = vpop.f32.mrf.mxu0
      %v1261 = vadd.f32 %v1172, %v1260
      %1262 = vmatmul.bf16.gmra.mxu0 %v750
      %v1263 = vpop.f32.mrf.mxu0
      %v1264 = vadd.f32 %v1175, %v1263
      %v1265 = vpop.f32.mrf.mxu0
      %v1266 = vadd.f32 %v1177, %v1265
      %1267 = vmatmul.bf16.gmra.mxu0 %v753
      %v1268 = vpop.f32.mrf.mxu0
      %v1269 = vadd.f32 %v1180, %v1268
      %v1270 = vpop.f32.mrf.mxu0
      %v1271 = vadd.f32 %v1182, %v1270
      %1272 = vmatmul.bf16.gmra.mxu0 %v756
      %v1273 = vpop.f32.mrf.mxu0
      %v1274 = vadd.f32 %v1185, %v1273
      %v1275 = vpop.f32.mrf.mxu0
      %v1276 = vadd.f32 %v1187, %v1275
      %1277 = vmatmul.bf16.gmra.mxu0 %v759
      %v1278 = vpop.f32.mrf.mxu0
      %v1279 = vadd.f32 %v1190, %v1278
      %v1280 = vpop.f32.mrf.mxu0
      %v1281 = vadd.f32 %v1192, %v1280
      %1282 = vmatmul.bf16.gmra.mxu0 %v762
      %v1283 = vpop.f32.mrf.mxu0
      %v1284 = vadd.f32 %v1195, %v1283
      %v1285 = vpop.f32.mrf.mxu0
      %v1286 = vadd.f32 %v1197, %v1285
      %1287 = vmatmul.bf16.gmra.mxu0 %v765
      %v1288 = vpop.f32.mrf.mxu0
      %v1289 = vadd.f32 %v1200, %v1288
      %v1290 = vpop.f32.mrf.mxu0
      %v1291 = vadd.f32 %v1202, %v1290
      %1292 = vmatmul.bf16.gmra.mxu0 %v768
      %v1293 = vpop.f32.mrf.mxu0
      %v1294 = vadd.f32 %v1205, %v1293
      %v1295 = vpop.f32.mrf.mxu0
      %v1296 = vadd.f32 %v1207, %v1295
      %1297 = vdwg.mxu0
      %v1346 = vunpack.c.l.b16 %v790
      %v1347 = vunpack.c.l.b16 %v791
      %v1348 = vunpack.c.l.b16 %v792
      %v1349 = vunpack.c.l.b16 %v793
      %v1350 = vunpack.c.l.b16 %v794
      %v1351 = vunpack.c.l.b16 %v795
      %v1352 = vunpack.c.l.b16 %v796
      %v1353 = vunpack.c.l.b16 %v797
      %v1354 = vunpack.c.l.b16 %v798
      %v1355 = vunpack.c.l.b16 %v799
      %v1356 = vunpack.c.l.b16 %v800
      %v1357 = vunpack.c.l.b16 %v801
      %v1358 = vunpack.c.l.b16 %v802
      %v1359 = vunpack.c.l.b16 %v803
      %v1360 = vunpack.c.l.b16 %v804
      %v1361 = vunpack.c.l.b16 %v805
      %v1362 = vunpack.c.l.b16 %v806
      %v1363 = vunpack.c.l.b16 %v807
      %v1364 = vunpack.c.l.b16 %v808
      %v1365 = vunpack.c.l.b16 %v809
      %v1366 = vunpack.c.l.b16 %v810
      %v1367 = vunpack.c.l.b16 %v811
      %v1368 = vunpack.c.l.b16 %v812
      %v1369 = vunpack.c.l.b16 %v813
      %v1370 = vunpack.c.l.b16 %v814
      %v1371 = vunpack.c.l.b16 %v815
      %v1372 = vunpack.c.l.b16 %v816
      %v1373 = vunpack.c.l.b16 %v817
      %v1374 = vunpack.c.l.b16 %v818
      %v1375 = vunpack.c.l.b16 %v819
      %v1376 = vunpack.c.l.b16 %v820
      %v1377 = vunpack.c.l.b16 %v821
      %v1378 = vunpack.c.l.b16 %v822
      %v1379 = vunpack.c.l.b16 %v823
      %v1380 = vunpack.c.l.b16 %v824
      %v1381 = vunpack.c.l.b16 %v825
      %v1382 = vunpack.c.l.b16 %v826
      %v1383 = vunpack.c.l.b16 %v827
      %v1384 = vunpack.c.l.b16 %v828
      %v1385 = vunpack.c.l.b16 %v829
      %v1386 = vunpack.c.l.b16 %v830
      %v1387 = vunpack.c.l.b16 %v831
      %v1388 = vunpack.c.l.b16 %v832
      %v1389 = vunpack.c.l.b16 %v833
      %v1390 = vunpack.c.l.b16 %v834
      %v1391 = vunpack.c.l.b16 %v835
      %v1392 = vunpack.c.l.b16 %v836
      %v1393 = vunpack.c.l.b16 %v837
      %v1394 = vpack.c.b16 %v1347, %v1346
      %v1395 = vpack.c.b16 %v1349, %v1348
      %v1396 = vpack.c.b16 %v1351, %v1350
      %v1397 = vpack.c.b16 %v1353, %v1352
      %v1398 = vpack.c.b16 %v1355, %v1354
      %v1399 = vpack.c.b16 %v1357, %v1356
      %v1400 = vpack.c.b16 %v1359, %v1358
      %v1401 = vpack.c.b16 %v1361, %v1360
      %v1402 = vpack.c.b16 %v1363, %v1362
      %v1403 = vpack.c.b16 %v1365, %v1364
      %v1404 = vpack.c.b16 %v1367, %v1366
      %v1405 = vpack.c.b16 %v1369, %v1368
      %v1406 = vpack.c.b16 %v1371, %v1370
      %v1407 = vpack.c.b16 %v1373, %v1372
      %v1408 = vpack.c.b16 %v1375, %v1374
      %v1409 = vpack.c.b16 %v1377, %v1376
      %v1410 = vpack.c.b16 %v1379, %v1378
      %v1411 = vpack.c.b16 %v1381, %v1380
      %v1412 = vpack.c.b16 %v1383, %v1382
      %v1413 = vpack.c.b16 %v1385, %v1384
      %v1414 = vpack.c.b16 %v1387, %v1386
      %v1415 = vpack.c.b16 %v1389, %v1388
      %v1416 = vpack.c.b16 %v1391, %v1390
      %v1417 = vpack.c.b16 %v1393, %v1392
      %1442 = vmatpush.bf16.msra.mxu0 %v1401
      %1443 = vmatpush.bf16.msra.mxu0 %v1400
      %1444 = vmatpush.bf16.msra.mxu0 %v1399
      %1445 = vmatpush.bf16.msra.mxu0 %v1398
      %1446 = vmatpush.bf16.msra.mxu0 %v1397
      %1447 = vmatpush.bf16.msra.mxu0 %v1396
      %1448 = vmatpush.bf16.msra.mxu0 %v1395
      %1449 = vmatpush.bf16.msra.mxu0 %v1394
      %1450 = vmatmul.bf16.gmra.mxu0 %v392
      %v1451 = vpop.f32.mrf.mxu0
      %v1452 = vadd.f32 %v1219, %v1451
      %v1453 = vpop.f32.mrf.mxu0
      %v1454 = vadd.f32 %v1221, %v1453
      %1455 = vmatmul.bf16.gmra.mxu0 %v393
      %v1456 = vpop.f32.mrf.mxu0
      %v1457 = vadd.f32 %v1224, %v1456
      %v1458 = vpop.f32.mrf.mxu0
      %v1459 = vadd.f32 %v1226, %v1458
      %1460 = vmatmul.bf16.gmra.mxu0 %v394
      %v1461 = vpop.f32.mrf.mxu0
      %v1462 = vadd.f32 %v1229, %v1461
      %v1463 = vpop.f32.mrf.mxu0
      %v1464 = vadd.f32 %v1231, %v1463
      %1465 = vmatmul.bf16.gmra.mxu0 %v395
      %v1466 = vpop.f32.mrf.mxu0
      %v1467 = vadd.f32 %v1234, %v1466
      %v1468 = vpop.f32.mrf.mxu0
      %v1469 = vadd.f32 %v1236, %v1468
      %1470 = vmatmul.bf16.gmra.mxu0 %v396
      %v1471 = vpop.f32.mrf.mxu0
      %v1472 = vadd.f32 %v1239, %v1471
      %v1473 = vpop.f32.mrf.mxu0
      %v1474 = vadd.f32 %v1241, %v1473
      %1475 = vmatmul.bf16.gmra.mxu0 %v397
      %v1476 = vpop.f32.mrf.mxu0
      %v1477 = vadd.f32 %v1244, %v1476
      %v1478 = vpop.f32.mrf.mxu0
      %v1479 = vadd.f32 %v1246, %v1478
      %1480 = vmatmul.bf16.gmra.mxu0 %v398
      %v1481 = vpop.f32.mrf.mxu0
      %v1482 = vadd.f32 %v1249, %v1481
      %v1483 = vpop.f32.mrf.mxu0
      %v1484 = vadd.f32 %v1251, %v1483
      %1485 = vmatmul.bf16.gmra.mxu0 %v399
      %v1486 = vpop.f32.mrf.mxu0
      %v1487 = vadd.f32 %v1254, %v1486
      %v1488 = vpop.f32.mrf.mxu0
      %v1489 = vadd.f32 %v1256, %v1488
      %1490 = vmatmul.bf16.gmra.mxu0 %v400
      %v1491 = vpop.f32.mrf.mxu0
      %v1492 = vadd.f32 %v1259, %v1491
      %v1493 = vpop.f32.mrf.mxu0
      %v1494 = vadd.f32 %v1261, %v1493
      %1495 = vmatmul.bf16.gmra.mxu0 %v401
      %v1496 = vpop.f32.mrf.mxu0
      %v1497 = vadd.f32 %v1264, %v1496
      %v1498 = vpop.f32.mrf.mxu0
      %v1499 = vadd.f32 %v1266, %v1498
      %1500 = vmatmul.bf16.gmra.mxu0 %v402
      %v1501 = vpop.f32.mrf.mxu0
      %v1502 = vadd.f32 %v1269, %v1501
      %v1503 = vpop.f32.mrf.mxu0
      %v1504 = vadd.f32 %v1271, %v1503
      %1505 = vmatmul.bf16.gmra.mxu0 %v403
      %v1506 = vpop.f32.mrf.mxu0
      %v1507 = vadd.f32 %v1274, %v1506
      %v1508 = vpop.f32.mrf.mxu0
      %v1509 = vadd.f32 %v1276, %v1508
      %1510 = vmatmul.bf16.gmra.mxu0 %v404
      %v1511 = vpop.f32.mrf.mxu0
      %v1512 = vadd.f32 %v1279, %v1511
      %v1513 = vpop.f32.mrf.mxu0
      %v1514 = vadd.f32 %v1281, %v1513
      %1515 = vmatmul.bf16.gmra.mxu0 %v405
      %v1516 = vpop.f32.mrf.mxu0
      %v1517 = vadd.f32 %v1284, %v1516
      %v1518 = vpop.f32.mrf.mxu0
      %v1519 = vadd.f32 %v1286, %v1518
      %1520 = vmatmul.bf16.gmra.mxu0 %v406
      %v1521 = vpop.f32.mrf.mxu0
      %v1522 = vadd.f32 %v1289, %v1521
      %v1523 = vpop.f32.mrf.mxu0
      %v1524 = vadd.f32 %v1291, %v1523
      %1525 = vmatmul.bf16.gmra.mxu0 %v407
      %v1526 = vpop.f32.mrf.mxu0
      %v1527 = vadd.f32 %v1294, %v1526
      %v1528 = vpop.f32.mrf.mxu0
      %v1529 = vadd.f32 %v1296, %v1528
      %1530 = vdwg.mxu0
      %1531 = vmatpush.bf16.msra.mxu0 %v1409
      %1532 = vmatpush.bf16.msra.mxu0 %v1408
      %1533 = vmatpush.bf16.msra.mxu0 %v1407
      %1534 = vmatpush.bf16.msra.mxu0 %v1406
      %1535 = vmatpush.bf16.msra.mxu0 %v1405
      %1536 = vmatpush.bf16.msra.mxu0 %v1404
      %1537 = vmatpush.bf16.msra.mxu0 %v1403
      %1538 = vmatpush.bf16.msra.mxu0 %v1402
      %1539 = vmatmul.bf16.gmra.mxu0 %v494
      %v1540 = vpop.f32.mrf.mxu0
      %v1541 = vadd.f32 %v1452, %v1540
      %v1542 = vpop.f32.mrf.mxu0
      %v1543 = vadd.f32 %v1454, %v1542
      %1544 = vmatmul.bf16.gmra.mxu0 %v506
      %v1545 = vpop.f32.mrf.mxu0
      %v1546 = vadd.f32 %v1457, %v1545
      %v1547 = vpop.f32.mrf.mxu0
      %v1548 = vadd.f32 %v1459, %v1547
      %1549 = vmatmul.bf16.gmra.mxu0 %v518
      %v1550 = vpop.f32.mrf.mxu0
      %v1551 = vadd.f32 %v1462, %v1550
      %v1552 = vpop.f32.mrf.mxu0
      %v1553 = vadd.f32 %v1464, %v1552
      %1554 = vmatmul.bf16.gmra.mxu0 %v530
      %v1555 = vpop.f32.mrf.mxu0
      %v1556 = vadd.f32 %v1467, %v1555
      %v1557 = vpop.f32.mrf.mxu0
      %v1558 = vadd.f32 %v1469, %v1557
      %1559 = vmatmul.bf16.gmra.mxu0 %v542
      %v1560 = vpop.f32.mrf.mxu0
      %v1561 = vadd.f32 %v1472, %v1560
      %v1562 = vpop.f32.mrf.mxu0
      %v1563 = vadd.f32 %v1474, %v1562
      %1564 = vmatmul.bf16.gmra.mxu0 %v554
      %v1565 = vpop.f32.mrf.mxu0
      %v1566 = vadd.f32 %v1477, %v1565
      %v1567 = vpop.f32.mrf.mxu0
      %v1568 = vadd.f32 %v1479, %v1567
      %1569 = vmatmul.bf16.gmra.mxu0 %v566
      %v1570 = vpop.f32.mrf.mxu0
      %v1571 = vadd.f32 %v1482, %v1570
      %v1572 = vpop.f32.mrf.mxu0
      %v1573 = vadd.f32 %v1484, %v1572
      %1574 = vmatmul.bf16.gmra.mxu0 %v578
      %v1575 = vpop.f32.mrf.mxu0
      %v1576 = vadd.f32 %v1487, %v1575
      %v1577 = vpop.f32.mrf.mxu0
      %v1578 = vadd.f32 %v1489, %v1577
      %1579 = vmatmul.bf16.gmra.mxu0 %v590
      %v1580 = vpop.f32.mrf.mxu0
      %v1581 = vadd.f32 %v1492, %v1580
      %v1582 = vpop.f32.mrf.mxu0
      %v1583 = vadd.f32 %v1494, %v1582
      %1584 = vmatmul.bf16.gmra.mxu0 %v602
      %v1585 = vpop.f32.mrf.mxu0
      %v1586 = vadd.f32 %v1497, %v1585
      %v1587 = vpop.f32.mrf.mxu0
      %v1588 = vadd.f32 %v1499, %v1587
      %1589 = vmatmul.bf16.gmra.mxu0 %v614
      %v1590 = vpop.f32.mrf.mxu0
      %v1591 = vadd.f32 %v1502, %v1590
      %v1592 = vpop.f32.mrf.mxu0
      %v1593 = vadd.f32 %v1504, %v1592
      %1594 = vmatmul.bf16.gmra.mxu0 %v626
      %v1595 = vpop.f32.mrf.mxu0
      %v1596 = vadd.f32 %v1507, %v1595
      %v1597 = vpop.f32.mrf.mxu0
      %v1598 = vadd.f32 %v1509, %v1597
      %1599 = vmatmul.bf16.gmra.mxu0 %v638
      %v1600 = vpop.f32.mrf.mxu0
      %v1601 = vadd.f32 %v1512, %v1600
      %v1602 = vpop.f32.mrf.mxu0
      %v1603 = vadd.f32 %v1514, %v1602
      %1604 = vmatmul.bf16.gmra.mxu0 %v650
      %v1605 = vpop.f32.mrf.mxu0
      %v1606 = vadd.f32 %v1517, %v1605
      %v1607 = vpop.f32.mrf.mxu0
      %v1608 = vadd.f32 %v1519, %v1607
      %1609 = vmatmul.bf16.gmra.mxu0 %v662
      %v1610 = vpop.f32.mrf.mxu0
      %v1611 = vadd.f32 %v1522, %v1610
      %v1612 = vpop.f32.mrf.mxu0
      %v1613 = vadd.f32 %v1524, %v1612
      %1614 = vmatmul.bf16.gmra.mxu0 %v674
      %v1615 = vpop.f32.mrf.mxu0
      %v1616 = vadd.f32 %v1527, %v1615
      %v1617 = vpop.f32.mrf.mxu0
      %v1618 = vadd.f32 %v1529, %v1617
      %1619 = vdwg.mxu0
      %1620 = vmatpush.bf16.msra.mxu0 %v1417
      %1621 = vmatpush.bf16.msra.mxu0 %v1416
      %1622 = vmatpush.bf16.msra.mxu0 %v1415
      %1623 = vmatpush.bf16.msra.mxu0 %v1414
      %1624 = vmatpush.bf16.msra.mxu0 %v1413
      %1625 = vmatpush.bf16.msra.mxu0 %v1412
      %1626 = vmatpush.bf16.msra.mxu0 %v1411
      %1627 = vmatpush.bf16.msra.mxu0 %v1410
      %1628 = vmatmul.bf16.gmra.mxu0 %v720
      %v1629 = vpop.f32.mrf.mxu0
      %v1630 = vadd.f32 %v1541, %v1629
      %v1631 = vpop.f32.mrf.mxu0
      %v1632 = vadd.f32 %v1543, %v1631
      %1633 = vmatmul.bf16.gmra.mxu0 %v723
      %v1634 = vpop.f32.mrf.mxu0
      %v1635 = vadd.f32 %v1546, %v1634
      %v1636 = vpop.f32.mrf.mxu0
      %v1637 = vadd.f32 %v1548, %v1636
      %1638 = vmatmul.bf16.gmra.mxu0 %v726
      %v1639 = vpop.f32.mrf.mxu0
      %v1640 = vadd.f32 %v1551, %v1639
      %v1641 = vpop.f32.mrf.mxu0
      %v1642 = vadd.f32 %v1553, %v1641
      %1643 = vmatmul.bf16.gmra.mxu0 %v729
      %v1644 = vpop.f32.mrf.mxu0
      %v1645 = vadd.f32 %v1556, %v1644
      %v1646 = vpop.f32.mrf.mxu0
      %v1647 = vadd.f32 %v1558, %v1646
      %1648 = vmatmul.bf16.gmra.mxu0 %v732
      %v1649 = vpop.f32.mrf.mxu0
      %v1650 = vadd.f32 %v1561, %v1649
      %v1651 = vpop.f32.mrf.mxu0
      %v1652 = vadd.f32 %v1563, %v1651
      %1653 = vmatmul.bf16.gmra.mxu0 %v735
      %v1654 = vpop.f32.mrf.mxu0
      %v1655 = vadd.f32 %v1566, %v1654
      %v1656 = vpop.f32.mrf.mxu0
      %v1657 = vadd.f32 %v1568, %v1656
      %1658 = vmatmul.bf16.gmra.mxu0 %v738
      %v1659 = vpop.f32.mrf.mxu0
      %v1660 = vadd.f32 %v1571, %v1659
      %v1661 = vpop.f32.mrf.mxu0
      %v1662 = vadd.f32 %v1573, %v1661
      %1663 = vmatmul.bf16.gmra.mxu0 %v741
      %v1664 = vpop.f32.mrf.mxu0
      %v1665 = vadd.f32 %v1576, %v1664
      %v1666 = vpop.f32.mrf.mxu0
      %v1667 = vadd.f32 %v1578, %v1666
      %1668 = vmatmul.bf16.gmra.mxu0 %v744
      %v1669 = vpop.f32.mrf.mxu0
      %v1670 = vadd.f32 %v1581, %v1669
      %v1671 = vpop.f32.mrf.mxu0
      %v1672 = vadd.f32 %v1583, %v1671
      %1673 = vmatmul.bf16.gmra.mxu0 %v747
      %v1674 = vpop.f32.mrf.mxu0
      %v1675 = vadd.f32 %v1586, %v1674
      %v1676 = vpop.f32.mrf.mxu0
      %v1677 = vadd.f32 %v1588, %v1676
      %1678 = vmatmul.bf16.gmra.mxu0 %v750
      %v1679 = vpop.f32.mrf.mxu0
      %v1680 = vadd.f32 %v1591, %v1679
      %v1681 = vpop.f32.mrf.mxu0
      %v1682 = vadd.f32 %v1593, %v1681
      %1683 = vmatmul.bf16.gmra.mxu0 %v753
      %v1684 = vpop.f32.mrf.mxu0
      %v1685 = vadd.f32 %v1596, %v1684
      %v1686 = vpop.f32.mrf.mxu0
      %v1687 = vadd.f32 %v1598, %v1686
      %1688 = vmatmul.bf16.gmra.mxu0 %v756
      %v1689 = vpop.f32.mrf.mxu0
      %v1690 = vadd.f32 %v1601, %v1689
      %v1691 = vpop.f32.mrf.mxu0
      %v1692 = vadd.f32 %v1603, %v1691
      %1693 = vmatmul.bf16.gmra.mxu0 %v759
      %v1694 = vpop.f32.mrf.mxu0
      %v1695 = vadd.f32 %v1606, %v1694
      %v1696 = vpop.f32.mrf.mxu0
      %v1697 = vadd.f32 %v1608, %v1696
      %1698 = vmatmul.bf16.gmra.mxu0 %v762
      %v1699 = vpop.f32.mrf.mxu0
      %v1700 = vadd.f32 %v1611, %v1699
      %v1701 = vpop.f32.mrf.mxu0
      %v1702 = vadd.f32 %v1613, %v1701
      %1703 = vmatmul.bf16.gmra.mxu0 %v765
      %v1704 = vpop.f32.mrf.mxu0
      %v1705 = vadd.f32 %v1616, %v1704
      %v1706 = vpop.f32.mrf.mxu0
      %v1707 = vadd.f32 %v1618, %v1706
      %1708 = vdwg.mxu0
      %s1709 = scalar_lea.vmem %s243, 384
      %v1710 = vld [vmem:[%s1709] sm:$0xf]
      %v1711 = vld [vmem:[%s1709 + $0x4] sm:$0xf]
      %v1712 = vld [vmem:[%s1709 + $0x8] sm:$0xf]
      %v1713 = vld [vmem:[%s1709 + $0xc] sm:$0xf]
      %v1714 = vld [vmem:[%s1709 + $0x10] sm:$0xf]
      %v1715 = vld [vmem:[%s1709 + $0x14] sm:$0xf]
      %v1716 = vld [vmem:[%s1709 + $0x18] sm:$0xf]
      %v1717 = vld [vmem:[%s1709 + $0x1c] sm:$0xf]
      %v1718 = vld [vmem:[%s1709 + $0x20] sm:$0xf]
      %v1719 = vld [vmem:[%s1709 + $0x24] sm:$0xf]
      %v1720 = vld [vmem:[%s1709 + $0x28] sm:$0xf]
      %v1721 = vld [vmem:[%s1709 + $0x2c] sm:$0xf]
      %v1722 = vld [vmem:[%s1709 + $0x30] sm:$0xf]
      %v1723 = vld [vmem:[%s1709 + $0x34] sm:$0xf]
      %v1724 = vld [vmem:[%s1709 + $0x38] sm:$0xf]
      %v1725 = vld [vmem:[%s1709 + $0x3c] sm:$0xf]
      %v1726 = vld [vmem:[%s1709 + $0x40] sm:$0xf]
      %v1727 = vld [vmem:[%s1709 + $0x44] sm:$0xf]
      %v1728 = vld [vmem:[%s1709 + $0x48] sm:$0xf]
      %v1729 = vld [vmem:[%s1709 + $0x4c] sm:$0xf]
      %v1730 = vld [vmem:[%s1709 + $0x50] sm:$0xf]
      %v1731 = vld [vmem:[%s1709 + $0x54] sm:$0xf]
      %v1732 = vld [vmem:[%s1709 + $0x58] sm:$0xf]
      %v1733 = vld [vmem:[%s1709 + $0x5c] sm:$0xf]
      %v1734 = vld [vmem:[%s1709 + $0x60] sm:$0xf]
      %v1735 = vld [vmem:[%s1709 + $0x64] sm:$0xf]
      %v1736 = vld [vmem:[%s1709 + $0x68] sm:$0xf]
      %v1737 = vld [vmem:[%s1709 + $0x6c] sm:$0xf]
      %v1738 = vld [vmem:[%s1709 + $0x70] sm:$0xf]
      %v1739 = vld [vmem:[%s1709 + $0x74] sm:$0xf]
      %v1740 = vld [vmem:[%s1709 + $0x78] sm:$0xf]
      %v1741 = vld [vmem:[%s1709 + $0x7c] sm:$0xf]
      %v1742 = vld [vmem:[%s1709 + $0x80] sm:$0xf]
      %v1743 = vld [vmem:[%s1709 + $0x84] sm:$0xf]
      %v1744 = vld [vmem:[%s1709 + $0x88] sm:$0xf]
      %v1745 = vld [vmem:[%s1709 + $0x8c] sm:$0xf]
      %v1746 = vld [vmem:[%s1709 + $0x90] sm:$0xf]
      %v1747 = vld [vmem:[%s1709 + $0x94] sm:$0xf]
      %v1748 = vld [vmem:[%s1709 + $0x98] sm:$0xf]
      %v1749 = vld [vmem:[%s1709 + $0x9c] sm:$0xf]
      %v1750 = vld [vmem:[%s1709 + $0xa0] sm:$0xf]
      %v1751 = vld [vmem:[%s1709 + $0xa4] sm:$0xf]
      %v1752 = vld [vmem:[%s1709 + $0xa8] sm:$0xf]
      %v1753 = vld [vmem:[%s1709 + $0xac] sm:$0xf]
      %v1754 = vld [vmem:[%s1709 + $0xb0] sm:$0xf]
      %v1755 = vld [vmem:[%s1709 + $0xb4] sm:$0xf]
      %v1756 = vld [vmem:[%s1709 + $0xb8] sm:$0xf]
      %v1757 = vld [vmem:[%s1709 + $0xbc] sm:$0xf]
      %v1806 = vunpack.c.l.b16 %v1710
      %v1807 = vunpack.c.l.b16 %v1711
      %v1808 = vunpack.c.l.b16 %v1712
      %v1809 = vunpack.c.l.b16 %v1713
      %v1810 = vunpack.c.l.b16 %v1714
      %v1811 = vunpack.c.l.b16 %v1715
      %v1812 = vunpack.c.l.b16 %v1716
      %v1813 = vunpack.c.l.b16 %v1717
      %v1814 = vunpack.c.l.b16 %v1718
      %v1815 = vunpack.c.l.b16 %v1719
      %v1816 = vunpack.c.l.b16 %v1720
      %v1817 = vunpack.c.l.b16 %v1721
      %v1818 = vunpack.c.l.b16 %v1722
      %v1819 = vunpack.c.l.b16 %v1723
      %v1820 = vunpack.c.l.b16 %v1724
      %v1821 = vunpack.c.l.b16 %v1725
      %v1822 = vunpack.c.l.b16 %v1726
      %v1823 = vunpack.c.l.b16 %v1727
      %v1824 = vunpack.c.l.b16 %v1728
      %v1825 = vunpack.c.l.b16 %v1729
      %v1826 = vunpack.c.l.b16 %v1730
      %v1827 = vunpack.c.l.b16 %v1731
      %v1828 = vunpack.c.l.b16 %v1732
      %v1829 = vunpack.c.l.b16 %v1733
      %v1830 = vunpack.c.l.b16 %v1734
      %v1831 = vunpack.c.l.b16 %v1735
      %v1832 = vunpack.c.l.b16 %v1736
      %v1833 = vunpack.c.l.b16 %v1737
      %v1834 = vunpack.c.l.b16 %v1738
      %v1835 = vunpack.c.l.b16 %v1739
      %v1836 = vunpack.c.l.b16 %v1740
      %v1837 = vunpack.c.l.b16 %v1741
      %v1838 = vunpack.c.l.b16 %v1742
      %v1839 = vunpack.c.l.b16 %v1743
      %v1840 = vunpack.c.l.b16 %v1744
      %v1841 = vunpack.c.l.b16 %v1745
      %v1842 = vunpack.c.l.b16 %v1746
      %v1843 = vunpack.c.l.b16 %v1747
      %v1844 = vunpack.c.l.b16 %v1748
      %v1845 = vunpack.c.l.b16 %v1749
      %v1846 = vunpack.c.l.b16 %v1750
      %v1847 = vunpack.c.l.b16 %v1751
      %v1848 = vunpack.c.l.b16 %v1752
      %v1849 = vunpack.c.l.b16 %v1753
      %v1850 = vunpack.c.l.b16 %v1754
      %v1851 = vunpack.c.l.b16 %v1755
      %v1852 = vunpack.c.l.b16 %v1756
      %v1853 = vunpack.c.l.b16 %v1757
      %v1854 = vpack.c.b16 %v1807, %v1806
      %v1855 = vpack.c.b16 %v1809, %v1808
      %v1856 = vpack.c.b16 %v1811, %v1810
      %v1857 = vpack.c.b16 %v1813, %v1812
      %v1858 = vpack.c.b16 %v1815, %v1814
      %v1859 = vpack.c.b16 %v1817, %v1816
      %v1860 = vpack.c.b16 %v1819, %v1818
      %v1861 = vpack.c.b16 %v1821, %v1820
      %v1862 = vpack.c.b16 %v1823, %v1822
      %v1863 = vpack.c.b16 %v1825, %v1824
      %v1864 = vpack.c.b16 %v1827, %v1826
      %v1865 = vpack.c.b16 %v1829, %v1828
      %v1866 = vpack.c.b16 %v1831, %v1830
      %v1867 = vpack.c.b16 %v1833, %v1832
      %v1868 = vpack.c.b16 %v1835, %v1834
      %v1869 = vpack.c.b16 %v1837, %v1836
      %v1870 = vpack.c.b16 %v1839, %v1838
      %v1871 = vpack.c.b16 %v1841, %v1840
      %v1872 = vpack.c.b16 %v1843, %v1842
      %v1873 = vpack.c.b16 %v1845, %v1844
      %v1874 = vpack.c.b16 %v1847, %v1846
      %v1875 = vpack.c.b16 %v1849, %v1848
      %v1876 = vpack.c.b16 %v1851, %v1850
      %v1877 = vpack.c.b16 %v1853, %v1852
      %1902 = vmatpush.bf16.msra.mxu0 %v1861
      %1903 = vmatpush.bf16.msra.mxu0 %v1860
      %1904 = vmatpush.bf16.msra.mxu0 %v1859
      %1905 = vmatpush.bf16.msra.mxu0 %v1858
      %1906 = vmatpush.bf16.msra.mxu0 %v1857
      %1907 = vmatpush.bf16.msra.mxu0 %v1856
      %1908 = vmatpush.bf16.msra.mxu0 %v1855
      %1909 = vmatpush.bf16.msra.mxu0 %v1854
      %1910 = vmatmul.bf16.gmra.mxu0 %v394
      %v1911 = vpop.f32.mrf.mxu0
      %v1912 = vadd.f32 0.0, %v1911
      %v1913 = vpop.f32.mrf.mxu0
      %v1914 = vadd.f32 0.0, %v1913
      %1915 = vmatmul.bf16.gmra.mxu0 %v395
      %v1916 = vpop.f32.mrf.mxu0
      %v1917 = vadd.f32 0.0, %v1916
      %v1918 = vpop.f32.mrf.mxu0
      %v1919 = vadd.f32 0.0, %v1918
      %1920 = vmatmul.bf16.gmra.mxu0 %v396
      %v1921 = vpop.f32.mrf.mxu0
      %v1922 = vadd.f32 0.0, %v1921
      %v1923 = vpop.f32.mrf.mxu0
      %v1924 = vadd.f32 0.0, %v1923
      %1925 = vmatmul.bf16.gmra.mxu0 %v397
      %v1926 = vpop.f32.mrf.mxu0
      %v1927 = vadd.f32 0.0, %v1926
      %v1928 = vpop.f32.mrf.mxu0
      %v1929 = vadd.f32 0.0, %v1928
      %1930 = vmatmul.bf16.gmra.mxu0 %v398
      %v1931 = vpop.f32.mrf.mxu0
      %v1932 = vadd.f32 0.0, %v1931
      %v1933 = vpop.f32.mrf.mxu0
      %v1934 = vadd.f32 0.0, %v1933
      %1935 = vmatmul.bf16.gmra.mxu0 %v399
      %v1936 = vpop.f32.mrf.mxu0
      %v1937 = vadd.f32 0.0, %v1936
      %v1938 = vpop.f32.mrf.mxu0
      %v1939 = vadd.f32 0.0, %v1938
      %1940 = vmatmul.bf16.gmra.mxu0 %v400
      %v1941 = vpop.f32.mrf.mxu0
      %v1942 = vadd.f32 0.0, %v1941
      %v1943 = vpop.f32.mrf.mxu0
      %v1944 = vadd.f32 0.0, %v1943
      %1945 = vmatmul.bf16.gmra.mxu0 %v401
      %v1946 = vpop.f32.mrf.mxu0
      %v1947 = vadd.f32 0.0, %v1946
      %v1948 = vpop.f32.mrf.mxu0
      %v1949 = vadd.f32 0.0, %v1948
      %1950 = vmatmul.bf16.gmra.mxu0 %v402
      %v1951 = vpop.f32.mrf.mxu0
      %v1952 = vadd.f32 0.0, %v1951
      %v1953 = vpop.f32.mrf.mxu0
      %v1954 = vadd.f32 0.0, %v1953
      %1955 = vmatmul.bf16.gmra.mxu0 %v403
      %v1956 = vpop.f32.mrf.mxu0
      %v1957 = vadd.f32 0.0, %v1956
      %v1958 = vpop.f32.mrf.mxu0
      %v1959 = vadd.f32 0.0, %v1958
      %1960 = vmatmul.bf16.gmra.mxu0 %v404
      %v1961 = vpop.f32.mrf.mxu0
      %v1962 = vadd.f32 0.0, %v1961
      %v1963 = vpop.f32.mrf.mxu0
      %v1964 = vadd.f32 0.0, %v1963
      %1965 = vmatmul.bf16.gmra.mxu0 %v405
      %v1966 = vpop.f32.mrf.mxu0
      %v1967 = vadd.f32 0.0, %v1966
      %v1968 = vpop.f32.mrf.mxu0
      %v1969 = vadd.f32 0.0, %v1968
      %1970 = vmatmul.bf16.gmra.mxu0 %v406
      %v1971 = vpop.f32.mrf.mxu0
      %v1972 = vadd.f32 0.0, %v1971
      %v1973 = vpop.f32.mrf.mxu0
      %v1974 = vadd.f32 0.0, %v1973
      %1975 = vmatmul.bf16.gmra.mxu0 %v407
      %v1976 = vpop.f32.mrf.mxu0
      %v1977 = vadd.f32 0.0, %v1976
      %v1978 = vpop.f32.mrf.mxu0
      %v1979 = vadd.f32 0.0, %v1978
      %1980 = vmatmul.bf16.gmra.mxu0 %v408
      %v1981 = vpop.f32.mrf.mxu0
      %v1982 = vadd.f32 0.0, %v1981
      %v1983 = vpop.f32.mrf.mxu0
      %v1984 = vadd.f32 0.0, %v1983
      %1985 = vmatmul.bf16.gmra.mxu0 %v409
      %v1986 = vpop.f32.mrf.mxu0
      %v1987 = vadd.f32 0.0, %v1986
      %v1988 = vpop.f32.mrf.mxu0
      %v1989 = vadd.f32 0.0, %v1988
      %1990 = vdwg.mxu0
      %1991 = vmatpush.bf16.msra.mxu0 %v1869
      %1992 = vmatpush.bf16.msra.mxu0 %v1868
      %1993 = vmatpush.bf16.msra.mxu0 %v1867
      %1994 = vmatpush.bf16.msra.mxu0 %v1866
      %1995 = vmatpush.bf16.msra.mxu0 %v1865
      %1996 = vmatpush.bf16.msra.mxu0 %v1864
      %1997 = vmatpush.bf16.msra.mxu0 %v1863
      %1998 = vmatpush.bf16.msra.mxu0 %v1862
      %1999 = vmatmul.bf16.gmra.mxu0 %v518
      %v2000 = vpop.f32.mrf.mxu0
      %v2001 = vadd.f32 %v1912, %v2000
      %v2002 = vpop.f32.mrf.mxu0
      %v2003 = vadd.f32 %v1914, %v2002
      %2004 = vmatmul.bf16.gmra.mxu0 %v530
      %v2005 = vpop.f32.mrf.mxu0
      %v2006 = vadd.f32 %v1917, %v2005
      %v2007 = vpop.f32.mrf.mxu0
      %v2008 = vadd.f32 %v1919, %v2007
      %2009 = vmatmul.bf16.gmra.mxu0 %v542
      %v2010 = vpop.f32.mrf.mxu0
      %v2011 = vadd.f32 %v1922, %v2010
      %v2012 = vpop.f32.mrf.mxu0
      %v2013 = vadd.f32 %v1924, %v2012
      %2014 = vmatmul.bf16.gmra.mxu0 %v554
      %v2015 = vpop.f32.mrf.mxu0
      %v2016 = vadd.f32 %v1927, %v2015
      %v2017 = vpop.f32.mrf.mxu0
      %v2018 = vadd.f32 %v1929, %v2017
      %2019 = vmatmul.bf16.gmra.mxu0 %v566
      %v2020 = vpop.f32.mrf.mxu0
      %v2021 = vadd.f32 %v1932, %v2020
      %v2022 = vpop.f32.mrf.mxu0
      %v2023 = vadd.f32 %v1934, %v2022
      %2024 = vmatmul.bf16.gmra.mxu0 %v578
      %v2025 = vpop.f32.mrf.mxu0
      %v2026 = vadd.f32 %v1937, %v2025
      %v2027 = vpop.f32.mrf.mxu0
      %v2028 = vadd.f32 %v1939, %v2027
      %2029 = vmatmul.bf16.gmra.mxu0 %v590
      %v2030 = vpop.f32.mrf.mxu0
      %v2031 = vadd.f32 %v1942, %v2030
      %v2032 = vpop.f32.mrf.mxu0
      %v2033 = vadd.f32 %v1944, %v2032
      %2034 = vmatmul.bf16.gmra.mxu0 %v602
      %v2035 = vpop.f32.mrf.mxu0
      %v2036 = vadd.f32 %v1947, %v2035
      %v2037 = vpop.f32.mrf.mxu0
      %v2038 = vadd.f32 %v1949, %v2037
      %2039 = vmatmul.bf16.gmra.mxu0 %v614
      %v2040 = vpop.f32.mrf.mxu0
      %v2041 = vadd.f32 %v1952, %v2040
      %v2042 = vpop.f32.mrf.mxu0
      %v2043 = vadd.f32 %v1954, %v2042
      %2044 = vmatmul.bf16.gmra.mxu0 %v626
      %v2045 = vpop.f32.mrf.mxu0
      %v2046 = vadd.f32 %v1957, %v2045
      %v2047 = vpop.f32.mrf.mxu0
      %v2048 = vadd.f32 %v1959, %v2047
      %2049 = vmatmul.bf16.gmra.mxu0 %v638
      %v2050 = vpop.f32.mrf.mxu0
      %v2051 = vadd.f32 %v1962, %v2050
      %v2052 = vpop.f32.mrf.mxu0
      %v2053 = vadd.f32 %v1964, %v2052
      %2054 = vmatmul.bf16.gmra.mxu0 %v650
      %v2055 = vpop.f32.mrf.mxu0
      %v2056 = vadd.f32 %v1967, %v2055
      %v2057 = vpop.f32.mrf.mxu0
      %v2058 = vadd.f32 %v1969, %v2057
      %2059 = vmatmul.bf16.gmra.mxu0 %v662
      %v2060 = vpop.f32.mrf.mxu0
      %v2061 = vadd.f32 %v1972, %v2060
      %v2062 = vpop.f32.mrf.mxu0
      %v2063 = vadd.f32 %v1974, %v2062
      %2064 = vmatmul.bf16.gmra.mxu0 %v674
      %v2065 = vpop.f32.mrf.mxu0
      %v2066 = vadd.f32 %v1977, %v2065
      %v2067 = vpop.f32.mrf.mxu0
      %v2068 = vadd.f32 %v1979, %v2067
      %2069 = vmatmul.bf16.gmra.mxu0 %v686
      %v2070 = vpop.f32.mrf.mxu0
      %v2071 = vadd.f32 %v1982, %v2070
      %v2072 = vpop.f32.mrf.mxu0
      %v2073 = vadd.f32 %v1984, %v2072
      %2074 = vmatmul.bf16.gmra.mxu0 %v698
      %v2075 = vpop.f32.mrf.mxu0
      %v2076 = vadd.f32 %v1987, %v2075
      %v2077 = vpop.f32.mrf.mxu0
      %v2078 = vadd.f32 %v1989, %v2077
      %2079 = vdwg.mxu0
      %2080 = vmatpush.bf16.msra.mxu0 %v1877
      %2081 = vmatpush.bf16.msra.mxu0 %v1876
      %2082 = vmatpush.bf16.msra.mxu0 %v1875
      %2083 = vmatpush.bf16.msra.mxu0 %v1874
      %2084 = vmatpush.bf16.msra.mxu0 %v1873
      %2085 = vmatpush.bf16.msra.mxu0 %v1872
      %2086 = vmatpush.bf16.msra.mxu0 %v1871
      %2087 = vmatpush.bf16.msra.mxu0 %v1870
      %2088 = vmatmul.bf16.gmra.mxu0 %v726
      %v2089 = vpop.f32.mrf.mxu0
      %v2090 = vadd.f32 %v2001, %v2089
      %v2091 = vpop.f32.mrf.mxu0
      %v2092 = vadd.f32 %v2003, %v2091
      %2093 = vmatmul.bf16.gmra.mxu0 %v729
      %v2094 = vpop.f32.mrf.mxu0
      %v2095 = vadd.f32 %v2006, %v2094
      %v2096 = vpop.f32.mrf.mxu0
      %v2097 = vadd.f32 %v2008, %v2096
      %2098 = vmatmul.bf16.gmra.mxu0 %v732
      %v2099 = vpop.f32.mrf.mxu0
      %v2100 = vadd.f32 %v2011, %v2099
      %v2101 = vpop.f32.mrf.mxu0
      %v2102 = vadd.f32 %v2013, %v2101
      %2103 = vmatmul.bf16.gmra.mxu0 %v735
      %v2104 = vpop.f32.mrf.mxu0
      %v2105 = vadd.f32 %v2016, %v2104
      %v2106 = vpop.f32.mrf.mxu0
      %v2107 = vadd.f32 %v2018, %v2106
      %2108 = vmatmul.bf16.gmra.mxu0 %v738
      %v2109 = vpop.f32.mrf.mxu0
      %v2110 = vadd.f32 %v2021, %v2109
      %v2111 = vpop.f32.mrf.mxu0
      %v2112 = vadd.f32 %v2023, %v2111
      %2113 = vmatmul.bf16.gmra.mxu0 %v741
      %v2114 = vpop.f32.mrf.mxu0
      %v2115 = vadd.f32 %v2026, %v2114
      %v2116 = vpop.f32.mrf.mxu0
      %v2117 = vadd.f32 %v2028, %v2116
      %2118 = vmatmul.bf16.gmra.mxu0 %v744
      %v2119 = vpop.f32.mrf.mxu0
      %v2120 = vadd.f32 %v2031, %v2119
      %v2121 = vpop.f32.mrf.mxu0
      %v2122 = vadd.f32 %v2033, %v2121
      %2123 = vmatmul.bf16.gmra.mxu0 %v747
      %v2124 = vpop.f32.mrf.mxu0
      %v2125 = vadd.f32 %v2036, %v2124
      %v2126 = vpop.f32.mrf.mxu0
      %v2127 = vadd.f32 %v2038, %v2126
      %2128 = vmatmul.bf16.gmra.mxu0 %v750
      %v2129 = vpop.f32.mrf.mxu0
      %v2130 = vadd.f32 %v2041, %v2129
      %v2131 = vpop.f32.mrf.mxu0
      %v2132 = vadd.f32 %v2043, %v2131
      %2133 = vmatmul.bf16.gmra.mxu0 %v753
      %v2134 = vpop.f32.mrf.mxu0
      %v2135 = vadd.f32 %v2046, %v2134
      %v2136 = vpop.f32.mrf.mxu0
      %v2137 = vadd.f32 %v2048, %v2136
      %2138 = vmatmul.bf16.gmra.mxu0 %v756
      %v2139 = vpop.f32.mrf.mxu0
      %v2140 = vadd.f32 %v2051, %v2139
      %v2141 = vpop.f32.mrf.mxu0
      %v2142 = vadd.f32 %v2053, %v2141
      %2143 = vmatmul.bf16.gmra.mxu0 %v759
      %v2144 = vpop.f32.mrf.mxu0
      %v2145 = vadd.f32 %v2056, %v2144
      %v2146 = vpop.f32.mrf.mxu0
      %v2147 = vadd.f32 %v2058, %v2146
      %2148 = vmatmul.bf16.gmra.mxu0 %v762
      %v2149 = vpop.f32.mrf.mxu0
      %v2150 = vadd.f32 %v2061, %v2149
      %v2151 = vpop.f32.mrf.mxu0
      %v2152 = vadd.f32 %v2063, %v2151
      %2153 = vmatmul.bf16.gmra.mxu0 %v765
      %v2154 = vpop.f32.mrf.mxu0
      %v2155 = vadd.f32 %v2066, %v2154
      %v2156 = vpop.f32.mrf.mxu0
      %v2157 = vadd.f32 %v2068, %v2156
      %2158 = vmatmul.bf16.gmra.mxu0 %v768
      %v2159 = vpop.f32.mrf.mxu0
      %v2160 = vadd.f32 %v2071, %v2159
      %v2161 = vpop.f32.mrf.mxu0
      %v2162 = vadd.f32 %v2073, %v2161
      %2163 = vmatmul.bf16.gmra.mxu0 %v771
      %v2164 = vpop.f32.mrf.mxu0
      %v2165 = vadd.f32 %v2076, %v2164
      %v2166 = vpop.f32.mrf.mxu0
      %v2167 = vadd.f32 %v2078, %v2166
      %2168 = vdwg.mxu0
      %v2169 = vadd.f32 %v1630, %v2090
      %v2170 = vadd.f32 %v1632, %v2092
      %v2171 = vadd.f32 %v1635, %v2095
      %v2172 = vadd.f32 %v1637, %v2097
      %v2173 = vadd.f32 %v1640, %v2100
      %v2174 = vadd.f32 %v1642, %v2102
      %v2175 = vadd.f32 %v1645, %v2105
      %v2176 = vadd.f32 %v1647, %v2107
      %v2177 = vadd.f32 %v1650, %v2110
      %v2178 = vadd.f32 %v1652, %v2112
      %v2179 = vadd.f32 %v1655, %v2115
      %v2180 = vadd.f32 %v1657, %v2117
      %v2181 = vadd.f32 %v1660, %v2120
      %v2182 = vadd.f32 %v1662, %v2122
      %v2183 = vadd.f32 %v1665, %v2125
      %v2184 = vadd.f32 %v1667, %v2127
      %v2185 = vadd.f32 %v1670, %v2130
      %v2186 = vadd.f32 %v1672, %v2132
      %v2187 = vadd.f32 %v1675, %v2135
      %v2188 = vadd.f32 %v1677, %v2137
      %v2189 = vadd.f32 %v1680, %v2140
      %v2190 = vadd.f32 %v1682, %v2142
      %v2191 = vadd.f32 %v1685, %v2145
      %v2192 = vadd.f32 %v1687, %v2147
      %v2193 = vadd.f32 %v1690, %v2150
      %v2194 = vadd.f32 %v1692, %v2152
      %v2195 = vadd.f32 %v1695, %v2155
      %v2196 = vadd.f32 %v1697, %v2157
      %v2197 = vadd.f32 %v1700, %v2160
      %v2198 = vadd.f32 %v1702, %v2162
      %v2199 = vadd.f32 %v1705, %v2165
      %v2200 = vadd.f32 %v1707, %v2167
      %v2201 = vpack.c.bf16 %v2169, %v2169
      %v2202 = vpack.c.bf16 %v2170, %v2170
      %v2203 = vpack.c.bf16 %v2171, %v2171
      %v2204 = vpack.c.bf16 %v2172, %v2172
      %v2205 = vpack.c.bf16 %v2173, %v2173
      %v2206 = vpack.c.bf16 %v2174, %v2174
      %v2207 = vpack.c.bf16 %v2175, %v2175
      %v2208 = vpack.c.bf16 %v2176, %v2176
      %v2209 = vpack.c.bf16 %v2177, %v2177
      %v2210 = vpack.c.bf16 %v2178, %v2178
      %v2211 = vpack.c.bf16 %v2179, %v2179
      %v2212 = vpack.c.bf16 %v2180, %v2180
      %v2213 = vpack.c.bf16 %v2181, %v2181
      %v2214 = vpack.c.bf16 %v2182, %v2182
      %v2215 = vpack.c.bf16 %v2183, %v2183
      %v2216 = vpack.c.bf16 %v2184, %v2184
      %v2217 = vpack.c.bf16 %v2185, %v2185
      %v2218 = vpack.c.bf16 %v2186, %v2186
      %v2219 = vpack.c.bf16 %v2187, %v2187
      %v2220 = vpack.c.bf16 %v2188, %v2188
      %v2221 = vpack.c.bf16 %v2189, %v2189
      %v2222 = vpack.c.bf16 %v2190, %v2190
      %v2223 = vpack.c.bf16 %v2191, %v2191
      %v2224 = vpack.c.bf16 %v2192, %v2192
      %v2225 = vpack.c.bf16 %v2193, %v2193
      %v2226 = vpack.c.bf16 %v2194, %v2194
      %v2227 = vpack.c.bf16 %v2195, %v2195
      %v2228 = vpack.c.bf16 %v2196, %v2196
      %v2229 = vpack.c.bf16 %v2197, %v2197
      %v2230 = vpack.c.bf16 %v2198, %v2198
      %v2231 = vpack.c.bf16 %v2199, %v2199
      %v2232 = vpack.c.bf16 %v2200, %v2200
      %2233 = vst [vmem:[%s255] sm:$0xf] %v2201
      %2234 = vst [vmem:[%s255 + $0x4] sm:$0xf] %v2202
      %2235 = vst [vmem:[%s255 + $0x8] sm:$0xf] %v2203
      %2236 = vst [vmem:[%s255 + $0xc] sm:$0xf] %v2204
      %2237 = vst [vmem:[%s255 + $0x10] sm:$0xf] %v2205
      %2238 = vst [vmem:[%s255 + $0x14] sm:$0xf] %v2206
      %2239 = vst [vmem:[%s255 + $0x18] sm:$0xf] %v2207
      %2240 = vst [vmem:[%s255 + $0x1c] sm:$0xf] %v2208
      %2241 = vst [vmem:[%s255 + $0x20] sm:$0xf] %v2209
      %2242 = vst [vmem:[%s255 + $0x24] sm:$0xf] %v2210
      %2243 = vst [vmem:[%s255 + $0x28] sm:$0xf] %v2211
      %2244 = vst [vmem:[%s255 + $0x2c] sm:$0xf] %v2212
      %2245 = vst [vmem:[%s255 + $0x30] sm:$0xf] %v2213
      %2246 = vst [vmem:[%s255 + $0x34] sm:$0xf] %v2214
      %2247 = vst [vmem:[%s255 + $0x38] sm:$0xf] %v2215
      %2248 = vst [vmem:[%s255 + $0x3c] sm:$0xf] %v2216
      %2249 = vst [vmem:[%s255 + $0x40] sm:$0xf] %v2217
      %2250 = vst [vmem:[%s255 + $0x44] sm:$0xf] %v2218
      %2251 = vst [vmem:[%s255 + $0x48] sm:$0xf] %v2219
      %2252 = vst [vmem:[%s255 + $0x4c] sm:$0xf] %v2220
      %2253 = vst [vmem:[%s255 + $0x50] sm:$0xf] %v2221
      %2254 = vst [vmem:[%s255 + $0x54] sm:$0xf] %v2222
      %2255 = vst [vmem:[%s255 + $0x58] sm:$0xf] %v2223
      %2256 = vst [vmem:[%s255 + $0x5c] sm:$0xf] %v2224
      %2257 = vst [vmem:[%s255 + $0x60] sm:$0xf] %v2225
      %2258 = vst [vmem:[%s255 + $0x64] sm:$0xf] %v2226
      %2259 = vst [vmem:[%s255 + $0x68] sm:$0xf] %v2227
      %2260 = vst [vmem:[%s255 + $0x6c] sm:$0xf] %v2228
      %2261 = vst [vmem:[%s255 + $0x70] sm:$0xf] %v2229
      %2262 = vst [vmem:[%s255 + $0x74] sm:$0xf] %v2230
      %2263 = vst [vmem:[%s255 + $0x78] sm:$0xf] %v2231
      %2264 = vst [vmem:[%s255 + $0x7c] sm:$0xf] %v2232
      %v2265 = vadd.f32 %v2169, %v2170
      %v2266 = vadd.f32 %v2265, %v2171
      %v2267 = vadd.f32 %v2266, %v2172
      %v2268 = vadd.f32 %v2267, %v2173
      %v2269 = vadd.f32 %v2268, %v2174
      %v2270 = vadd.f32 %v2269, %v2175
      %v2271 = vadd.f32 %v2270, %v2176
      %v2272 = vadd.f32 %v2271, %v2177
      %v2273 = vadd.f32 %v2272, %v2178
      %v2274 = vadd.f32 %v2273, %v2179
      %v2275 = vadd.f32 %v2274, %v2180
      %v2276 = vadd.f32 %v2275, %v2181
      %v2277 = vadd.f32 %v2276, %v2182
      %v2278 = vadd.f32 %v2277, %v2183
      %v2279 = vadd.f32 %v2278, %v2184
      %v2280 = vadd.f32 %v2279, %v2185
      %v2281 = vadd.f32 %v2280, %v2186
      %v2282 = vadd.f32 %v2281, %v2187
      %v2283 = vadd.f32 %v2282, %v2188
      %v2284 = vadd.f32 %v2283, %v2189
      %v2285 = vadd.f32 %v2284, %v2190
      %v2286 = vadd.f32 %v2285, %v2191
      %v2287 = vadd.f32 %v2286, %v2192
      %v2288 = vadd.f32 %v2287, %v2193
      %v2289 = vadd.f32 %v2288, %v2194
      %v2290 = vadd.f32 %v2289, %v2195
      %v2291 = vadd.f32 %v2290, %v2196
      %v2292 = vadd.f32 %v2291, %v2197
      %v2293 = vadd.f32 %v2292, %v2198
      %v2294 = vadd.f32 %v2293, %v2199
      %v2295 = vadd.f32 %v2294, %v2200
      %v2296 = vrot.slane %v2295, 4
      %v2297 = vadd.f32 %v2295, %v2296
      %v2298 = vrot.slane %v2297, 2
      %v2299 = vadd.f32 %v2297, %v2298
      %v2300 = vrot.slane %v2299, 1
      %v2301 = vadd.f32 %v2299, %v2300
      %v2302 = vmul.f32 %v2169, %v2169
      %v2303 = vmul.f32 %v2170, %v2170
      %v2304 = vmul.f32 %v2171, %v2171
      %v2305 = vmul.f32 %v2172, %v2172
      %v2306 = vmul.f32 %v2173, %v2173
      %v2307 = vmul.f32 %v2174, %v2174
      %v2308 = vmul.f32 %v2175, %v2175
      %v2309 = vmul.f32 %v2176, %v2176
      %v2310 = vmul.f32 %v2177, %v2177
      %v2311 = vmul.f32 %v2178, %v2178
      %v2312 = vmul.f32 %v2179, %v2179
      %v2313 = vmul.f32 %v2180, %v2180
      %v2314 = vmul.f32 %v2181, %v2181
      %v2315 = vmul.f32 %v2182, %v2182
      %v2316 = vmul.f32 %v2183, %v2183
      %v2317 = vmul.f32 %v2184, %v2184
      %v2318 = vmul.f32 %v2185, %v2185
      %v2319 = vmul.f32 %v2186, %v2186
      %v2320 = vmul.f32 %v2187, %v2187
      %v2321 = vmul.f32 %v2188, %v2188
      %v2322 = vmul.f32 %v2189, %v2189
      %v2323 = vmul.f32 %v2190, %v2190
      %v2324 = vmul.f32 %v2191, %v2191
      %v2325 = vmul.f32 %v2192, %v2192
      %v2326 = vmul.f32 %v2193, %v2193
      %v2327 = vmul.f32 %v2194, %v2194
      %v2328 = vmul.f32 %v2195, %v2195
      %v2329 = vmul.f32 %v2196, %v2196
      %v2330 = vmul.f32 %v2197, %v2197
      %v2331 = vmul.f32 %v2198, %v2198
      %v2332 = vmul.f32 %v2199, %v2199
      %v2333 = vmul.f32 %v2200, %v2200
      %v2334 = vadd.f32 %v2302, %v2303
      %v2335 = vadd.f32 %v2334, %v2304
      %v2336 = vadd.f32 %v2335, %v2305
      %v2337 = vadd.f32 %v2336, %v2306
      %v2338 = vadd.f32 %v2337, %v2307
      %v2339 = vadd.f32 %v2338, %v2308
      %v2340 = vadd.f32 %v2339, %v2309
      %v2341 = vadd.f32 %v2340, %v2310
      %v2342 = vadd.f32 %v2341, %v2311
      %v2343 = vadd.f32 %v2342, %v2312
      %v2344 = vadd.f32 %v2343, %v2313
      %v2345 = vadd.f32 %v2344, %v2314
      %v2346 = vadd.f32 %v2345, %v2315
      %v2347 = vadd.f32 %v2346, %v2316
      %v2348 = vadd.f32 %v2347, %v2317
      %v2349 = vadd.f32 %v2348, %v2318
      %v2350 = vadd.f32 %v2349, %v2319
      %v2351 = vadd.f32 %v2350, %v2320
      %v2352 = vadd.f32 %v2351, %v2321
      %v2353 = vadd.f32 %v2352, %v2322
      %v2354 = vadd.f32 %v2353, %v2323
      %v2355 = vadd.f32 %v2354, %v2324
      %v2356 = vadd.f32 %v2355, %v2325
      %v2357 = vadd.f32 %v2356, %v2326
      %v2358 = vadd.f32 %v2357, %v2327
      %v2359 = vadd.f32 %v2358, %v2328
      %v2360 = vadd.f32 %v2359, %v2329
      %v2361 = vadd.f32 %v2360, %v2330
      %v2362 = vadd.f32 %v2361, %v2331
      %v2363 = vadd.f32 %v2362, %v2332
      %v2364 = vadd.f32 %v2363, %v2333
      %v2365 = vrot.slane %v2364, 4
      %v2366 = vadd.f32 %v2364, %v2365
      %v2367 = vrot.slane %v2366, 2
      %v2368 = vadd.f32 %v2366, %v2367
      %v2369 = vrot.slane %v2368, 1
      %v2370 = vadd.f32 %v2368, %v2369
      %vm2371 = vcmask 1040384
      %v2372 = vsel %vm2371, %v2301, %v2370
      %2373 = vst [vmem:[%s265] sm:$0x3] %v2372
      %p2374 = scmp.lt.s32.totalorder %s21, 1
      %s2375 = scalar_select %p2374, %s21, 1
      %p2376 = scmp.lt.s32.totalorder %s22, 0
      %s2377 = scalar_select %p2376, %s22, 0
      %p2378 = scmp.lt.s32.totalorder %s20, 0
      %s2379 = scalar_select %p2378, %s20, 0
      %s2380 = smul.addr %s2377, 32
      %s2381 = sadd.s32 %s2379, %s2380
      %s2382 = smul.addr %s2375, 32
      %s2383 = sadd.s32 %s2381, %s2382
      %s2384 = smul.addr %s2383, 4
      %s2385 = scalar_lea.vmem %s2, %s2384
      %p2386 = scmp.lt.s32.totalorder %s21, 1
      %s2387 = scalar_select %p2386, %s21, 1
      %p2388 = scmp.lt.s32.totalorder %s22, 0
      %s2389 = scalar_select %p2388, %s22, 0
      %p2390 = scmp.lt.s32.totalorder %s20, 0
      %s2391 = scalar_select %p2390, %s20, 0
      %s2392 = sadd.s32 %s2391, %s2389
      %s2393 = sadd.s32 %s2392, %s2387
      %s2394 = smul.addr %s2393, 2
      %s2395 = scalar_lea.vmem %s3, %s2394
      // Predicated region
      $region29: #{rrcnn_forward.14} parent=27 // pred_check
        %p2396 = pneg %p110
      $region30: #{rrcnn_forward.14} parent=27 // pred_check_branch
        %2398 = sbr.rel (%p2396) target = $region32
      $region31: #{rrcnn_forward.14} parent=27 // pred_region
        _
      $region32: #{rrcnn_forward.14} parent=27 // pred_fallthru
        _
      // Predicated region
      $region33: #{rrcnn_forward.14} parent=27 // pred_check
        %p2399 = pneg %p140
      $region34: #{rrcnn_forward.14} parent=27 // pred_check_branch
        %2401 = sbr.rel (%p2399) target = $region36
      $region35: #{rrcnn_forward.14} parent=27 // pred_region
        _
      $region36: #{rrcnn_forward.14} parent=27 // pred_fallthru
        _
    $region28: #{rrcnn_forward.14} parent=5 // pred_fallthru
      _
    %p2402 = scmp.le.s32.totalorder 2, %s10
    // Predicated region
    $region37: #{rrcnn_forward.14} parent=5 // pred_check
      %p2403 = pneg %p2402
    $region38: #{rrcnn_forward.14} parent=5 // pred_check_branch
      %2405 = sbr.rel (%p2403) target = $region40
    $region39: #{rrcnn_forward.14} parent=5 // pred_region
      %s2406 = ssub.s32 %s10, 2
      // Predicated region
      $region41: #{rrcnn_forward.14} parent=39 // pred_check
        %p2407 = pneg %p116
      $region42: #{rrcnn_forward.14} parent=39 // pred_check_branch
        %2409 = sbr.rel (%p2407) target = $region44
      $region43: #{rrcnn_forward.14} parent=39 // pred_region
        %p2410 = scmp.lt.s32.totalorder %s24, 1
        %s2411 = scalar_select %p2410, %s24, 1
        %p2412 = scmp.lt.s32.totalorder %s25, 0
        %s2413 = scalar_select %p2412, %s25, 0
        %p2414 = scmp.lt.s32.totalorder %s23, 0
        %s2415 = scalar_select %p2414, %s23, 0
        %s2416 = smul.addr %s2413, 32
        %s2417 = sadd.s32 %s2415, %s2416
        %s2418 = smul.addr %s2411, 32
        %s2419 = sadd.s32 %s2417, %s2418
        %s2420 = smul.addr %s2419, 4
        %s2421 = scalar_lea.vmem %s2, %s2420
      $region44: #{rrcnn_forward.14} parent=39 // pred_fallthru
        _
      // Predicated region
      $region45: #{rrcnn_forward.14} parent=39 // pred_check
        %p2422 = pneg %p146
      $region46: #{rrcnn_forward.14} parent=39 // pred_check_branch
        %2424 = sbr.rel (%p2422) target = $region48
      $region47: #{rrcnn_forward.14} parent=39 // pred_region
        %p2425 = scmp.lt.s32.totalorder %s24, 1
        %s2426 = scalar_select %p2425, %s24, 1
        %p2427 = scmp.lt.s32.totalorder %s25, 0
        %s2428 = scalar_select %p2427, %s25, 0
        %p2429 = scmp.lt.s32.totalorder %s23, 0
        %s2430 = scalar_select %p2429, %s23, 0
        %s2431 = sadd.s32 %s2430, %s2428
        %s2432 = sadd.s32 %s2431, %s2426
        %s2433 = smul.addr %s2432, 2
        %s2434 = scalar_lea.vmem %s3, %s2433
      $region48: #{rrcnn_forward.14} parent=39 // pred_fallthru
        _
    $region40: #{rrcnn_forward.14} parent=5 // pred_fallthru
      _
  $region6: #{rrcnn_forward.14} parent=0 // loop_footer
    %s14 = sadd.s32 1, %s10
  $region7: #{rrcnn_forward.14} parent=0 // loop_footer_branch
    %9 = sbr.rel target = $region3
  $region8: #{rrcnn_forward.14} parent=0 // loop_exit
    _

</llo_original>
